<compile_context>
chip_gen: v7x
topology: tpu7x:2x2x1
jax: 0.10.0
libtpu: 0.0.40
codegen_flags: <defaults>
</compile_context>

<pallas_src>
import functools

import jax
import jax.numpy as jnp
from jax import lax
from jax.experimental import pallas as pl
from jax.experimental.pallas import tpu as pltpu


_VMEM_LIMIT = 32 * 1024 * 1024  # fits v5e/v6e/v7x scoped VMEM; tiles below use only a few MiB


def _tile(dim, target, quantum):
    """Largest divisor of `dim` that is <= target and a multiple of `quantum`, else `dim`.

    `quantum`=128 for lane (last) block dims, 8 for sublane dims — keeps every
    BlockSpec compliant with the (8,128) constraint (full-dim blocks always allowed).
    """
    if dim <= target:
        return dim
    t = (target // quantum) * quantum
    while t >= quantum:
        if dim % t == 0:
            return t
        t -= quantum
    return dim


# ----------------------------- Pallas kernels ------------------------------

def _linear_kernel(x_ref, w_ref, b_ref, o_ref, acc_ref, *, activation):
    """Tiled  out = act(x @ w + b).  w is bf16; accumulate in f32."""
    @pl.when(pl.program_id(2) == 0)
    def _():
        acc_ref[...] = jnp.zeros(acc_ref.shape, acc_ref.dtype)

    acc_ref[...] += jnp.dot(x_ref[...].astype(jnp.bfloat16), w_ref[...],
                            preferred_element_type=jnp.float32)

    @pl.when(pl.program_id(2) == pl.num_programs(2) - 1)
    def _():
        acc = acc_ref[...] + b_ref[...].astype(jnp.float32)
        if activation == "gelu":  # exact (erf) GELU, matching torch F.gelu
            acc = 0.5 * acc * (1.0 + lax.erf(acc * 0.7071067811865476))
        o_ref[...] = acc.astype(o_ref.dtype)


def pallas_linear(x, w, b, activation="none", tm=256, tn=256, tk=512):
    """x: (M, K) f32, w: (K, N) bf16, b: (N,) f32 -> (M, N) f32."""
    M, K = x.shape
    N = w.shape[1]
    tm = _tile(M, tm, 8)
    tn = _tile(N, tn, 128)
    tk = _tile(K, tk, 128)
    grid = (M // tm, N // tn, K // tk)
    return pl.pallas_call(
        functools.partial(_linear_kernel, activation=activation),
        grid_spec=pltpu.PrefetchScalarGridSpec(
            num_scalar_prefetch=0, grid=grid,
            in_specs=[pl.BlockSpec((tm, tk), lambda i, j, k: (i, k)),
                      pl.BlockSpec((tk, tn), lambda i, j, k: (k, j)),
                      pl.BlockSpec((1, tn), lambda i, j, k: (0, j))],
            out_specs=pl.BlockSpec((tm, tn), lambda i, j, k: (i, j)),
            scratch_shapes=[pltpu.VMEM((tm, tn), jnp.float32)]),
        out_shape=jax.ShapeDtypeStruct((M, N), x.dtype),
        compiler_params=pltpu.CompilerParams(
            dimension_semantics=("parallel", "parallel", "arbitrary"),
            vmem_limit_bytes=_VMEM_LIMIT),
    )(x, w, b.reshape(1, N))


def _linear_res_ln_kernel(x_ref, w_ref, b_ref, r_ref, g_ref, bb_ref, o_ref, acc_ref,
                          *, alpha, eps):
    """Tiled  out = LayerNorm(residual*alpha + x @ w + b)  (LN over full output dim)."""
    @pl.when(pl.program_id(1) == 0)
    def _():
        acc_ref[...] = jnp.zeros(acc_ref.shape, acc_ref.dtype)

    acc_ref[...] += jnp.dot(x_ref[...].astype(jnp.bfloat16), w_ref[...],
                            preferred_element_type=jnp.float32)

    @pl.when(pl.program_id(1) == pl.num_programs(1) - 1)
    def _():
        y = (r_ref[...].astype(jnp.float32) * alpha
             + acc_ref[...] + b_ref[...].astype(jnp.float32))
        mu = jnp.mean(y, axis=-1, keepdims=True)
        var = jnp.mean(jnp.square(y - mu), axis=-1, keepdims=True)
        y = (y - mu) * lax.rsqrt(var + eps)
        o_ref[...] = (y * g_ref[...].astype(jnp.float32)
                      + bb_ref[...].astype(jnp.float32)).astype(o_ref.dtype)


def pallas_linear_residual_ln(x, w, b, residual, alpha, gamma, beta,
                              eps=1e-5, tm=256, tk=512):
    """Fused matmul + bias + residual*alpha + LayerNorm.  Output width = full D."""
    M, K = x.shape
    D = w.shape[1]
    tm = _tile(M, tm, 8)
    tk = _tile(K, tk, 128)
    grid = (M // tm, K // tk)
    return pl.pallas_call(
        functools.partial(_linear_res_ln_kernel, alpha=alpha, eps=eps),
        grid_spec=pltpu.PrefetchScalarGridSpec(
            num_scalar_prefetch=0, grid=grid,
            in_specs=[pl.BlockSpec((tm, tk), lambda i, k: (i, k)),
                      pl.BlockSpec((tk, D), lambda i, k: (k, 0)),
                      pl.BlockSpec((1, D), lambda i, k: (0, 0)),
                      pl.BlockSpec((tm, D), lambda i, k: (i, 0)),
                      pl.BlockSpec((1, D), lambda i, k: (0, 0)),
                      pl.BlockSpec((1, D), lambda i, k: (0, 0))],
            out_specs=pl.BlockSpec((tm, D), lambda i, k: (i, 0)),
            scratch_shapes=[pltpu.VMEM((tm, D), jnp.float32)]),
        out_shape=jax.ShapeDtypeStruct((M, D), x.dtype),
        compiler_params=pltpu.CompilerParams(
            dimension_semantics=("parallel", "arbitrary"),
            vmem_limit_bytes=_VMEM_LIMIT),
    )(x, w, b.reshape(1, D), residual, gamma.reshape(1, D), beta.reshape(1, D))


def _add_ln_kernel(x_ref, y_ref, g_ref, b_ref, o_ref, *, eps):
    """out = LayerNorm(x + y) over the last dim."""
    v = x_ref[...].astype(jnp.float32) + y_ref[...].astype(jnp.float32)
    mu = jnp.mean(v, axis=-1, keepdims=True)
    var = jnp.mean(jnp.square(v - mu), axis=-1, keepdims=True)
    v = (v - mu) * lax.rsqrt(var + eps)
    o_ref[...] = (v * g_ref[...].astype(jnp.float32)
                  + b_ref[...].astype(jnp.float32)).astype(o_ref.dtype)


def pallas_add_layernorm(x, y, gamma, beta, eps=1e-5, tm=512):
    M, D = x.shape
    tm = _tile(M, tm, 8)
    return pl.pallas_call(
        functools.partial(_add_ln_kernel, eps=eps),
        grid_spec=pltpu.PrefetchScalarGridSpec(
            num_scalar_prefetch=0, grid=(M // tm,),
            in_specs=[pl.BlockSpec((tm, D), lambda i: (i, 0)),
                      pl.BlockSpec((tm, D), lambda i: (i, 0)),
                      pl.BlockSpec((1, D), lambda i: (0, 0)),
                      pl.BlockSpec((1, D), lambda i: (0, 0))],
            out_specs=pl.BlockSpec((tm, D), lambda i: (i, 0))),
        out_shape=jax.ShapeDtypeStruct((M, D), x.dtype),
        compiler_params=pltpu.CompilerParams(
            dimension_semantics=("parallel",),
            vmem_limit_bytes=_VMEM_LIMIT),
    )(x, y, gamma.reshape(1, D), beta.reshape(1, D))


def _patch_embed_kernel(x_ref, w1_ref, b1_ref, g_ref, bb_ref, w2_ref, b2_ref, o_ref, *, eps):
    """Fused: (patch matmul + bias) -> LayerNorm(D_p) -> post_extract_proj (D_p -> D).

    The narrow (rows, D_p=16) intermediate never leaves VMEM, so the only HBM
    output is the lane-dense (rows, D) slab.
    """
    h = jnp.dot(x_ref[...].astype(jnp.bfloat16), w1_ref[...],
                preferred_element_type=jnp.float32) + b1_ref[...].astype(jnp.float32)
    mu = jnp.mean(h, axis=-1, keepdims=True)
    var = jnp.mean(jnp.square(h - mu), axis=-1, keepdims=True)
    h = (h - mu) * lax.rsqrt(var + eps)
    h = h * g_ref[...].astype(jnp.float32) + bb_ref[...].astype(jnp.float32)
    o = jnp.dot(h.astype(jnp.bfloat16), w2_ref[...],
                preferred_element_type=jnp.float32) + b2_ref[...].astype(jnp.float32)
    o_ref[...] = o.astype(o_ref.dtype)


def pallas_patch_embed(patches, w1, b1, gamma, beta, w2, b2, eps=1e-5, tm=512):
    M, K = patches.shape
    Dp = w1.shape[1]
    D = w2.shape[1]
    tm = _tile(M, tm, 8)
    return pl.pallas_call(
        functools.partial(_patch_embed_kernel, eps=eps),
        grid_spec=pltpu.PrefetchScalarGridSpec(
            num_scalar_prefetch=0, grid=(M // tm,),
            in_specs=[pl.BlockSpec((tm, K), lambda i: (i, 0)),
                      pl.BlockSpec((K, Dp), lambda i: (0, 0)),
                      pl.BlockSpec((1, Dp), lambda i: (0, 0)),
                      pl.BlockSpec((1, Dp), lambda i: (0, 0)),
                      pl.BlockSpec((1, Dp), lambda i: (0, 0)),
                      pl.BlockSpec((Dp, D), lambda i: (0, 0)),
                      pl.BlockSpec((1, D), lambda i: (0, 0))],
            out_specs=pl.BlockSpec((tm, D), lambda i: (i, 0))),
        out_shape=jax.ShapeDtypeStruct((M, D), jnp.float32),
        compiler_params=pltpu.CompilerParams(
            dimension_semantics=("parallel",),
            vmem_limit_bytes=_VMEM_LIMIT),
    )(patches, w1, b1.reshape(1, Dp), gamma.reshape(1, Dp), beta.reshape(1, Dp),
      w2, b2.reshape(1, D))


def _flash_attn_kernel(q_ref, k_ref, v_ref, bias_ref, o_ref,
                       m_sc, l_sc, acc_sc, *, num_heads, scale):
    """Flash-style online-softmax attention.

    Blocks: q (1, tq, D), k/v (1, tkv, D), additive key bias (1, 1, tkv).
    Heads are split on the lane axis inside the kernel (static unroll) so the full
    (H, N, N) score tensor is never materialized and no HBM head transposes occur.
    """
    kv_idx = pl.program_id(2)

    @pl.when(kv_idx == 0)
    def _():
        m_sc[...] = jnp.full(m_sc.shape, -jnp.inf, m_sc.dtype)
        l_sc[...] = jnp.zeros(l_sc.shape, l_sc.dtype)
        acc_sc[...] = jnp.zeros(acc_sc.shape, acc_sc.dtype)

    D = q_ref.shape[2]
    dh = D // num_heads

    q_all = q_ref[0].astype(jnp.bfloat16)          # (tq, D)
    k_all = k_ref[0].astype(jnp.bfloat16)          # (tkv, D)
    v_all = v_ref[0].astype(jnp.bfloat16)          # (tkv, D)
    bias = bias_ref[0].astype(jnp.float32)         # (1, tkv) -> broadcasts over queries

    for h in range(num_heads):                     # static unroll over heads
        lo, hi = h * dh, (h + 1) * dh
        q_h = q_all[:, lo:hi]
        k_h = k_all[:, lo:hi]
        v_h = v_all[:, lo:hi]

        s = jnp.dot(q_h, k_h.T, preferred_element_type=jnp.float32)   # (tq, tkv)
        s = s * scale + bias

        m_prev = m_sc[h]
        m_new = jnp.maximum(m_prev, jnp.max(s, axis=-1, keepdims=True))
        corr = jnp.exp(m_prev - m_new)
        p = jnp.exp(s - m_new)
        l_sc[h] = corr * l_sc[h] + jnp.sum(p, axis=-1, keepdims=True)
        acc_sc[h] = corr * acc_sc[h] + jnp.dot(p.astype(jnp.bfloat16), v_h,
                                               preferred_element_type=jnp.float32)
        m_sc[h] = m_new

    @pl.when(kv_idx == pl.num_programs(2) - 1)
    def _():
        outs = []
        for h in range(num_heads):
            outs.append(acc_sc[h] * pl.reciprocal(l_sc[h], approx=True))
        # single lane-dense (tq, D) store
        o_ref[0] = jnp.concatenate(outs, axis=-1).astype(o_ref.dtype)


def pallas_flash_attention(qkv, key_bias, num_heads, scale, tq=128, tkv=128):
    """qkv: (B, N, 3D) f32 (q | k | v packed on last axis), key_bias: (B, 1, N) f32."""
    B, N, threeD = qkv.shape
    D = threeD // 3
    dh = D // num_heads
    tq = _tile(N, tq, 8)
    tkv = _tile(N, tkv, 128)     # also the lane dim of the bias block
    grid = (B, N // tq, N // tkv)
    return pl.pallas_call(
        functools.partial(_flash_attn_kernel, num_heads=num_heads, scale=scale),
        grid_spec=pltpu.PrefetchScalarGridSpec(
            num_scalar_prefetch=0, grid=grid,
            in_specs=[pl.BlockSpec((1, tq, D), lambda b, qi, ki: (b, qi, 0)),   # q cols
                      pl.BlockSpec((1, tkv, D), lambda b, qi, ki: (b, ki, 1)),  # k cols
                      pl.BlockSpec((1, tkv, D), lambda b, qi, ki: (b, ki, 2)),  # v cols
                      pl.BlockSpec((1, 1, tkv), lambda b, qi, ki: (b, 0, ki))],
            out_specs=pl.BlockSpec((1, tq, D), lambda b, qi, ki: (b, qi, 0)),
            scratch_shapes=[pltpu.VMEM((num_heads, tq, 1), jnp.float32),
                            pltpu.VMEM((num_heads, tq, 1), jnp.float32),
                            pltpu.VMEM((num_heads, tq, dh), jnp.float32)]),
        out_shape=jax.ShapeDtypeStruct((B, N, D), qkv.dtype),
        compiler_params=pltpu.CompilerParams(
            dimension_semantics=("parallel", "parallel", "arbitrary"),
            vmem_limit_bytes=_VMEM_LIMIT),
    )(qkv, qkv, qkv, key_bias)


# ------------------------- small synthetic BEATs cfg -----------------------

class BEATsMiniConfig:
    patch_size = 16            # BEATs patch_embedding kernel == stride == 16
    patch_embed_dim = 16       # cfg.embed_dim (real BEATs: 512)
    encoder_embed_dim = 128    # cfg.encoder_embed_dim == hidden_size (real: 768); lane-dense
    encoder_layers = 2         # real: 12
    encoder_attention_heads = 4
    encoder_ffn_embed_dim = 256
    conv_pos = 4               # real: 128
    conv_pos_groups = 4        # real: 16
    deep_norm = True
    layer_norm_first = False


def init_params(key, cfg):
    Dp, D = cfg.patch_embed_dim, cfg.encoder_embed_dim
    Fh = cfg.encoder_ffn_embed_dim
    P = cfg.patch_size
    bf16 = jnp.bfloat16

    def nrm(k, shape, scale=0.02):
        return scale * jax.random.normal(k, shape, dtype=jnp.float32)

    keys = iter(jax.random.split(key, 4 + 6 * cfg.encoder_layers))
    params = {
        # Conv2d(1, Dp, 16, stride=16) weight folded into a (P*P, Dp) matmul weight (bf16 MXU)
        "patch_w": nrm(next(keys), (P * P, Dp)).astype(bf16),
        "patch_b": jnp.zeros((Dp,), jnp.float32),
        "ln0_g": jnp.ones((Dp,), jnp.float32),
        "ln0_b": jnp.zeros((Dp,), jnp.float32),
        "proj_w": nrm(next(keys), (Dp, D)).astype(bf16),        # post_extract_proj
        "proj_b": jnp.zeros((D,), jnp.float32),
        "pos_conv_w": nrm(next(keys), (D, D // cfg.conv_pos_groups, cfg.conv_pos)),
        "pos_conv_b": jnp.zeros((D,), jnp.float32),
        "enc_ln_g": jnp.ones((D,), jnp.float32),
        "enc_ln_b": jnp.zeros((D,), jnp.float32),
        "layers": [],
    }
    for _ in range(cfg.encoder_layers):
        qw = nrm(next(keys), (D, D))
        kw = nrm(next(keys), (D, D))
        vw = nrm(next(keys), (D, D))
        ow = nrm(next(keys), (D, D))
        params["layers"].append({
            "qkv_w": jnp.concatenate([qw, kw, vw], axis=1).astype(bf16),   # fused (D, 3D)
            "qkv_b": jnp.zeros((3 * D,), jnp.float32),
            "o_w": ow.astype(bf16), "o_b": jnp.zeros((D,), jnp.float32),
            "ln1_g": jnp.ones((D,), jnp.float32), "ln1_b": jnp.zeros((D,), jnp.float32),
            "fc1_w": nrm(next(keys), (D, Fh)).astype(bf16), "fc1_b": jnp.zeros((Fh,), jnp.float32),
            "fc2_w": nrm(next(keys), (Fh, D)).astype(bf16), "fc2_b": jnp.zeros((D,), jnp.float32),
            "ln2_g": jnp.ones((D,), jnp.float32), "ln2_b": jnp.zeros((D,), jnp.float32),
        })
    return params


def forward_padding_mask(num_feat, padding_mask):
    """Literal port of BEATs.forward_padding_mask (mask True == padded)."""
    B, T = padding_mask.shape
    extra = T % num_feat
    if extra > 0:
        padding_mask = padding_mask[:, : T - extra]
    padding_mask = padding_mask.reshape(B, num_feat, -1)
    return jnp.all(padding_mask, axis=-1)


class BEATsAudioTowerPallas:
    """Mirrors BEATsAudioTower.forward: extract_features(audio, padding_mask) -> select layer."""

    def __init__(self, cfg, params, select_layer=-1):
        self.cfg = cfg
        self.params = params
        self.select_layer = select_layer        # args.mm_audio_select_layer
        self.select_feature = "patch"
        self.audio_split_type_dim = 3

    @property
    def hidden_size(self):
        return self.cfg.encoder_embed_dim

    def feature_select(self, audio_forward_outs):
        # extract_features already materializes only the select_layer hidden state
        return audio_forward_outs

    def forward(self, audio, padding_mask):
        if audio.ndim != self.audio_split_type_dim:
            raise ValueError("Fbank feature wrong dimension.")
        audio_forward_out = self.extract_features(audio, padding_mask)
        return self.feature_select(audio_forward_out).astype(audio.dtype)

    def extract_features(self, fbank, padding_mask):
        cfg, p = self.cfg, self.params
        B, T, F = fbank.shape
        P = cfg.patch_size
        Tp, Fp = T // P, F // P
        N = Tp * Fp
        D = cfg.encoder_embed_dim
        H = cfg.encoder_attention_heads
        dh = D // H
        L = cfg.encoder_layers

        # First BEATs.forward_padding_mask call is an identity when the mask is already
        # at frame granularity (length == T); skip the pointless reshape/reduce then.
        if padding_mask is not None and padding_mask.shape[1] != T:
            padding_mask = forward_padding_mask(T, padding_mask)

        # ---- patch embedding: Conv2d(1, Dp, 16, 16) == patchify + fused matmul+LN0+proj
        # TODO(synk): feed 16x16 patches via a BlockSpec index_map instead of this one-time
        # host-side relayout (blocked by the (8,128) last-two-dims constraint on (B, T, F)).
        patches = (fbank.reshape(B, Tp, P, Fp, P)
                        .transpose(0, 1, 3, 2, 4)
                        .reshape(B * N, P * P))
        x2d = pallas_patch_embed(patches, p["patch_w"], p["patch_b"],
                                 p["ln0_g"], p["ln0_b"], p["proj_w"], p["proj_b"])  # (B*N, D)

        if padding_mask is not None:
            padding_mask = forward_padding_mask(N, padding_mask)    # (B, N) bool

        # ---- TransformerEncoder (layer_norm_first=False, deep_norm)
        x = x2d.reshape(B, N, D)
        if padding_mask is not None:
            x = jnp.where(padding_mask[..., None], 0.0, x)          # x[padding_mask] = 0

        # positional conv: grouped Conv1d + SamePad + GELU (tiny op, plain JAX glue)
        # TODO(synk): grouped pos_conv kept in lax.conv; not worth a dedicated Pallas kernel here.
        xc = lax.conv_general_dilated(
            x.transpose(0, 2, 1), p["pos_conv_w"], window_strides=(1,),
            padding=[(cfg.conv_pos // 2, cfg.conv_pos // 2)],
            dimension_numbers=("NCH", "OIH", "NCH"),
            feature_group_count=cfg.conv_pos_groups)
        xc = xc + p["pos_conv_b"][None, :, None]
        if cfg.conv_pos % 2 == 0:  # SamePad
            xc = xc[:, :, :-1]
        xc = jax.nn.gelu(xc, approximate=False).transpose(0, 2, 1)

        # x = LayerNorm(x + pos_conv(x))  — fused add + LN kernel
        x2d = pallas_add_layernorm(x.reshape(B * N, D), xc.reshape(B * N, D),
                                   p["enc_ln_g"], p["enc_ln_b"])

        # additive key-padding bias, broadcast over heads/queries inside the kernel
        if padding_mask is not None:
            kbias = jnp.where(padding_mask, -1e9, 0.0).astype(jnp.float32)[:, None, :]
        else:
            kbias = jnp.zeros((B, 1, N), jnp.float32)

        alpha = (2.0 * L) ** 0.25 if cfg.deep_norm else 1.0
        scale = dh ** -0.5
        sel = self.select_layer if self.select_layer >= 0 else L + self.select_layer

        selected = None
        for li, lp in enumerate(p["layers"]):
            residual = x2d
            qkv = pallas_linear(x2d, lp["qkv_w"], lp["qkv_b"])                 # (B*N, 3D)
            attn = pallas_flash_attention(qkv.reshape(B, N, 3 * D), kbias,
                                          num_heads=H, scale=scale)            # (B, N, D)
            # TODO(synk): BEATs' gated relative position bias (gru_rel_pos) is omitted here.
            x2d = pallas_linear_residual_ln(attn.reshape(B * N, D), lp["o_w"], lp["o_b"],
                                            residual, alpha, lp["ln1_g"], lp["ln1_b"])

            residual = x2d
            h = pallas_linear(x2d, lp["fc1_w"], lp["fc1_b"], activation="gelu")
            x2d = pallas_linear_residual_ln(h, lp["fc2_w"], lp["fc2_b"],
                                            residual, alpha, lp["ln2_g"], lp["ln2_b"])

            if li == sel:                    # only materialize the selected layer
                selected = x2d
        if selected is None:
            selected = x2d
        return selected.reshape(B, N, D)


if __name__ == "__main__":
    cfg = BEATsMiniConfig()
    key = jax.random.PRNGKey(0)
    pkey, akey = jax.random.split(key)
    params = init_params(pkey, cfg)

    B, T, F = 2, 64, 32                               # fbank: (batch, frames, mel-bins)
    audio = jax.random.normal(akey, (B, T, F), dtype=jnp.float32)
    frame_ids = jnp.arange(T)[None, :]
    valid_frames = jnp.array([T, 48])[:, None]
    padding_mask = frame_ids >= valid_frames          # (B, T) bool, True == padded

    tower = BEATsAudioTowerPallas(cfg, params, select_layer=-1)
    forward_jit = jax.jit(tower.forward)
    feats = forward_jit(audio, padding_mask)
    feats = jax.block_until_ready(feats)

    N = (T // cfg.patch_size) * (F // cfg.patch_size)
    assert feats.shape == (B, N, cfg.encoder_embed_dim), feats.shape
    assert feats.dtype == audio.dtype
    assert bool(jnp.all(jnp.isfinite(feats)))
    print("KERNEL_OK")
</pallas_src>

<mosaic_0001>
module attributes {stable_mosaic.version = 11 : i64} {
  func.func @_patch_embed_kernel(%arg0: i32, %arg1: memref<16x256xf32, #tpu.memory_space<vmem>>, %arg2: memref<256x16xbf16, #tpu.memory_space<vmem>>, %arg3: memref<1x16xf32, #tpu.memory_space<vmem>>, %arg4: memref<1x16xf32, #tpu.memory_space<vmem>>, %arg5: memref<1x16xf32, #tpu.memory_space<vmem>>, %arg6: memref<16x128xbf16, #tpu.memory_space<vmem>>, %arg7: memref<1x128xf32, #tpu.memory_space<vmem>>, %arg8: memref<16x128xf32, #tpu.memory_space<vmem>>) attributes {dimension_semantics = [#tpu.dimension_semantics<parallel>], iteration_bounds = array<i64: 1>, scalar_prefetch = 0 : i64, scratch_operands = 0 : i64, tpu.core_type = #tpu.core_type<tc>, window_params = [{transform_indices = @transform_0, window_bounds = array<i64: 16, 256>}, {pipeline_mode = #tpu.pipeline_mode<synchronous>, transform_indices = @transform_1, window_bounds = array<i64: 256, 16>}, {pipeline_mode = #tpu.pipeline_mode<synchronous>, transform_indices = @transform_2, window_bounds = array<i64: 1, 16>}, {pipeline_mode = #tpu.pipeline_mode<synchronous>, transform_indices = @transform_3, window_bounds = array<i64: 1, 16>}, {pipeline_mode = #tpu.pipeline_mode<synchronous>, transform_indices = @transform_4, window_bounds = array<i64: 1, 16>}, {pipeline_mode = #tpu.pipeline_mode<synchronous>, transform_indices = @transform_5, window_bounds = array<i64: 16, 128>}, {pipeline_mode = #tpu.pipeline_mode<synchronous>, transform_indices = @transform_6, window_bounds = array<i64: 1, 128>}, {transform_indices = @transform_7, window_bounds = array<i64: 16, 128>}]} {
    %c0 = arith.constant 0 : index
    %c0_0 = arith.constant 0 : index
    %0 = vector.load %arg1[%c0, %c0_0] : memref<16x256xf32, #tpu.memory_space<vmem>>, vector<16x256xf32>
    %1 = arith.truncf %0 : vector<16x256xf32> to vector<16x256xbf16>
    %c0_1 = arith.constant 0 : index
    %c0_2 = arith.constant 0 : index
    %2 = vector.load %arg2[%c0_1, %c0_2] : memref<256x16xbf16, #tpu.memory_space<vmem>>, vector<256x16xbf16>
    %cst = arith.constant dense<0.000000e+00> : vector<16x16xf32>
    %3 = tpu.matmul %1, %2, %cst {dimension_numbers = #tpu.dot_dimension_numbers<[1], [0], [0], [1], [0, 0, 1, 1], [], []>} : vector<16x256xbf16>, vector<256x16xbf16>, vector<16x16xf32> -> vector<16x16xf32>
    %c0_3 = arith.constant 0 : index
    %c0_4 = arith.constant 0 : index
    %4 = vector.load %arg3[%c0_3, %c0_4] : memref<1x16xf32, #tpu.memory_space<vmem>>, vector<1x16xf32>
    %5 = vector.broadcast %4 : vector<1x16xf32> to vector<16x16xf32>
    %6 = arith.addf %3, %5 : vector<16x16xf32>
    %cst_5 = arith.constant dense<0.000000e+00> : vector<16xf32>
    %7 = vector.multi_reduction <add>, %6, %cst_5 [1] : vector<16x16xf32> to vector<16xf32>
    %8 = vector.shape_cast %7 : vector<16xf32> to vector<16x1xf32>
    %cst_6 = arith.constant 1.600000e+01 : f32
    %9 = vector.broadcast %cst_6 : f32 to vector<16x1xf32>
    %10 = arith.divf %8, %9 : vector<16x1xf32>
    %11 = vector.broadcast %10 : vector<16x1xf32> to vector<16x16xf32>
    %12 = arith.subf %6, %11 : vector<16x16xf32>
    %13 = arith.mulf %12, %12 : vector<16x16xf32>
    %cst_7 = arith.constant dense<0.000000e+00> : vector<16xf32>
    %14 = vector.multi_reduction <add>, %13, %cst_7 [1] : vector<16x16xf32> to vector<16xf32>
    %15 = vector.shape_cast %14 : vector<16xf32> to vector<16x1xf32>
    %cst_8 = arith.constant 1.600000e+01 : f32
    %16 = vector.broadcast %cst_8 : f32 to vector<16x1xf32>
    %17 = arith.divf %15, %16 : vector<16x1xf32>
    %18 = vector.broadcast %10 : vector<16x1xf32> to vector<16x16xf32>
    %19 = arith.subf %6, %18 : vector<16x16xf32>
    %cst_9 = arith.constant 9.99999974E-6 : f32
    %20 = vector.broadcast %cst_9 : f32 to vector<16x1xf32>
    %21 = arith.addf %17, %20 : vector<16x1xf32>
    %22 = math.rsqrt %21 : vector<16x1xf32>
    %23 = vector.broadcast %22 : vector<16x1xf32> to vector<16x16xf32>
    %24 = arith.mulf %19, %23 : vector<16x16xf32>
    %c0_10 = arith.constant 0 : index
    %c0_11 = arith.constant 0 : index
    %25 = vector.load %arg4[%c0_10, %c0_11] : memref<1x16xf32, #tpu.memory_space<vmem>>, vector<1x16xf32>
    %26 = vector.broadcast %25 : vector<1x16xf32> to vector<16x16xf32>
    %27 = arith.mulf %24, %26 : vector<16x16xf32>
    %c0_12 = arith.constant 0 : index
    %c0_13 = arith.constant 0 : index
    %28 = vector.load %arg5[%c0_12, %c0_13] : memref<1x16xf32, #tpu.memory_space<vmem>>, vector<1x16xf32>
    %29 = vector.broadcast %28 : vector<1x16xf32> to vector<16x16xf32>
    %30 = arith.addf %27, %29 : vector<16x16xf32>
    %31 = arith.truncf %30 : vector<16x16xf32> to vector<16x16xbf16>
    %c0_14 = arith.constant 0 : index
    %c0_15 = arith.constant 0 : index
    %32 = vector.load %arg6[%c0_14, %c0_15] : memref<16x128xbf16, #tpu.memory_space<vmem>>, vector<16x128xbf16>
    %cst_16 = arith.constant dense<0.000000e+00> : vector<16x128xf32>
    %33 = tpu.matmul %31, %32, %cst_16 {dimension_numbers = #tpu.dot_dimension_numbers<[1], [0], [0], [1], [0, 0, 1, 1], [], []>} : vector<16x16xbf16>, vector<16x128xbf16>, vector<16x128xf32> -> vector<16x128xf32>
    %c0_17 = arith.constant 0 : index
    %c0_18 = arith.constant 0 : index
    %34 = vector.load %arg7[%c0_17, %c0_18] : memref<1x128xf32, #tpu.memory_space<vmem>>, vector<1x128xf32>
    %35 = vector.broadcast %34 : vector<1x128xf32> to vector<16x128xf32>
    %36 = arith.addf %33, %35 : vector<16x128xf32>
    %c0_19 = arith.constant 0 : index
    %c0_20 = arith.constant 0 : index
    %37 = vector.load %arg8[%c0_19, %c0_20] : memref<16x128xf32, #tpu.memory_space<vmem>>, vector<16x128xf32>
    tpu.vector_store %arg8[%c0_19, %c0_20], %36 {strides = array<i32>} : memref<16x128xf32, #tpu.memory_space<vmem>>, vector<16x128xf32>,
    return
  }
  func.func @transform_0(%arg0: i32) -> (i32, i32) {
    %c0_i32 = arith.constant 0 : i32
    %c0_i32_0 = arith.constant 0 : i32
    return %arg0, %c0_i32 : i32, i32
  }
  func.func @transform_1(%arg0: i32) -> (i32, i32) {
    %c0_i32 = arith.constant 0 : i32
    %c0_i32_0 = arith.constant 0 : i32
    %c0_i32_1 = arith.constant 0 : i32
    return %c0_i32, %c0_i32_0 : i32, i32
  }
  func.func @transform_2(%arg0: i32) -> (i32, i32) {
    %c0_i32 = arith.constant 0 : i32
    %c0_i32_0 = arith.constant 0 : i32
    %c0_i32_1 = arith.constant 0 : i32
    return %c0_i32, %c0_i32_0 : i32, i32
  }
  func.func @transform_3(%arg0: i32) -> (i32, i32) {
    %c0_i32 = arith.constant 0 : i32
    %c0_i32_0 = arith.constant 0 : i32
    %c0_i32_1 = arith.constant 0 : i32
    return %c0_i32, %c0_i32_0 : i32, i32
  }
  func.func @transform_4(%arg0: i32) -> (i32, i32) {
    %c0_i32 = arith.constant 0 : i32
    %c0_i32_0 = arith.constant 0 : i32
    %c0_i32_1 = arith.constant 0 : i32
    return %c0_i32, %c0_i32_0 : i32, i32
  }
  func.func @transform_5(%arg0: i32) -> (i32, i32) {
    %c0_i32 = arith.constant 0 : i32
    %c0_i32_0 = arith.constant 0 : i32
    %c0_i32_1 = arith.constant 0 : i32
    return %c0_i32, %c0_i32_0 : i32, i32
  }
  func.func @transform_6(%arg0: i32) -> (i32, i32) {
    %c0_i32 = arith.constant 0 : i32
    %c0_i32_0 = arith.constant 0 : i32
    %c0_i32_1 = arith.constant 0 : i32
    return %c0_i32, %c0_i32_0 : i32, i32
  }
  func.func @transform_7(%arg0: i32) -> (i32, i32) {
    %c0_i32 = arith.constant 0 : i32
    %c0_i32_0 = arith.constant 0 : i32
    return %arg0, %c0_i32 : i32, i32
  }
}

module attributes {stable_mosaic.version = 11 : i64} {
  func.func @_add_ln_kernel(%arg0: i32, %arg1: memref<16x128xf32, #tpu.memory_space<vmem>>, %arg2: memref<16x128xf32, #tpu.memory_space<vmem>>, %arg3: memref<1x128xf32, #tpu.memory_space<vmem>>, %arg4: memref<1x128xf32, #tpu.memory_space<vmem>>, %arg5: memref<16x128xf32, #tpu.memory_space<vmem>>) attributes {dimension_semantics = [#tpu.dimension_semantics<parallel>], iteration_bounds = array<i64: 1>, scalar_prefetch = 0 : i64, scratch_operands = 0 : i64, tpu.core_type = #tpu.core_type<tc>, window_params = [{transform_indices = @transform_0, window_bounds = array<i64: 16, 128>}, {transform_indices = @transform_1, window_bounds = array<i64: 16, 128>}, {pipeline_mode = #tpu.pipeline_mode<synchronous>, transform_indices = @transform_2, window_bounds = array<i64: 1, 128>}, {pipeline_mode = #tpu.pipeline_mode<synchronous>, transform_indices = @transform_3, window_bounds = array<i64: 1, 128>}, {transform_indices = @transform_4, window_bounds = array<i64: 16, 128>}]} {
    %c0 = arith.constant 0 : index
    %c0_0 = arith.constant 0 : index
    %0 = vector.load %arg1[%c0, %c0_0] : memref<16x128xf32, #tpu.memory_space<vmem>>, vector<16x128xf32>
    %c0_1 = arith.constant 0 : index
    %c0_2 = arith.constant 0 : index
    %1 = vector.load %arg2[%c0_1, %c0_2] : memref<16x128xf32, #tpu.memory_space<vmem>>, vector<16x128xf32>
    %2 = arith.addf %0, %1 : vector<16x128xf32>
    %cst = arith.constant dense<0.000000e+00> : vector<16xf32>
    %3 = vector.multi_reduction <add>, %2, %cst [1] : vector<16x128xf32> to vector<16xf32>
    %4 = vector.shape_cast %3 : vector<16xf32> to vector<16x1xf32>
    %cst_3 = arith.constant 1.280000e+02 : f32
    %5 = vector.broadcast %cst_3 : f32 to vector<16x1xf32>
    %6 = arith.divf %4, %5 : vector<16x1xf32>
    %7 = vector.broadcast %6 : vector<16x1xf32> to vector<16x128xf32>
    %8 = arith.subf %2, %7 : vector<16x128xf32>
    %9 = arith.mulf %8, %8 : vector<16x128xf32>
    %cst_4 = arith.constant dense<0.000000e+00> : vector<16xf32>
    %10 = vector.multi_reduction <add>, %9, %cst_4 [1] : vector<16x128xf32> to vector<16xf32>
    %11 = vector.shape_cast %10 : vector<16xf32> to vector<16x1xf32>
    %cst_5 = arith.constant 1.280000e+02 : f32
    %12 = vector.broadcast %cst_5 : f32 to vector<16x1xf32>
    %13 = arith.divf %11, %12 : vector<16x1xf32>
    %14 = vector.broadcast %6 : vector<16x1xf32> to vector<16x128xf32>
    %15 = arith.subf %2, %14 : vector<16x128xf32>
    %cst_6 = arith.constant 9.99999974E-6 : f32
    %16 = vector.broadcast %cst_6 : f32 to vector<16x1xf32>
    %17 = arith.addf %13, %16 : vector<16x1xf32>
    %18 = math.rsqrt %17 : vector<16x1xf32>
    %19 = vector.broadcast %18 : vector<16x1xf32> to vector<16x128xf32>
    %20 = arith.mulf %15, %19 : vector<16x128xf32>
    %c0_7 = arith.constant 0 : index
    %c0_8 = arith.constant 0 : index
    %21 = vector.load %arg3[%c0_7, %c0_8] : memref<1x128xf32, #tpu.memory_space<vmem>>, vector<1x128xf32>
    %22 = vector.broadcast %21 : vector<1x128xf32> to vector<16x128xf32>
    %23 = arith.mulf %20, %22 : vector<16x128xf32>
    %c0_9 = arith.constant 0 : index
    %c0_10 = arith.constant 0 : index
    %24 = vector.load %arg4[%c0_9, %c0_10] : memref<1x128xf32, #tpu.memory_space<vmem>>, vector<1x128xf32>
    %25 = vector.broadcast %24 : vector<1x128xf32> to vector<16x128xf32>
    %26 = arith.addf %23, %25 : vector<16x128xf32>
    %c0_11 = arith.constant 0 : index
    %c0_12 = arith.constant 0 : index
    %27 = vector.load %arg5[%c0_11, %c0_12] : memref<16x128xf32, #tpu.memory_space<vmem>>, vector<16x128xf32>
    tpu.vector_store %arg5[%c0_11, %c0_12], %26 {strides = array<i32>} : memref<16x128xf32, #tpu.memory_space<vmem>>, vector<16x128xf32>,
    return
  }
  func.func @transform_0(%arg0: i32) -> (i32, i32) {
    %c0_i32 = arith.constant 0 : i32
    %c0_i32_0 = arith.constant 0 : i32
    return %arg0, %c0_i32 : i32, i32
  }
  func.func @transform_1(%arg0: i32) -> (i32, i32) {
    %c0_i32 = arith.constant 0 : i32
    %c0_i32_0 = arith.constant 0 : i32
    return %arg0, %c0_i32 : i32, i32
  }
  func.func @transform_2(%arg0: i32) -> (i32, i32) {
    %c0_i32 = arith.constant 0 : i32
    %c0_i32_0 = arith.constant 0 : i32
    %c0_i32_1 = arith.constant 0 : i32
    return %c0_i32, %c0_i32_0 : i32, i32
  }
  func.func @transform_3(%arg0: i32) -> (i32, i32) {
    %c0_i32 = arith.constant 0 : i32
    %c0_i32_0 = arith.constant 0 : i32
    %c0_i32_1 = arith.constant 0 : i32
    return %c0_i32, %c0_i32_0 : i32, i32
  }
  func.func @transform_4(%arg0: i32) -> (i32, i32) {
    %c0_i32 = arith.constant 0 : i32
    %c0_i32_0 = arith.constant 0 : i32
    return %arg0, %c0_i32 : i32, i32
  }
}

module attributes {stable_mosaic.version = 11 : i64} {
  func.func @_linear_kernel(%arg0: i32, %arg1: i32, %arg2: i32, %arg3: memref<16x128xf32, #tpu.memory_space<vmem>>, %arg4: memref<128x128xbf16, #tpu.memory_space<vmem>>, %arg5: memref<1x128xf32, #tpu.memory_space<vmem>>, %arg6: memref<16x128xf32, #tpu.memory_space<vmem>>, %arg7: memref<16x128xf32, #tpu.memory_space<vmem>>) attributes {dimension_semantics = [#tpu.dimension_semantics<parallel>, #tpu.dimension_semantics<parallel>, #tpu.dimension_semantics<arbitrary>], iteration_bounds = array<i64: 1, 3, 1>, scalar_prefetch = 0 : i64, scratch_operands = 1 : i64, tpu.core_type = #tpu.core_type<tc>, window_params = [{transform_indices = @transform_0, window_bounds = array<i64: 16, 128>}, {transform_indices = @transform_1, window_bounds = array<i64: 128, 128>}, {transform_indices = @transform_2, window_bounds = array<i64: 1, 128>}, {transform_indices = @transform_3, window_bounds = array<i64: 16, 128>}]} {
    %c0_i32 = arith.constant 0 : i32
    %0 = arith.cmpi eq, %arg2, %c0_i32 : i32
    %1 = arith.extui %0 : i1 to i32
    %c0_i32_0 = arith.constant 0 : i32
    %2 = arith.cmpi ne, %1, %c0_i32_0 : i32
    scf.if %2 {
      %cst_10 = arith.constant 0.000000e+00 : f32
      %13 = vector.broadcast %cst_10 : f32 to vector<16x128xf32>
      %c0_11 = arith.constant 0 : index
      %c0_12 = arith.constant 0 : index
      %14 = vector.load %arg7[%c0_11, %c0_12] : memref<16x128xf32, #tpu.memory_space<vmem>>, vector<16x128xf32>
      tpu.vector_store %arg7[%c0_11, %c0_12], %13 {strides = array<i32>} : memref<16x128xf32, #tpu.memory_space<vmem>>, vector<16x128xf32>,
    } else {
    }
    %c0 = arith.constant 0 : index
    %c0_1 = arith.constant 0 : index
    %3 = vector.load %arg7[%c0, %c0_1] : memref<16x128xf32, #tpu.memory_space<vmem>>, vector<16x128xf32>
    %c0_2 = arith.constant 0 : index
    %c0_3 = arith.constant 0 : index
    %4 = vector.load %arg3[%c0_2, %c0_3] : memref<16x128xf32, #tpu.memory_space<vmem>>, vector<16x128xf32>
    %5 = arith.truncf %4 : vector<16x128xf32> to vector<16x128xbf16>
    %c0_4 = arith.constant 0 : index
    %c0_5 = arith.constant 0 : index
    %6 = vector.load %arg4[%c0_4, %c0_5] : memref<128x128xbf16, #tpu.memory_space<vmem>>, vector<128x128xbf16>
    %cst = arith.constant dense<0.000000e+00> : vector<16x128xf32>
    %7 = tpu.matmul %5, %6, %cst {dimension_numbers = #tpu.dot_dimension_numbers<[1], [0], [0], [1], [0, 0, 1, 1], [], []>} : vector<16x128xbf16>, vector<128x128xbf16>, vector<16x128xf32> -> vector<16x128xf32>
    %8 = arith.addf %3, %7 : vector<16x128xf32>
    %c0_6 = arith.constant 0 : index
    %c0_7 = arith.constant 0 : index
    %9 = vector.load %arg7[%c0_6, %c0_7] : memref<16x128xf32, #tpu.memory_space<vmem>>, vector<16x128xf32>
    tpu.vector_store %arg7[%c0_6, %c0_7], %8 {strides = array<i32>} : memref<16x128xf32, #tpu.memory_space<vmem>>, vector<16x128xf32>,
    %c0_i32_8 = arith.constant 0 : i32
    %10 = arith.cmpi eq, %arg2, %c0_i32_8 : i32
    %11 = arith.extui %10 : i1 to i32
    %c0_i32_9 = arith.constant 0 : i32
    %12 = arith.cmpi ne, %11, %c0_i32_9 : i32
    scf.if %12 {
      %c0_10 = arith.constant 0 : index
      %c0_11 = arith.constant 0 : index
      %13 = vector.load %arg7[%c0_10, %c0_11] : memref<16x128xf32, #tpu.memory_space<vmem>>, vector<16x128xf32>
      %c0_12 = arith.constant 0 : index
      %c0_13 = arith.constant 0 : index
      %14 = vector.load %arg5[%c0_12, %c0_13] : memref<1x128xf32, #tpu.memory_space<vmem>>, vector<1x128xf32>
      %15 = vector.broadcast %14 : vector<1x128xf32> to vector<16x128xf32>
      %16 = arith.addf %13, %15 : vector<16x128xf32>
      %c0_14 = arith.constant 0 : index
      %c0_15 = arith.constant 0 : index
      %17 = vector.load %arg6[%c0_14, %c0_15] : memref<16x128xf32, #tpu.memory_space<vmem>>, vector<16x128xf32>
      tpu.vector_store %arg6[%c0_14, %c0_15], %16 {strides = array<i32>} : memref<16x128xf32, #tpu.memory_space<vmem>>, vector<16x128xf32>,
    } else {
    }
    return
  }
  func.func @transform_0(%arg0: i32, %arg1: i32, %arg2: i32) -> (i32, i32) {
    %c0_i32 = arith.constant 0 : i32
    return %arg0, %arg2 : i32, i32
  }
  func.func @transform_1(%arg0: i32, %arg1: i32, %arg2: i32) -> (i32, i32) {
    %c0_i32 = arith.constant 0 : i32
    return %arg2, %arg1 : i32, i32
  }
  func.func @transform_2(%arg0: i32, %arg1: i32, %arg2: i32) -> (i32, i32) {
    %c0_i32 = arith.constant 0 : i32
    %c0_i32_0 = arith.constant 0 : i32
    return %c0_i32, %arg1 : i32, i32
  }
  func.func @transform_3(%arg0: i32, %arg1: i32, %arg2: i32) -> (i32, i32) {
    %c0_i32 = arith.constant 0 : i32
    return %arg0, %arg1 : i32, i32
  }
}

module attributes {stable_mosaic.version = 11 : i64} {
  func.func @_flash_attn_kernel(%arg0: i32, %arg1: i32, %arg2: i32, %arg3: memref<1x8x128xf32, #tpu.memory_space<vmem>>, %arg4: memref<1x8x128xf32, #tpu.memory_space<vmem>>, %arg5: memref<1x8x128xf32, #tpu.memory_space<vmem>>, %arg6: memref<1x1x8xf32, #tpu.memory_space<vmem>>, %arg7: memref<1x8x128xf32, #tpu.memory_space<vmem>>, %arg8: memref<4x8x1xf32, #tpu.memory_space<vmem>>, %arg9: memref<4x8x1xf32, #tpu.memory_space<vmem>>, %arg10: memref<4x8x32xf32, #tpu.memory_space<vmem>>) attributes {dimension_semantics = [#tpu.dimension_semantics<parallel>, #tpu.dimension_semantics<parallel>, #tpu.dimension_semantics<arbitrary>], iteration_bounds = array<i64: 2, 1, 1>, scalar_prefetch = 0 : i64, scratch_operands = 3 : i64, tpu.core_type = #tpu.core_type<tc>, window_params = [{transform_indices = @transform_0, window_bounds = array<i64: 1, 8, 128>}, {transform_indices = @transform_1, window_bounds = array<i64: 1, 8, 128>}, {transform_indices = @transform_2, window_bounds = array<i64: 1, 8, 128>}, {transform_indices = @transform_3, window_bounds = array<i64: 1, 1, 8>}, {transform_indices = @transform_4, window_bounds = array<i64: 1, 8, 128>}]} {
    %c0_i32 = arith.constant 0 : i32
    %0 = arith.cmpi eq, %arg2, %c0_i32 : i32
    %1 = arith.extui %0 : i1 to i32
    %c0_i32_0 = arith.constant 0 : i32
    %2 = arith.cmpi ne, %1, %c0_i32_0 : i32
    scf.if %2 {
      %cst_102 = arith.constant 0xFF800000 : f32
      %181 = vector.broadcast %cst_102 : f32 to vector<4x8x1xf32>
      %c0_103 = arith.constant 0 : index
      %c0_104 = arith.constant 0 : index
      %c0_105 = arith.constant 0 : index
      %182 = vector.load %arg8[%c0_103, %c0_104, %c0_105] : memref<4x8x1xf32, #tpu.memory_space<vmem>>, vector<4x8x1xf32>
      tpu.vector_store %arg8[%c0_103, %c0_104, %c0_105], %181 {strides = array<i32>} : memref<4x8x1xf32, #tpu.memory_space<vmem>>, vector<4x8x1xf32>,
      %cst_106 = arith.constant 0.000000e+00 : f32
      %183 = vector.broadcast %cst_106 : f32 to vector<4x8x1xf32>
      %c0_107 = arith.constant 0 : index
      %c0_108 = arith.constant 0 : index
      %c0_109 = arith.constant 0 : index
      %184 = vector.load %arg9[%c0_107, %c0_108, %c0_109] : memref<4x8x1xf32, #tpu.memory_space<vmem>>, vector<4x8x1xf32>
      tpu.vector_store %arg9[%c0_107, %c0_108, %c0_109], %183 {strides = array<i32>} : memref<4x8x1xf32, #tpu.memory_space<vmem>>, vector<4x8x1xf32>,
      %cst_110 = arith.constant 0.000000e+00 : f32
      %185 = vector.broadcast %cst_110 : f32 to vector<4x8x32xf32>
      %c0_111 = arith.constant 0 : index
      %c0_112 = arith.constant 0 : index
      %c0_113 = arith.constant 0 : index
      %186 = vector.load %arg10[%c0_111, %c0_112, %c0_113] : memref<4x8x32xf32, #tpu.memory_space<vmem>>, vector<4x8x32xf32>
      tpu.vector_store %arg10[%c0_111, %c0_112, %c0_113], %185 {strides = array<i32>} : memref<4x8x32xf32, #tpu.memory_space<vmem>>, vector<4x8x32xf32>,
    } else {
    }
    %c0 = arith.constant 0 : index
    %c0_1 = arith.constant 0 : index
    %c0_2 = arith.constant 0 : index
    %3 = vector.load %arg3[%c0, %c0_1, %c0_2] : memref<1x8x128xf32, #tpu.memory_space<vmem>>, vector<1x8x128xf32>
    %4 = vector.shape_cast %3 : vector<1x8x128xf32> to vector<8x128xf32>
    %5 = arith.truncf %4 : vector<8x128xf32> to vector<8x128xbf16>
    %c0_3 = arith.constant 0 : index
    %c0_4 = arith.constant 0 : index
    %c0_5 = arith.constant 0 : index
    %6 = vector.load %arg4[%c0_3, %c0_4, %c0_5] : memref<1x8x128xf32, #tpu.memory_space<vmem>>, vector<1x8x128xf32>
    %7 = vector.shape_cast %6 : vector<1x8x128xf32> to vector<8x128xf32>
    %8 = arith.truncf %7 : vector<8x128xf32> to vector<8x128xbf16>
    %c0_6 = arith.constant 0 : index
    %c0_7 = arith.constant 0 : index
    %c0_8 = arith.constant 0 : index
    %9 = vector.load %arg5[%c0_6, %c0_7, %c0_8] : memref<1x8x128xf32, #tpu.memory_space<vmem>>, vector<1x8x128xf32>
    %10 = vector.shape_cast %9 : vector<1x8x128xf32> to vector<8x128xf32>
    %11 = arith.truncf %10 : vector<8x128xf32> to vector<8x128xbf16>
    %c0_9 = arith.constant 0 : index
    %c0_10 = arith.constant 0 : index
    %c0_11 = arith.constant 0 : index
    %12 = vector.load %arg6[%c0_9, %c0_10, %c0_11] : memref<1x1x8xf32, #tpu.memory_space<vmem>>, vector<1x1x8xf32>
    %13 = vector.shape_cast %12 : vector<1x1x8xf32> to vector<1x8xf32>
    %14 = vector.extract_strided_slice %5 {offsets = [0, 0], sizes = [8, 32], strides = [1, 1]} : vector<8x128xbf16> to vector<8x32xbf16>
    %15 = vector.extract_strided_slice %8 {offsets = [0, 0], sizes = [8, 32], strides = [1, 1]} : vector<8x128xbf16> to vector<8x32xbf16>
    %16 = vector.extract_strided_slice %11 {offsets = [0, 0], sizes = [8, 32], strides = [1, 1]} : vector<8x128xbf16> to vector<8x32xbf16>
    %17 = tpu.transpose %15, [1, 0] : vector<8x32xbf16> -> vector<32x8xbf16>
    %cst = arith.constant dense<0.000000e+00> : vector<8x8xf32>
    %18 = tpu.matmul %14, %17, %cst {dimension_numbers = #tpu.dot_dimension_numbers<[1], [0], [0], [1], [0, 0, 1, 1], [], []>} : vector<8x32xbf16>, vector<32x8xbf16>, vector<8x8xf32> -> vector<8x8xf32>
    %cst_12 = arith.constant 0.176776692 : f32
    %19 = vector.broadcast %cst_12 : f32 to vector<8x8xf32>
    %20 = arith.mulf %18, %19 : vector<8x8xf32>
    %21 = vector.broadcast %13 : vector<1x8xf32> to vector<8x8xf32>
    %22 = arith.addf %20, %21 : vector<8x8xf32>
    %c0_13 = arith.constant 0 : index
    %c0_14 = arith.constant 0 : index
    %c0_15 = arith.constant 0 : index
    %23 = vector.load %arg8[%c0_13, %c0_14, %c0_15] : memref<4x8x1xf32, #tpu.memory_space<vmem>>, vector<1x8x1xf32>
    %24 = vector.shape_cast %23 : vector<1x8x1xf32> to vector<8x1xf32>
    %cst_16 = arith.constant dense<0xFF800000> : vector<8xf32>
    %25 = vector.multi_reduction <maximumf>, %22, %cst_16 [1] : vector<8x8xf32> to vector<8xf32>
    %26 = vector.shape_cast %25 : vector<8xf32> to vector<8x1xf32>
    %27 = arith.maximumf %24, %26 : vector<8x1xf32>
    %28 = arith.subf %24, %27 : vector<8x1xf32>
    %29 = math.exp %28 : vector<8x1xf32>
    %30 = vector.broadcast %27 : vector<8x1xf32> to vector<8x8xf32>
    %31 = arith.subf %22, %30 : vector<8x8xf32>
    %32 = math.exp %31 : vector<8x8xf32>
    %c0_17 = arith.constant 0 : index
    %c0_18 = arith.constant 0 : index
    %c0_19 = arith.constant 0 : index
    %33 = vector.load %arg9[%c0_17, %c0_18, %c0_19] : memref<4x8x1xf32, #tpu.memory_space<vmem>>, vector<1x8x1xf32>
    %34 = vector.shape_cast %33 : vector<1x8x1xf32> to vector<8x1xf32>
    %35 = arith.mulf %29, %34 : vector<8x1xf32>
    %cst_20 = arith.constant dense<0.000000e+00> : vector<8xf32>
    %36 = vector.multi_reduction <add>, %32, %cst_20 [1] : vector<8x8xf32> to vector<8xf32>
    %37 = vector.shape_cast %36 : vector<8xf32> to vector<8x1xf32>
    %38 = arith.addf %35, %37 : vector<8x1xf32>
    %c0_21 = arith.constant 0 : index
    %c0_22 = arith.constant 0 : index
    %c0_23 = arith.constant 0 : index
    %39 = vector.load %arg9[%c0_21, %c0_22, %c0_23] : memref<4x8x1xf32, #tpu.memory_space<vmem>>, vector<1x8x1xf32>
    %40 = vector.shape_cast %39 : vector<1x8x1xf32> to vector<8x1xf32>
    %41 = vector.shape_cast %38 : vector<8x1xf32> to vector<1x8x1xf32>
    tpu.vector_store %arg9[%c0_21, %c0_22, %c0_23], %41 {strides = array<i32>} : memref<4x8x1xf32, #tpu.memory_space<vmem>>, vector<1x8x1xf32>,
    %c0_24 = arith.constant 0 : index
    %c0_25 = arith.constant 0 : index
    %c0_26 = arith.constant 0 : index
    %42 = vector.load %arg10[%c0_24, %c0_25, %c0_26] : memref<4x8x32xf32, #tpu.memory_space<vmem>>, vector<1x8x32xf32>
    %43 = vector.shape_cast %42 : vector<1x8x32xf32> to vector<8x32xf32>
    %44 = vector.broadcast %29 : vector<8x1xf32> to vector<8x32xf32>
    %45 = arith.mulf %44, %43 : vector<8x32xf32>
    %46 = arith.truncf %32 : vector<8x8xf32> to vector<8x8xbf16>
    %cst_27 = arith.constant dense<0.000000e+00> : vector<8x32xf32>
    %47 = tpu.matmul %46, %16, %cst_27 {dimension_numbers = #tpu.dot_dimension_numbers<[1], [0], [0], [1], [0, 0, 1, 1], [], []>} : vector<8x8xbf16>, vector<8x32xbf16>, vector<8x32xf32> -> vector<8x32xf32>
    %48 = arith.addf %45, %47 : vector<8x32xf32>
    %c0_28 = arith.constant 0 : index
    %c0_29 = arith.constant 0 : index
    %c0_30 = arith.constant 0 : index
    %49 = vector.load %arg10[%c0_28, %c0_29, %c0_30] : memref<4x8x32xf32, #tpu.memory_space<vmem>>, vector<1x8x32xf32>
    %50 = vector.shape_cast %49 : vector<1x8x32xf32> to vector<8x32xf32>
    %51 = vector.shape_cast %48 : vector<8x32xf32> to vector<1x8x32xf32>
    tpu.vector_store %arg10[%c0_28, %c0_29, %c0_30], %51 {strides = array<i32>} : memref<4x8x32xf32, #tpu.memory_space<vmem>>, vector<1x8x32xf32>,
    %c0_31 = arith.constant 0 : index
    %c0_32 = arith.constant 0 : index
    %c0_33 = arith.constant 0 : index
    %52 = vector.load %arg8[%c0_31, %c0_32, %c0_33] : memref<4x8x1xf32, #tpu.memory_space<vmem>>, vector<1x8x1xf32>
    %53 = vector.shape_cast %52 : vector<1x8x1xf32> to vector<8x1xf32>
    %54 = vector.shape_cast %27 : vector<8x1xf32> to vector<1x8x1xf32>
    tpu.vector_store %arg8[%c0_31, %c0_32, %c0_33], %54 {strides = array<i32>} : memref<4x8x1xf32, #tpu.memory_space<vmem>>, vector<1x8x1xf32>,
    %55 = vector.extract_strided_slice %5 {offsets = [0, 32], sizes = [8, 32], strides = [1, 1]} : vector<8x128xbf16> to vector<8x32xbf16>
    %56 = vector.extract_strided_slice %8 {offsets = [0, 32], sizes = [8, 32], strides = [1, 1]} : vector<8x128xbf16> to vector<8x32xbf16>
    %57 = vector.extract_strided_slice %11 {offsets = [0, 32], sizes = [8, 32], strides = [1, 1]} : vector<8x128xbf16> to vector<8x32xbf16>
    %58 = tpu.transpose %56, [1, 0] : vector<8x32xbf16> -> vector<32x8xbf16>
    %cst_34 = arith.constant dense<0.000000e+00> : vector<8x8xf32>
    %59 = tpu.matmul %55, %58, %cst_34 {dimension_numbers = #tpu.dot_dimension_numbers<[1], [0], [0], [1], [0, 0, 1, 1], [], []>} : vector<8x32xbf16>, vector<32x8xbf16>, vector<8x8xf32> -> vector<8x8xf32>
    %cst_35 = arith.constant 0.176776692 : f32
    %60 = vector.broadcast %cst_35 : f32 to vector<8x8xf32>
    %61 = arith.mulf %59, %60 : vector<8x8xf32>
    %62 = vector.broadcast %13 : vector<1x8xf32> to vector<8x8xf32>
    %63 = arith.addf %61, %62 : vector<8x8xf32>
    %c1 = arith.constant 1 : index
    %c0_36 = arith.constant 0 : index
    %c0_37 = arith.constant 0 : index
    %64 = vector.load %arg8[%c1, %c0_36, %c0_37] : memref<4x8x1xf32, #tpu.memory_space<vmem>>, vector<1x8x1xf32>
    %65 = vector.shape_cast %64 : vector<1x8x1xf32> to vector<8x1xf32>
    %cst_38 = arith.constant dense<0xFF800000> : vector<8xf32>
    %66 = vector.multi_reduction <maximumf>, %63, %cst_38 [1] : vector<8x8xf32> to vector<8xf32>
    %67 = vector.shape_cast %66 : vector<8xf32> to vector<8x1xf32>
    %68 = arith.maximumf %65, %67 : vector<8x1xf32>
    %69 = arith.subf %65, %68 : vector<8x1xf32>
    %70 = math.exp %69 : vector<8x1xf32>
    %71 = vector.broadcast %68 : vector<8x1xf32> to vector<8x8xf32>
    %72 = arith.subf %63, %71 : vector<8x8xf32>
    %73 = math.exp %72 : vector<8x8xf32>
    %c1_39 = arith.constant 1 : index
    %c0_40 = arith.constant 0 : index
    %c0_41 = arith.constant 0 : index
    %74 = vector.load %arg9[%c1_39, %c0_40, %c0_41] : memref<4x8x1xf32, #tpu.memory_space<vmem>>, vector<1x8x1xf32>
    %75 = vector.shape_cast %74 : vector<1x8x1xf32> to vector<8x1xf32>
    %76 = arith.mulf %70, %75 : vector<8x1xf32>
    %cst_42 = arith.constant dense<0.000000e+00> : vector<8xf32>
    %77 = vector.multi_reduction <add>, %73, %cst_42 [1] : vector<8x8xf32> to vector<8xf32>
    %78 = vector.shape_cast %77 : vector<8xf32> to vector<8x1xf32>
    %79 = arith.addf %76, %78 : vector<8x1xf32>
    %c1_43 = arith.constant 1 : index
    %c0_44 = arith.constant 0 : index
    %c0_45 = arith.constant 0 : index
    %80 = vector.load %arg9[%c1_43, %c0_44, %c0_45] : memref<4x8x1xf32, #tpu.memory_space<vmem>>, vector<1x8x1xf32>
    %81 = vector.shape_cast %80 : vector<1x8x1xf32> to vector<8x1xf32>
    %82 = vector.shape_cast %79 : vector<8x1xf32> to vector<1x8x1xf32>
    tpu.vector_store %arg9[%c1_43, %c0_44, %c0_45], %82 {strides = array<i32>} : memref<4x8x1xf32, #tpu.memory_space<vmem>>, vector<1x8x1xf32>,
    %c1_46 = arith.constant 1 : index
    %c0_47 = arith.constant 0 : index
    %c0_48 = arith.constant 0 : index
    %83 = vector.load %arg10[%c1_46, %c0_47, %c0_48] : memref<4x8x32xf32, #tpu.memory_space<vmem>>, vector<1x8x32xf32>
    %84 = vector.shape_cast %83 : vector<1x8x32xf32> to vector<8x32xf32>
    %85 = vector.broadcast %70 : vector<8x1xf32> to vector<8x32xf32>
    %86 = arith.mulf %85, %84 : vector<8x32xf32>
    %87 = arith.truncf %73 : vector<8x8xf32> to vector<8x8xbf16>
    %cst_49 = arith.constant dense<0.000000e+00> : vector<8x32xf32>
    %88 = tpu.matmul %87, %57, %cst_49 {dimension_numbers = #tpu.dot_dimension_numbers<[1], [0], [0], [1], [0, 0, 1, 1], [], []>} : vector<8x8xbf16>, vector<8x32xbf16>, vector<8x32xf32> -> vector<8x32xf32>
    %89 = arith.addf %86, %88 : vector<8x32xf32>
    %c1_50 = arith.constant 1 : index
    %c0_51 = arith.constant 0 : index
    %c0_52 = arith.constant 0 : index
    %90 = vector.load %arg10[%c1_50, %c0_51, %c0_52] : memref<4x8x32xf32, #tpu.memory_space<vmem>>, vector<1x8x32xf32>
    %91 = vector.shape_cast %90 : vector<1x8x32xf32> to vector<8x32xf32>
    %92 = vector.shape_cast %89 : vector<8x32xf32> to vector<1x8x32xf32>
    tpu.vector_store %arg10[%c1_50, %c0_51, %c0_52], %92 {strides = array<i32>} : memref<4x8x32xf32, #tpu.memory_space<vmem>>, vector<1x8x32xf32>,
    %c1_53 = arith.constant 1 : index
    %c0_54 = arith.constant 0 : index
    %c0_55 = arith.constant 0 : index
    %93 = vector.load %arg8[%c1_53, %c0_54, %c0_55] : memref<4x8x1xf32, #tpu.memory_space<vmem>>, vector<1x8x1xf32>
    %94 = vector.shape_cast %93 : vector<1x8x1xf32> to vector<8x1xf32>
    %95 = vector.shape_cast %68 : vector<8x1xf32> to vector<1x8x1xf32>
    tpu.vector_store %arg8[%c1_53, %c0_54, %c0_55], %95 {strides = array<i32>} : memref<4x8x1xf32, #tpu.memory_space<vmem>>, vector<1x8x1xf32>,
    %96 = vector.extract_strided_slice %5 {offsets = [0, 64], sizes = [8, 32], strides = [1, 1]} : vector<8x128xbf16> to vector<8x32xbf16>
    %97 = vector.extract_strided_slice %8 {offsets = [0, 64], sizes = [8, 32], strides = [1, 1]} : vector<8x128xbf16> to vector<8x32xbf16>
    %98 = vector.extract_strided_slice %11 {offsets = [0, 64], sizes = [8, 32], strides = [1, 1]} : vector<8x128xbf16> to vector<8x32xbf16>
    %99 = tpu.transpose %97, [1, 0] : vector<8x32xbf16> -> vector<32x8xbf16>
    %cst_56 = arith.constant dense<0.000000e+00> : vector<8x8xf32>
    %100 = tpu.matmul %96, %99, %cst_56 {dimension_numbers = #tpu.dot_dimension_numbers<[1], [0], [0], [1], [0, 0, 1, 1], [], []>} : vector<8x32xbf16>, vector<32x8xbf16>, vector<8x8xf32> -> vector<8x8xf32>
    %cst_57 = arith.constant 0.176776692 : f32
    %101 = vector.broadcast %cst_57 : f32 to vector<8x8xf32>
    %102 = arith.mulf %100, %101 : vector<8x8xf32>
    %103 = vector.broadcast %13 : vector<1x8xf32> to vector<8x8xf32>
    %104 = arith.addf %102, %103 : vector<8x8xf32>
    %c2 = arith.constant 2 : index
    %c0_58 = arith.constant 0 : index
    %c0_59 = arith.constant 0 : index
    %105 = vector.load %arg8[%c2, %c0_58, %c0_59] : memref<4x8x1xf32, #tpu.memory_space<vmem>>, vector<1x8x1xf32>
    %106 = vector.shape_cast %105 : vector<1x8x1xf32> to vector<8x1xf32>
    %cst_60 = arith.constant dense<0xFF800000> : vector<8xf32>
    %107 = vector.multi_reduction <maximumf>, %104, %cst_60 [1] : vector<8x8xf32> to vector<8xf32>
    %108 = vector.shape_cast %107 : vector<8xf32> to vector<8x1xf32>
    %109 = arith.maximumf %106, %108 : vector<8x1xf32>
    %110 = arith.subf %106, %109 : vector<8x1xf32>
    %111 = math.exp %110 : vector<8x1xf32>
    %112 = vector.broadcast %109 : vector<8x1xf32> to vector<8x8xf32>
    %113 = arith.subf %104, %112 : vector<8x8xf32>
    %114 = math.exp %113 : vector<8x8xf32>
    %c2_61 = arith.constant 2 : index
    %c0_62 = arith.constant 0 : index
    %c0_63 = arith.constant 0 : index
    %115 = vector.load %arg9[%c2_61, %c0_62, %c0_63] : memref<4x8x1xf32, #tpu.memory_space<vmem>>, vector<1x8x1xf32>
    %116 = vector.shape_cast %115 : vector<1x8x1xf32> to vector<8x1xf32>
    %117 = arith.mulf %111, %116 : vector<8x1xf32>
    %cst_64 = arith.constant dense<0.000000e+00> : vector<8xf32>
    %118 = vector.multi_reduction <add>, %114, %cst_64 [1] : vector<8x8xf32> to vector<8xf32>
    %119 = vector.shape_cast %118 : vector<8xf32> to vector<8x1xf32>
    %120 = arith.addf %117, %119 : vector<8x1xf32>
    %c2_65 = arith.constant 2 : index
    %c0_66 = arith.constant 0 : index
    %c0_67 = arith.constant 0 : index
    %121 = vector.load %arg9[%c2_65, %c0_66, %c0_67] : memref<4x8x1xf32, #tpu.memory_space<vmem>>, vector<1x8x1xf32>
    %122 = vector.shape_cast %121 : vector<1x8x1xf32> to vector<8x1xf32>
    %123 = vector.shape_cast %120 : vector<8x1xf32> to vector<1x8x1xf32>
    tpu.vector_store %arg9[%c2_65, %c0_66, %c0_67], %123 {strides = array<i32>} : memref<4x8x1xf32, #tpu.memory_space<vmem>>, vector<1x8x1xf32>,
    %c2_68 = arith.constant 2 : index
    %c0_69 = arith.constant 0 : index
    %c0_70 = arith.constant 0 : index
    %124 = vector.load %arg10[%c2_68, %c0_69, %c0_70] : memref<4x8x32xf32, #tpu.memory_space<vmem>>, vector<1x8x32xf32>
    %125 = vector.shape_cast %124 : vector<1x8x32xf32> to vector<8x32xf32>
    %126 = vector.broadcast %111 : vector<8x1xf32> to vector<8x32xf32>
    %127 = arith.mulf %126, %125 : vector<8x32xf32>
    %128 = arith.truncf %114 : vector<8x8xf32> to vector<8x8xbf16>
    %cst_71 = arith.constant dense<0.000000e+00> : vector<8x32xf32>
    %129 = tpu.matmul %128, %98, %cst_71 {dimension_numbers = #tpu.dot_dimension_numbers<[1], [0], [0], [1], [0, 0, 1, 1], [], []>} : vector<8x8xbf16>, vector<8x32xbf16>, vector<8x32xf32> -> vector<8x32xf32>
    %130 = arith.addf %127, %129 : vector<8x32xf32>
    %c2_72 = arith.constant 2 : index
    %c0_73 = arith.constant 0 : index
    %c0_74 = arith.constant 0 : index
    %131 = vector.load %arg10[%c2_72, %c0_73, %c0_74] : memref<4x8x32xf32, #tpu.memory_space<vmem>>, vector<1x8x32xf32>
    %132 = vector.shape_cast %131 : vector<1x8x32xf32> to vector<8x32xf32>
    %133 = vector.shape_cast %130 : vector<8x32xf32> to vector<1x8x32xf32>
    tpu.vector_store %arg10[%c2_72, %c0_73, %c0_74], %133 {strides = array<i32>} : memref<4x8x32xf32, #tpu.memory_space<vmem>>, vector<1x8x32xf32>,
    %c2_75 = arith.constant 2 : index
    %c0_76 = arith.constant 0 : index
    %c0_77 = arith.constant 0 : index
    %134 = vector.load %arg8[%c2_75, %c0_76, %c0_77] : memref<4x8x1xf32, #tpu.memory_space<vmem>>, vector<1x8x1xf32>
    %135 = vector.shape_cast %134 : vector<1x8x1xf32> to vector<8x1xf32>
    %136 = vector.shape_cast %109 : vector<8x1xf32> to vector<1x8x1xf32>
    tpu.vector_store %arg8[%c2_75, %c0_76, %c0_77], %136 {strides = array<i32>} : memref<4x8x1xf32, #tpu.memory_space<vmem>>, vector<1x8x1xf32>,
    %137 = vector.extract_strided_slice %5 {offsets = [0, 96], sizes = [8, 32], strides = [1, 1]} : vector<8x128xbf16> to vector<8x32xbf16>
    %138 = vector.extract_strided_slice %8 {offsets = [0, 96], sizes = [8, 32], strides = [1, 1]} : vector<8x128xbf16> to vector<8x32xbf16>
    %139 = vector.extract_strided_slice %11 {offsets = [0, 96], sizes = [8, 32], strides = [1, 1]} : vector<8x128xbf16> to vector<8x32xbf16>
    %140 = tpu.transpose %138, [1, 0] : vector<8x32xbf16> -> vector<32x8xbf16>
    %cst_78 = arith.constant dense<0.000000e+00> : vector<8x8xf32>
    %141 = tpu.matmul %137, %140, %cst_78 {dimension_numbers = #tpu.dot_dimension_numbers<[1], [0], [0], [1], [0, 0, 1, 1], [], []>} : vector<8x32xbf16>, vector<32x8xbf16>, vector<8x8xf32> -> vector<8x8xf32>
    %cst_79 = arith.constant 0.176776692 : f32
    %142 = vector.broadcast %cst_79 : f32 to vector<8x8xf32>
    %143 = arith.mulf %141, %142 : vector<8x8xf32>
    %144 = vector.broadcast %13 : vector<1x8xf32> to vector<8x8xf32>
    %145 = arith.addf %143, %144 : vector<8x8xf32>
    %c3 = arith.constant 3 : index
    %c0_80 = arith.constant 0 : index
    %c0_81 = arith.constant 0 : index
    %146 = vector.load %arg8[%c3, %c0_80, %c0_81] : memref<4x8x1xf32, #tpu.memory_space<vmem>>, vector<1x8x1xf32>
    %147 = vector.shape_cast %146 : vector<1x8x1xf32> to vector<8x1xf32>
    %cst_82 = arith.constant dense<0xFF800000> : vector<8xf32>
    %148 = vector.multi_reduction <maximumf>, %145, %cst_82 [1] : vector<8x8xf32> to vector<8xf32>
    %149 = vector.shape_cast %148 : vector<8xf32> to vector<8x1xf32>
    %150 = arith.maximumf %147, %149 : vector<8x1xf32>
    %151 = arith.subf %147, %150 : vector<8x1xf32>
    %152 = math.exp %151 : vector<8x1xf32>
    %153 = vector.broadcast %150 : vector<8x1xf32> to vector<8x8xf32>
    %154 = arith.subf %145, %153 : vector<8x8xf32>
    %155 = math.exp %154 : vector<8x8xf32>
    %c3_83 = arith.constant 3 : index
    %c0_84 = arith.constant 0 : index
    %c0_85 = arith.constant 0 : index
    %156 = vector.load %arg9[%c3_83, %c0_84, %c0_85] : memref<4x8x1xf32, #tpu.memory_space<vmem>>, vector<1x8x1xf32>
    %157 = vector.shape_cast %156 : vector<1x8x1xf32> to vector<8x1xf32>
    %158 = arith.mulf %152, %157 : vector<8x1xf32>
    %cst_86 = arith.constant dense<0.000000e+00> : vector<8xf32>
    %159 = vector.multi_reduction <add>, %155, %cst_86 [1] : vector<8x8xf32> to vector<8xf32>
    %160 = vector.shape_cast %159 : vector<8xf32> to vector<8x1xf32>
    %161 = arith.addf %158, %160 : vector<8x1xf32>
    %c3_87 = arith.constant 3 : index
    %c0_88 = arith.constant 0 : index
    %c0_89 = arith.constant 0 : index
    %162 = vector.load %arg9[%c3_87, %c0_88, %c0_89] : memref<4x8x1xf32, #tpu.memory_space<vmem>>, vector<1x8x1xf32>
    %163 = vector.shape_cast %162 : vector<1x8x1xf32> to vector<8x1xf32>
    %164 = vector.shape_cast %161 : vector<8x1xf32> to vector<1x8x1xf32>
    tpu.vector_store %arg9[%c3_87, %c0_88, %c0_89], %164 {strides = array<i32>} : memref<4x8x1xf32, #tpu.memory_space<vmem>>, vector<1x8x1xf32>,
    %c3_90 = arith.constant 3 : index
    %c0_91 = arith.constant 0 : index
    %c0_92 = arith.constant 0 : index
    %165 = vector.load %arg10[%c3_90, %c0_91, %c0_92] : memref<4x8x32xf32, #tpu.memory_space<vmem>>, vector<1x8x32xf32>
    %166 = vector.shape_cast %165 : vector<1x8x32xf32> to vector<8x32xf32>
    %167 = vector.broadcast %152 : vector<8x1xf32> to vector<8x32xf32>
    %168 = arith.mulf %167, %166 : vector<8x32xf32>
    %169 = arith.truncf %155 : vector<8x8xf32> to vector<8x8xbf16>
    %cst_93 = arith.constant dense<0.000000e+00> : vector<8x32xf32>
    %170 = tpu.matmul %169, %139, %cst_93 {dimension_numbers = #tpu.dot_dimension_numbers<[1], [0], [0], [1], [0, 0, 1, 1], [], []>} : vector<8x8xbf16>, vector<8x32xbf16>, vector<8x32xf32> -> vector<8x32xf32>
    %171 = arith.addf %168, %170 : vector<8x32xf32>
    %c3_94 = arith.constant 3 : index
    %c0_95 = arith.constant 0 : index
    %c0_96 = arith.constant 0 : index
    %172 = vector.load %arg10[%c3_94, %c0_95, %c0_96] : memref<4x8x32xf32, #tpu.memory_space<vmem>>, vector<1x8x32xf32>
    %173 = vector.shape_cast %172 : vector<1x8x32xf32> to vector<8x32xf32>
    %174 = vector.shape_cast %171 : vector<8x32xf32> to vector<1x8x32xf32>
    tpu.vector_store %arg10[%c3_94, %c0_95, %c0_96], %174 {strides = array<i32>} : memref<4x8x32xf32, #tpu.memory_space<vmem>>, vector<1x8x32xf32>,
    %c3_97 = arith.constant 3 : index
    %c0_98 = arith.constant 0 : index
    %c0_99 = arith.constant 0 : index
    %175 = vector.load %arg8[%c3_97, %c0_98, %c0_99] : memref<4x8x1xf32, #tpu.memory_space<vmem>>, vector<1x8x1xf32>
    %176 = vector.shape_cast %175 : vector<1x8x1xf32> to vector<8x1xf32>
    %177 = vector.shape_cast %150 : vector<8x1xf32> to vector<1x8x1xf32>
    tpu.vector_store %arg8[%c3_97, %c0_98, %c0_99], %177 {strides = array<i32>} : memref<4x8x1xf32, #tpu.memory_space<vmem>>, vector<1x8x1xf32>,
    %c0_i32_100 = arith.constant 0 : i32
    %178 = arith.cmpi eq, %arg2, %c0_i32_100 : i32
    %179 = arith.extui %178 : i1 to i32
    %c0_i32_101 = arith.constant 0 : i32
    %180 = arith.cmpi ne, %179, %c0_i32_101 : i32
    scf.if %180 {
      %c0_102 = arith.constant 0 : index
      %c0_103 = arith.constant 0 : index
      %c0_104 = arith.constant 0 : index
      %181 = vector.load %arg10[%c0_102, %c0_103, %c0_104] : memref<4x8x32xf32, #tpu.memory_space<vmem>>, vector<1x8x32xf32>
      %182 = vector.shape_cast %181 : vector<1x8x32xf32> to vector<8x32xf32>
      %c0_105 = arith.constant 0 : index
      %c0_106 = arith.constant 0 : index
      %c0_107 = arith.constant 0 : index
      %183 = vector.load %arg9[%c0_105, %c0_106, %c0_107] : memref<4x8x1xf32, #tpu.memory_space<vmem>>, vector<1x8x1xf32>
      %184 = vector.shape_cast %183 : vector<1x8x1xf32> to vector<8x1xf32>
      %185 = tpu.reciprocal %184 {approx = true} : vector<8x1xf32> -> vector<8x1xf32>
      %186 = vector.broadcast %185 : vector<8x1xf32> to vector<8x32xf32>
      %187 = arith.mulf %182, %186 : vector<8x32xf32>
      %c1_108 = arith.constant 1 : index
      %c0_109 = arith.constant 0 : index
      %c0_110 = arith.constant 0 : index
      %188 = vector.load %arg10[%c1_108, %c0_109, %c0_110] : memref<4x8x32xf32, #tpu.memory_space<vmem>>, vector<1x8x32xf32>
      %189 = vector.shape_cast %188 : vector<1x8x32xf32> to vector<8x32xf32>
      %c1_111 = arith.constant 1 : index
      %c0_112 = arith.constant 0 : index
      %c0_113 = arith.constant 0 : index
      %190 = vector.load %arg9[%c1_111, %c0_112, %c0_113] : memref<4x8x1xf32, #tpu.memory_space<vmem>>, vector<1x8x1xf32>
      %191 = vector.shape_cast %190 : vector<1x8x1xf32> to vector<8x1xf32>
      %192 = tpu.reciprocal %191 {approx = true} : vector<8x1xf32> -> vector<8x1xf32>
      %193 = vector.broadcast %192 : vector<8x1xf32> to vector<8x32xf32>
      %194 = arith.mulf %189, %193 : vector<8x32xf32>
      %c2_114 = arith.constant 2 : index
      %c0_115 = arith.constant 0 : index
      %c0_116 = arith.constant 0 : index
      %195 = vector.load %arg10[%c2_114, %c0_115, %c0_116] : memref<4x8x32xf32, #tpu.memory_space<vmem>>, vector<1x8x32xf32>
      %196 = vector.shape_cast %195 : vector<1x8x32xf32> to vector<8x32xf32>
      %c2_117 = arith.constant 2 : index
      %c0_118 = arith.constant 0 : index
      %c0_119 = arith.constant 0 : index
      %197 = vector.load %arg9[%c2_117, %c0_118, %c0_119] : memref<4x8x1xf32, #tpu.memory_space<vmem>>, vector<1x8x1xf32>
      %198 = vector.shape_cast %197 : vector<1x8x1xf32> to vector<8x1xf32>
      %199 = tpu.reciprocal %198 {approx = true} : vector<8x1xf32> -> vector<8x1xf32>
      %200 = vector.broadcast %199 : vector<8x1xf32> to vector<8x32xf32>
      %201 = arith.mulf %196, %200 : vector<8x32xf32>
      %c3_120 = arith.constant 3 : index
      %c0_121 = arith.constant 0 : index
      %c0_122 = arith.constant 0 : index
      %202 = vector.load %arg10[%c3_120, %c0_121, %c0_122] : memref<4x8x32xf32, #tpu.memory_space<vmem>>, vector<1x8x32xf32>
      %203 = vector.shape_cast %202 : vector<1x8x32xf32> to vector<8x32xf32>
      %c3_123 = arith.constant 3 : index
      %c0_124 = arith.constant 0 : index
      %c0_125 = arith.constant 0 : index
      %204 = vector.load %arg9[%c3_123, %c0_124, %c0_125] : memref<4x8x1xf32, #tpu.memory_space<vmem>>, vector<1x8x1xf32>
      %205 = vector.shape_cast %204 : vector<1x8x1xf32> to vector<8x1xf32>
      %206 = tpu.reciprocal %205 {approx = true} : vector<8x1xf32> -> vector<8x1xf32>
      %207 = vector.broadcast %206 : vector<8x1xf32> to vector<8x32xf32>
      %208 = arith.mulf %203, %207 : vector<8x32xf32>
      %209 = tpu.concatenate %187, %194, %201, %208 in 1 : vector<8x32xf32>, vector<8x32xf32>, vector<8x32xf32>, vector<8x32xf32> -> vector<8x128xf32>
      %c0_126 = arith.constant 0 : index
      %c0_127 = arith.constant 0 : index
      %c0_128 = arith.constant 0 : index
      %210 = vector.load %arg7[%c0_126, %c0_127, %c0_128] : memref<1x8x128xf32, #tpu.memory_space<vmem>>, vector<1x8x128xf32>
      %211 = vector.shape_cast %210 : vector<1x8x128xf32> to vector<8x128xf32>
      %212 = vector.shape_cast %209 : vector<8x128xf32> to vector<1x8x128xf32>
      tpu.vector_store %arg7[%c0_126, %c0_127, %c0_128], %212 {strides = array<i32>} : memref<1x8x128xf32, #tpu.memory_space<vmem>>, vector<1x8x128xf32>,
    } else {
    }
    return
  }
  func.func @transform_0(%arg0: i32, %arg1: i32, %arg2: i32) -> (i32, i32, i32) {
    %c0_i32 = arith.constant 0 : i32
    %c0_i32_0 = arith.constant 0 : i32
    return %arg0, %arg1, %c0_i32 : i32, i32, i32
  }
  func.func @transform_1(%arg0: i32, %arg1: i32, %arg2: i32) -> (i32, i32, i32) {
    %c1_i32 = arith.constant 1 : i32
    %c0_i32 = arith.constant 0 : i32
    return %arg0, %arg2, %c1_i32 : i32, i32, i32
  }
  func.func @transform_2(%arg0: i32, %arg1: i32, %arg2: i32) -> (i32, i32, i32) {
    %c2_i32 = arith.constant 2 : i32
    %c0_i32 = arith.constant 0 : i32
    return %arg0, %arg2, %c2_i32 : i32, i32, i32
  }
  func.func @transform_3(%arg0: i32, %arg1: i32, %arg2: i32) -> (i32, i32, i32) {
    %c0_i32 = arith.constant 0 : i32
    %c0_i32_0 = arith.constant 0 : i32
    return %arg0, %c0_i32, %arg2 : i32, i32, i32
  }
  func.func @transform_4(%arg0: i32, %arg1: i32, %arg2: i32) -> (i32, i32, i32) {
    %c0_i32 = arith.constant 0 : i32
    %c0_i32_0 = arith.constant 0 : i32
    return %arg0, %arg1, %c0_i32 : i32, i32, i32
  }
}

module attributes {stable_mosaic.version = 11 : i64} {
  func.func @_linear_res_ln_kernel(%arg0: i32, %arg1: i32, %arg2: memref<16x128xf32, #tpu.memory_space<vmem>>, %arg3: memref<128x128xbf16, #tpu.memory_space<vmem>>, %arg4: memref<1x128xf32, #tpu.memory_space<vmem>>, %arg5: memref<16x128xf32, #tpu.memory_space<vmem>>, %arg6: memref<1x128xf32, #tpu.memory_space<vmem>>, %arg7: memref<1x128xf32, #tpu.memory_space<vmem>>, %arg8: memref<16x128xf32, #tpu.memory_space<vmem>>, %arg9: memref<16x128xf32, #tpu.memory_space<vmem>>) attributes {dimension_semantics = [#tpu.dimension_semantics<parallel>, #tpu.dimension_semantics<arbitrary>], iteration_bounds = array<i64: 1, 1>, scalar_prefetch = 0 : i64, scratch_operands = 1 : i64, tpu.core_type = #tpu.core_type<tc>, window_params = [{transform_indices = @transform_0, window_bounds = array<i64: 16, 128>}, {transform_indices = @transform_1, window_bounds = array<i64: 128, 128>}, {pipeline_mode = #tpu.pipeline_mode<synchronous>, transform_indices = @transform_2, window_bounds = array<i64: 1, 128>}, {transform_indices = @transform_3, window_bounds = array<i64: 16, 128>}, {pipeline_mode = #tpu.pipeline_mode<synchronous>, transform_indices = @transform_4, window_bounds = array<i64: 1, 128>}, {pipeline_mode = #tpu.pipeline_mode<synchronous>, transform_indices = @transform_5, window_bounds = array<i64: 1, 128>}, {transform_indices = @transform_6, window_bounds = array<i64: 16, 128>}]} {
    %c0_i32 = arith.constant 0 : i32
    %0 = arith.cmpi eq, %arg1, %c0_i32 : i32
    %1 = arith.extui %0 : i1 to i32
    %c0_i32_0 = arith.constant 0 : i32
    %2 = arith.cmpi ne, %1, %c0_i32_0 : i32
    scf.if %2 {
      %cst_10 = arith.constant 0.000000e+00 : f32
      %13 = vector.broadcast %cst_10 : f32 to vector<16x128xf32>
      %c0_11 = arith.constant 0 : index
      %c0_12 = arith.constant 0 : index
      %14 = vector.load %arg9[%c0_11, %c0_12] : memref<16x128xf32, #tpu.memory_space<vmem>>, vector<16x128xf32>
      tpu.vector_store %arg9[%c0_11, %c0_12], %13 {strides = array<i32>} : memref<16x128xf32, #tpu.memory_space<vmem>>, vector<16x128xf32>,
    } else {
    }
    %c0 = arith.constant 0 : index
    %c0_1 = arith.constant 0 : index
    %3 = vector.load %arg9[%c0, %c0_1] : memref<16x128xf32, #tpu.memory_space<vmem>>, vector<16x128xf32>
    %c0_2 = arith.constant 0 : index
    %c0_3 = arith.constant 0 : index
    %4 = vector.load %arg2[%c0_2, %c0_3] : memref<16x128xf32, #tpu.memory_space<vmem>>, vector<16x128xf32>
    %5 = arith.truncf %4 : vector<16x128xf32> to vector<16x128xbf16>
    %c0_4 = arith.constant 0 : index
    %c0_5 = arith.constant 0 : index
    %6 = vector.load %arg3[%c0_4, %c0_5] : memref<128x128xbf16, #tpu.memory_space<vmem>>, vector<128x128xbf16>
    %cst = arith.constant dense<0.000000e+00> : vector<16x128xf32>
    %7 = tpu.matmul %5, %6, %cst {dimension_numbers = #tpu.dot_dimension_numbers<[1], [0], [0], [1], [0, 0, 1, 1], [], []>} : vector<16x128xbf16>, vector<128x128xbf16>, vector<16x128xf32> -> vector<16x128xf32>
    %8 = arith.addf %3, %7 : vector<16x128xf32>
    %c0_6 = arith.constant 0 : index
    %c0_7 = arith.constant 0 : index
    %9 = vector.load %arg9[%c0_6, %c0_7] : memref<16x128xf32, #tpu.memory_space<vmem>>, vector<16x128xf32>
    tpu.vector_store %arg9[%c0_6, %c0_7], %8 {strides = array<i32>} : memref<16x128xf32, #tpu.memory_space<vmem>>, vector<16x128xf32>,
    %c0_i32_8 = arith.constant 0 : i32
    %10 = arith.cmpi eq, %arg1, %c0_i32_8 : i32
    %11 = arith.extui %10 : i1 to i32
    %c0_i32_9 = arith.constant 0 : i32
    %12 = arith.cmpi ne, %11, %c0_i32_9 : i32
    scf.if %12 {
      %c0_10 = arith.constant 0 : index
      %c0_11 = arith.constant 0 : index
      %13 = vector.load %arg5[%c0_10, %c0_11] : memref<16x128xf32, #tpu.memory_space<vmem>>, vector<16x128xf32>
      %cst_12 = arith.constant 1.41421354 : f32
      %14 = vector.broadcast %cst_12 : f32 to vector<16x128xf32>
      %15 = arith.mulf %13, %14 : vector<16x128xf32>
      %c0_13 = arith.constant 0 : index
      %c0_14 = arith.constant 0 : index
      %16 = vector.load %arg9[%c0_13, %c0_14] : memref<16x128xf32, #tpu.memory_space<vmem>>, vector<16x128xf32>
      %17 = arith.addf %15, %16 : vector<16x128xf32>
      %c0_15 = arith.constant 0 : index
      %c0_16 = arith.constant 0 : index
      %18 = vector.load %arg4[%c0_15, %c0_16] : memref<1x128xf32, #tpu.memory_space<vmem>>, vector<1x128xf32>
      %19 = vector.broadcast %18 : vector<1x128xf32> to vector<16x128xf32>
      %20 = arith.addf %17, %19 : vector<16x128xf32>
      %cst_17 = arith.constant dense<0.000000e+00> : vector<16xf32>
      %21 = vector.multi_reduction <add>, %20, %cst_17 [1] : vector<16x128xf32> to vector<16xf32>
      %22 = vector.shape_cast %21 : vector<16xf32> to vector<16x1xf32>
      %cst_18 = arith.constant 1.280000e+02 : f32
      %23 = vector.broadcast %cst_18 : f32 to vector<16x1xf32>
      %24 = arith.divf %22, %23 : vector<16x1xf32>
      %25 = vector.broadcast %24 : vector<16x1xf32> to vector<16x128xf32>
      %26 = arith.subf %20, %25 : vector<16x128xf32>
      %27 = arith.mulf %26, %26 : vector<16x128xf32>
      %cst_19 = arith.constant dense<0.000000e+00> : vector<16xf32>
      %28 = vector.multi_reduction <add>, %27, %cst_19 [1] : vector<16x128xf32> to vector<16xf32>
      %29 = vector.shape_cast %28 : vector<16xf32> to vector<16x1xf32>
      %cst_20 = arith.constant 1.280000e+02 : f32
      %30 = vector.broadcast %cst_20 : f32 to vector<16x1xf32>
      %31 = arith.divf %29, %30 : vector<16x1xf32>
      %32 = vector.broadcast %24 : vector<16x1xf32> to vector<16x128xf32>
      %33 = arith.subf %20, %32 : vector<16x128xf32>
      %cst_21 = arith.constant 9.99999974E-6 : f32
      %34 = vector.broadcast %cst_21 : f32 to vector<16x1xf32>
      %35 = arith.addf %31, %34 : vector<16x1xf32>
      %36 = math.rsqrt %35 : vector<16x1xf32>
      %37 = vector.broadcast %36 : vector<16x1xf32> to vector<16x128xf32>
      %38 = arith.mulf %33, %37 : vector<16x128xf32>
      %c0_22 = arith.constant 0 : index
      %c0_23 = arith.constant 0 : index
      %39 = vector.load %arg6[%c0_22, %c0_23] : memref<1x128xf32, #tpu.memory_space<vmem>>, vector<1x128xf32>
      %40 = vector.broadcast %39 : vector<1x128xf32> to vector<16x128xf32>
      %41 = arith.mulf %38, %40 : vector<16x128xf32>
      %c0_24 = arith.constant 0 : index
      %c0_25 = arith.constant 0 : index
      %42 = vector.load %arg7[%c0_24, %c0_25] : memref<1x128xf32, #tpu.memory_space<vmem>>, vector<1x128xf32>
      %43 = vector.broadcast %42 : vector<1x128xf32> to vector<16x128xf32>
      %44 = arith.addf %41, %43 : vector<16x128xf32>
      %c0_26 = arith.constant 0 : index
      %c0_27 = arith.constant 0 : index
      %45 = vector.load %arg8[%c0_26, %c0_27] : memref<16x128xf32, #tpu.memory_space<vmem>>, vector<16x128xf32>
      tpu.vector_store %arg8[%c0_26, %c0_27], %44 {strides = array<i32>} : memref<16x128xf32, #tpu.memory_space<vmem>>, vector<16x128xf32>,
    } else {
    }
    return
  }
  func.func @transform_0(%arg0: i32, %arg1: i32) -> (i32, i32) {
    %c0_i32 = arith.constant 0 : i32
    return %arg0, %arg1 : i32, i32
  }
  func.func @transform_1(%arg0: i32, %arg1: i32) -> (i32, i32) {
    %c0_i32 = arith.constant 0 : i32
    %c0_i32_0 = arith.constant 0 : i32
    return %arg1, %c0_i32 : i32, i32
  }
  func.func @transform_2(%arg0: i32, %arg1: i32) -> (i32, i32) {
    %c0_i32 = arith.constant 0 : i32
    %c0_i32_0 = arith.constant 0 : i32
    %c0_i32_1 = arith.constant 0 : i32
    return %c0_i32, %c0_i32_0 : i32, i32
  }
  func.func @transform_3(%arg0: i32, %arg1: i32) -> (i32, i32) {
    %c0_i32 = arith.constant 0 : i32
    %c0_i32_0 = arith.constant 0 : i32
    return %arg0, %c0_i32 : i32, i32
  }
  func.func @transform_4(%arg0: i32, %arg1: i32) -> (i32, i32) {
    %c0_i32 = arith.constant 0 : i32
    %c0_i32_0 = arith.constant 0 : i32
    %c0_i32_1 = arith.constant 0 : i32
    return %c0_i32, %c0_i32_0 : i32, i32
  }
  func.func @transform_5(%arg0: i32, %arg1: i32) -> (i32, i32) {
    %c0_i32 = arith.constant 0 : i32
    %c0_i32_0 = arith.constant 0 : i32
    %c0_i32_1 = arith.constant 0 : i32
    return %c0_i32, %c0_i32_0 : i32, i32
  }
  func.func @transform_6(%arg0: i32, %arg1: i32) -> (i32, i32) {
    %c0_i32 = arith.constant 0 : i32
    %c0_i32_0 = arith.constant 0 : i32
    return %arg0, %c0_i32 : i32, i32
  }
}

module attributes {stable_mosaic.version = 11 : i64} {
  func.func @_linear_res_ln_kernel(%arg0: i32, %arg1: i32, %arg2: memref<16x256xf32, #tpu.memory_space<vmem>>, %arg3: memref<256x128xbf16, #tpu.memory_space<vmem>>, %arg4: memref<1x128xf32, #tpu.memory_space<vmem>>, %arg5: memref<16x128xf32, #tpu.memory_space<vmem>>, %arg6: memref<1x128xf32, #tpu.memory_space<vmem>>, %arg7: memref<1x128xf32, #tpu.memory_space<vmem>>, %arg8: memref<16x128xf32, #tpu.memory_space<vmem>>, %arg9: memref<16x128xf32, #tpu.memory_space<vmem>>) attributes {dimension_semantics = [#tpu.dimension_semantics<parallel>, #tpu.dimension_semantics<arbitrary>], iteration_bounds = array<i64: 1, 1>, scalar_prefetch = 0 : i64, scratch_operands = 1 : i64, tpu.core_type = #tpu.core_type<tc>, window_params = [{transform_indices = @transform_0, window_bounds = array<i64: 16, 256>}, {transform_indices = @transform_1, window_bounds = array<i64: 256, 128>}, {pipeline_mode = #tpu.pipeline_mode<synchronous>, transform_indices = @transform_2, window_bounds = array<i64: 1, 128>}, {transform_indices = @transform_3, window_bounds = array<i64: 16, 128>}, {pipeline_mode = #tpu.pipeline_mode<synchronous>, transform_indices = @transform_4, window_bounds = array<i64: 1, 128>}, {pipeline_mode = #tpu.pipeline_mode<synchronous>, transform_indices = @transform_5, window_bounds = array<i64: 1, 128>}, {transform_indices = @transform_6, window_bounds = array<i64: 16, 128>}]} {
    %c0_i32 = arith.constant 0 : i32
    %0 = arith.cmpi eq, %arg1, %c0_i32 : i32
    %1 = arith.extui %0 : i1 to i32
    %c0_i32_0 = arith.constant 0 : i32
    %2 = arith.cmpi ne, %1, %c0_i32_0 : i32
    scf.if %2 {
      %cst_10 = arith.constant 0.000000e+00 : f32
      %13 = vector.broadcast %cst_10 : f32 to vector<16x128xf32>
      %c0_11 = arith.constant 0 : index
      %c0_12 = arith.constant 0 : index
      %14 = vector.load %arg9[%c0_11, %c0_12] : memref<16x128xf32, #tpu.memory_space<vmem>>, vector<16x128xf32>
      tpu.vector_store %arg9[%c0_11, %c0_12], %13 {strides = array<i32>} : memref<16x128xf32, #tpu.memory_space<vmem>>, vector<16x128xf32>,
    } else {
    }
    %c0 = arith.constant 0 : index
    %c0_1 = arith.constant 0 : index
    %3 = vector.load %arg9[%c0, %c0_1] : memref<16x128xf32, #tpu.memory_space<vmem>>, vector<16x128xf32>
    %c0_2 = arith.constant 0 : index
    %c0_3 = arith.constant 0 : index
    %4 = vector.load %arg2[%c0_2, %c0_3] : memref<16x256xf32, #tpu.memory_space<vmem>>, vector<16x256xf32>
    %5 = arith.truncf %4 : vector<16x256xf32> to vector<16x256xbf16>
    %c0_4 = arith.constant 0 : index
    %c0_5 = arith.constant 0 : index
    %6 = vector.load %arg3[%c0_4, %c0_5] : memref<256x128xbf16, #tpu.memory_space<vmem>>, vector<256x128xbf16>
    %cst = arith.constant dense<0.000000e+00> : vector<16x128xf32>
    %7 = tpu.matmul %5, %6, %cst {dimension_numbers = #tpu.dot_dimension_numbers<[1], [0], [0], [1], [0, 0, 1, 1], [], []>} : vector<16x256xbf16>, vector<256x128xbf16>, vector<16x128xf32> -> vector<16x128xf32>
    %8 = arith.addf %3, %7 : vector<16x128xf32>
    %c0_6 = arith.constant 0 : index
    %c0_7 = arith.constant 0 : index
    %9 = vector.load %arg9[%c0_6, %c0_7] : memref<16x128xf32, #tpu.memory_space<vmem>>, vector<16x128xf32>
    tpu.vector_store %arg9[%c0_6, %c0_7], %8 {strides = array<i32>} : memref<16x128xf32, #tpu.memory_space<vmem>>, vector<16x128xf32>,
    %c0_i32_8 = arith.constant 0 : i32
    %10 = arith.cmpi eq, %arg1, %c0_i32_8 : i32
    %11 = arith.extui %10 : i1 to i32
    %c0_i32_9 = arith.constant 0 : i32
    %12 = arith.cmpi ne, %11, %c0_i32_9 : i32
    scf.if %12 {
      %c0_10 = arith.constant 0 : index
      %c0_11 = arith.constant 0 : index
      %13 = vector.load %arg5[%c0_10, %c0_11] : memref<16x128xf32, #tpu.memory_space<vmem>>, vector<16x128xf32>
      %cst_12 = arith.constant 1.41421354 : f32
      %14 = vector.broadcast %cst_12 : f32 to vector<16x128xf32>
      %15 = arith.mulf %13, %14 : vector<16x128xf32>
      %c0_13 = arith.constant 0 : index
      %c0_14 = arith.constant 0 : index
      %16 = vector.load %arg9[%c0_13, %c0_14] : memref<16x128xf32, #tpu.memory_space<vmem>>, vector<16x128xf32>
      %17 = arith.addf %15, %16 : vector<16x128xf32>
      %c0_15 = arith.constant 0 : index
      %c0_16 = arith.constant 0 : index
      %18 = vector.load %arg4[%c0_15, %c0_16] : memref<1x128xf32, #tpu.memory_space<vmem>>, vector<1x128xf32>
      %19 = vector.broadcast %18 : vector<1x128xf32> to vector<16x128xf32>
      %20 = arith.addf %17, %19 : vector<16x128xf32>
      %cst_17 = arith.constant dense<0.000000e+00> : vector<16xf32>
      %21 = vector.multi_reduction <add>, %20, %cst_17 [1] : vector<16x128xf32> to vector<16xf32>
      %22 = vector.shape_cast %21 : vector<16xf32> to vector<16x1xf32>
      %cst_18 = arith.constant 1.280000e+02 : f32
      %23 = vector.broadcast %cst_18 : f32 to vector<16x1xf32>
      %24 = arith.divf %22, %23 : vector<16x1xf32>
      %25 = vector.broadcast %24 : vector<16x1xf32> to vector<16x128xf32>
      %26 = arith.subf %20, %25 : vector<16x128xf32>
      %27 = arith.mulf %26, %26 : vector<16x128xf32>
      %cst_19 = arith.constant dense<0.000000e+00> : vector<16xf32>
      %28 = vector.multi_reduction <add>, %27, %cst_19 [1] : vector<16x128xf32> to vector<16xf32>
      %29 = vector.shape_cast %28 : vector<16xf32> to vector<16x1xf32>
      %cst_20 = arith.constant 1.280000e+02 : f32
      %30 = vector.broadcast %cst_20 : f32 to vector<16x1xf32>
      %31 = arith.divf %29, %30 : vector<16x1xf32>
      %32 = vector.broadcast %24 : vector<16x1xf32> to vector<16x128xf32>
      %33 = arith.subf %20, %32 : vector<16x128xf32>
      %cst_21 = arith.constant 9.99999974E-6 : f32
      %34 = vector.broadcast %cst_21 : f32 to vector<16x1xf32>
      %35 = arith.addf %31, %34 : vector<16x1xf32>
      %36 = math.rsqrt %35 : vector<16x1xf32>
      %37 = vector.broadcast %36 : vector<16x1xf32> to vector<16x128xf32>
      %38 = arith.mulf %33, %37 : vector<16x128xf32>
      %c0_22 = arith.constant 0 : index
      %c0_23 = arith.constant 0 : index
      %39 = vector.load %arg6[%c0_22, %c0_23] : memref<1x128xf32, #tpu.memory_space<vmem>>, vector<1x128xf32>
      %40 = vector.broadcast %39 : vector<1x128xf32> to vector<16x128xf32>
      %41 = arith.mulf %38, %40 : vector<16x128xf32>
      %c0_24 = arith.constant 0 : index
      %c0_25 = arith.constant 0 : index
      %42 = vector.load %arg7[%c0_24, %c0_25] : memref<1x128xf32, #tpu.memory_space<vmem>>, vector<1x128xf32>
      %43 = vector.broadcast %42 : vector<1x128xf32> to vector<16x128xf32>
      %44 = arith.addf %41, %43 : vector<16x128xf32>
      %c0_26 = arith.constant 0 : index
      %c0_27 = arith.constant 0 : index
      %45 = vector.load %arg8[%c0_26, %c0_27] : memref<16x128xf32, #tpu.memory_space<vmem>>, vector<16x128xf32>
      tpu.vector_store %arg8[%c0_26, %c0_27], %44 {strides = array<i32>} : memref<16x128xf32, #tpu.memory_space<vmem>>, vector<16x128xf32>,
    } else {
    }
    return
  }
  func.func @transform_0(%arg0: i32, %arg1: i32) -> (i32, i32) {
    %c0_i32 = arith.constant 0 : i32
    return %arg0, %arg1 : i32, i32
  }
  func.func @transform_1(%arg0: i32, %arg1: i32) -> (i32, i32) {
    %c0_i32 = arith.constant 0 : i32
    %c0_i32_0 = arith.constant 0 : i32
    return %arg1, %c0_i32 : i32, i32
  }
  func.func @transform_2(%arg0: i32, %arg1: i32) -> (i32, i32) {
    %c0_i32 = arith.constant 0 : i32
    %c0_i32_0 = arith.constant 0 : i32
    %c0_i32_1 = arith.constant 0 : i32
    return %c0_i32, %c0_i32_0 : i32, i32
  }
  func.func @transform_3(%arg0: i32, %arg1: i32) -> (i32, i32) {
    %c0_i32 = arith.constant 0 : i32
    %c0_i32_0 = arith.constant 0 : i32
    return %arg0, %c0_i32 : i32, i32
  }
  func.func @transform_4(%arg0: i32, %arg1: i32) -> (i32, i32) {
    %c0_i32 = arith.constant 0 : i32
    %c0_i32_0 = arith.constant 0 : i32
    %c0_i32_1 = arith.constant 0 : i32
    return %c0_i32, %c0_i32_0 : i32, i32
  }
  func.func @transform_5(%arg0: i32, %arg1: i32) -> (i32, i32) {
    %c0_i32 = arith.constant 0 : i32
    %c0_i32_0 = arith.constant 0 : i32
    %c0_i32_1 = arith.constant 0 : i32
    return %c0_i32, %c0_i32_0 : i32, i32
  }
  func.func @transform_6(%arg0: i32, %arg1: i32) -> (i32, i32) {
    %c0_i32 = arith.constant 0 : i32
    %c0_i32_0 = arith.constant 0 : i32
    return %arg0, %c0_i32 : i32, i32
  }
}

module attributes {stable_mosaic.version = 11 : i64} {
  func.func @_linear_kernel(%arg0: i32, %arg1: i32, %arg2: i32, %arg3: memref<16x128xf32, #tpu.memory_space<vmem>>, %arg4: memref<128x256xbf16, #tpu.memory_space<vmem>>, %arg5: memref<1x256xf32, #tpu.memory_space<vmem>>, %arg6: memref<16x256xf32, #tpu.memory_space<vmem>>, %arg7: memref<16x256xf32, #tpu.memory_space<vmem>>) attributes {dimension_semantics = [#tpu.dimension_semantics<parallel>, #tpu.dimension_semantics<parallel>, #tpu.dimension_semantics<arbitrary>], iteration_bounds = array<i64: 1, 1, 1>, scalar_prefetch = 0 : i64, scratch_operands = 1 : i64, tpu.core_type = #tpu.core_type<tc>, window_params = [{transform_indices = @transform_0, window_bounds = array<i64: 16, 128>}, {transform_indices = @transform_1, window_bounds = array<i64: 128, 256>}, {transform_indices = @transform_2, window_bounds = array<i64: 1, 256>}, {transform_indices = @transform_3, window_bounds = array<i64: 16, 256>}]} {
    %c0_i32 = arith.constant 0 : i32
    %0 = arith.cmpi eq, %arg2, %c0_i32 : i32
    %1 = arith.extui %0 : i1 to i32
    %c0_i32_0 = arith.constant 0 : i32
    %2 = arith.cmpi ne, %1, %c0_i32_0 : i32
    scf.if %2 {
      %cst_10 = arith.constant 0.000000e+00 : f32
      %13 = vector.broadcast %cst_10 : f32 to vector<16x256xf32>
      %c0_11 = arith.constant 0 : index
      %c0_12 = arith.constant 0 : index
      %14 = vector.load %arg7[%c0_11, %c0_12] : memref<16x256xf32, #tpu.memory_space<vmem>>, vector<16x256xf32>
      tpu.vector_store %arg7[%c0_11, %c0_12], %13 {strides = array<i32>} : memref<16x256xf32, #tpu.memory_space<vmem>>, vector<16x256xf32>,
    } else {
    }
    %c0 = arith.constant 0 : index
    %c0_1 = arith.constant 0 : index
    %3 = vector.load %arg7[%c0, %c0_1] : memref<16x256xf32, #tpu.memory_space<vmem>>, vector<16x256xf32>
    %c0_2 = arith.constant 0 : index
    %c0_3 = arith.constant 0 : index
    %4 = vector.load %arg3[%c0_2, %c0_3] : memref<16x128xf32, #tpu.memory_space<vmem>>, vector<16x128xf32>
    %5 = arith.truncf %4 : vector<16x128xf32> to vector<16x128xbf16>
    %c0_4 = arith.constant 0 : index
    %c0_5 = arith.constant 0 : index
    %6 = vector.load %arg4[%c0_4, %c0_5] : memref<128x256xbf16, #tpu.memory_space<vmem>>, vector<128x256xbf16>
    %cst = arith.constant dense<0.000000e+00> : vector<16x256xf32>
    %7 = tpu.matmul %5, %6, %cst {dimension_numbers = #tpu.dot_dimension_numbers<[1], [0], [0], [1], [0, 0, 1, 1], [], []>} : vector<16x128xbf16>, vector<128x256xbf16>, vector<16x256xf32> -> vector<16x256xf32>
    %8 = arith.addf %3, %7 : vector<16x256xf32>
    %c0_6 = arith.constant 0 : index
    %c0_7 = arith.constant 0 : index
    %9 = vector.load %arg7[%c0_6, %c0_7] : memref<16x256xf32, #tpu.memory_space<vmem>>, vector<16x256xf32>
    tpu.vector_store %arg7[%c0_6, %c0_7], %8 {strides = array<i32>} : memref<16x256xf32, #tpu.memory_space<vmem>>, vector<16x256xf32>,
    %c0_i32_8 = arith.constant 0 : i32
    %10 = arith.cmpi eq, %arg2, %c0_i32_8 : i32
    %11 = arith.extui %10 : i1 to i32
    %c0_i32_9 = arith.constant 0 : i32
    %12 = arith.cmpi ne, %11, %c0_i32_9 : i32
    scf.if %12 {
      %c0_10 = arith.constant 0 : index
      %c0_11 = arith.constant 0 : index
      %13 = vector.load %arg7[%c0_10, %c0_11] : memref<16x256xf32, #tpu.memory_space<vmem>>, vector<16x256xf32>
      %c0_12 = arith.constant 0 : index
      %c0_13 = arith.constant 0 : index
      %14 = vector.load %arg5[%c0_12, %c0_13] : memref<1x256xf32, #tpu.memory_space<vmem>>, vector<1x256xf32>
      %15 = vector.broadcast %14 : vector<1x256xf32> to vector<16x256xf32>
      %16 = arith.addf %13, %15 : vector<16x256xf32>
      %cst_14 = arith.constant 5.000000e-01 : f32
      %17 = vector.broadcast %cst_14 : f32 to vector<16x256xf32>
      %18 = arith.mulf %17, %16 : vector<16x256xf32>
      %cst_15 = arith.constant 0.707106769 : f32
      %19 = vector.broadcast %cst_15 : f32 to vector<16x256xf32>
      %20 = arith.mulf %16, %19 : vector<16x256xf32>
      %21 = math.erf %20 : vector<16x256xf32>
      %cst_16 = arith.constant 1.000000e+00 : f32
      %22 = vector.broadcast %cst_16 : f32 to vector<16x256xf32>
      %23 = arith.addf %22, %21 : vector<16x256xf32>
      %24 = arith.mulf %18, %23 : vector<16x256xf32>
      %c0_17 = arith.constant 0 : index
      %c0_18 = arith.constant 0 : index
      %25 = vector.load %arg6[%c0_17, %c0_18] : memref<16x256xf32, #tpu.memory_space<vmem>>, vector<16x256xf32>
      tpu.vector_store %arg6[%c0_17, %c0_18], %24 {strides = array<i32>} : memref<16x256xf32, #tpu.memory_space<vmem>>, vector<16x256xf32>,
    } else {
    }
    return
  }
  func.func @transform_0(%arg0: i32, %arg1: i32, %arg2: i32) -> (i32, i32) {
    %c0_i32 = arith.constant 0 : i32
    return %arg0, %arg2 : i32, i32
  }
  func.func @transform_1(%arg0: i32, %arg1: i32, %arg2: i32) -> (i32, i32) {
    %c0_i32 = arith.constant 0 : i32
    return %arg2, %arg1 : i32, i32
  }
  func.func @transform_2(%arg0: i32, %arg1: i32, %arg2: i32) -> (i32, i32) {
    %c0_i32 = arith.constant 0 : i32
    %c0_i32_0 = arith.constant 0 : i32
    return %c0_i32, %arg1 : i32, i32
  }
  func.func @transform_3(%arg0: i32, %arg1: i32, %arg2: i32) -> (i32, i32) {
    %c0_i32 = arith.constant 0 : i32
    return %arg0, %arg1 : i32, i32
  }
}

module attributes {stable_mosaic.version = 11 : i64} {
  func.func @_linear_res_ln_kernel(%arg0: i32, %arg1: i32, %arg2: memref<16x256xf32, #tpu.memory_space<vmem>>, %arg3: memref<256x128xbf16, #tpu.memory_space<vmem>>, %arg4: memref<1x128xf32, #tpu.memory_space<vmem>>, %arg5: memref<16x128xf32, #tpu.memory_space<vmem>>, %arg6: memref<1x128xf32, #tpu.memory_space<vmem>>, %arg7: memref<1x128xf32, #tpu.memory_space<vmem>>, %arg8: memref<16x128xf32, #tpu.memory_space<vmem>>, %arg9: memref<16x128xf32, #tpu.memory_space<vmem>>) attributes {dimension_semantics = [#tpu.dimension_semantics<parallel>, #tpu.dimension_semantics<arbitrary>], iteration_bounds = array<i64: 1, 1>, scalar_prefetch = 0 : i64, scratch_operands = 1 : i64, tpu.core_type = #tpu.core_type<tc>, window_params = [{transform_indices = @transform_0, window_bounds = array<i64: 16, 256>}, {transform_indices = @transform_1, window_bounds = array<i64: 256, 128>}, {pipeline_mode = #tpu.pipeline_mode<synchronous>, transform_indices = @transform_2, window_bounds = array<i64: 1, 128>}, {transform_indices = @transform_3, window_bounds = array<i64: 16, 128>}, {pipeline_mode = #tpu.pipeline_mode<synchronous>, transform_indices = @transform_4, window_bounds = array<i64: 1, 128>}, {pipeline_mode = #tpu.pipeline_mode<synchronous>, transform_indices = @transform_5, window_bounds = array<i64: 1, 128>}, {transform_indices = @transform_6, window_bounds = array<i64: 16, 128>}]} {
    %c0_i32 = arith.constant 0 : i32
    %0 = arith.cmpi eq, %arg1, %c0_i32 : i32
    %1 = arith.extui %0 : i1 to i32
    %c0_i32_0 = arith.constant 0 : i32
    %2 = arith.cmpi ne, %1, %c0_i32_0 : i32
    scf.if %2 {
      %cst_10 = arith.constant 0.000000e+00 : f32
      %13 = vector.broadcast %cst_10 : f32 to vector<16x128xf32>
      %c0_11 = arith.constant 0 : index
      %c0_12 = arith.constant 0 : index
      %14 = vector.load %arg9[%c0_11, %c0_12] : memref<16x128xf32, #tpu.memory_space<vmem>>, vector<16x128xf32>
      tpu.vector_store %arg9[%c0_11, %c0_12], %13 {strides = array<i32>} : memref<16x128xf32, #tpu.memory_space<vmem>>, vector<16x128xf32>,
    } else {
    }
    %c0 = arith.constant 0 : index
    %c0_1 = arith.constant 0 : index
    %3 = vector.load %arg9[%c0, %c0_1] : memref<16x128xf32, #tpu.memory_space<vmem>>, vector<16x128xf32>
    %c0_2 = arith.constant 0 : index
    %c0_3 = arith.constant 0 : index
    %4 = vector.load %arg2[%c0_2, %c0_3] : memref<16x256xf32, #tpu.memory_space<vmem>>, vector<16x256xf32>
    %5 = arith.truncf %4 : vector<16x256xf32> to vector<16x256xbf16>
    %c0_4 = arith.constant 0 : index
    %c0_5 = arith.constant 0 : index
    %6 = vector.load %arg3[%c0_4, %c0_5] : memref<256x128xbf16, #tpu.memory_space<vmem>>, vector<256x128xbf16>
    %cst = arith.constant dense<0.000000e+00> : vector<16x128xf32>
    %7 = tpu.matmul %5, %6, %cst {dimension_numbers = #tpu.dot_dimension_numbers<[1], [0], [0], [1], [0, 0, 1, 1], [], []>} : vector<16x256xbf16>, vector<256x128xbf16>, vector<16x128xf32> -> vector<16x128xf32>
    %8 = arith.addf %3, %7 : vector<16x128xf32>
    %c0_6 = arith.constant 0 : index
    %c0_7 = arith.constant 0 : index
    %9 = vector.load %arg9[%c0_6, %c0_7] : memref<16x128xf32, #tpu.memory_space<vmem>>, vector<16x128xf32>
    tpu.vector_store %arg9[%c0_6, %c0_7], %8 {strides = array<i32>} : memref<16x128xf32, #tpu.memory_space<vmem>>, vector<16x128xf32>,
    %c0_i32_8 = arith.constant 0 : i32
    %10 = arith.cmpi eq, %arg1, %c0_i32_8 : i32
    %11 = arith.extui %10 : i1 to i32
    %c0_i32_9 = arith.constant 0 : i32
    %12 = arith.cmpi ne, %11, %c0_i32_9 : i32
    scf.if %12 {
      %c0_10 = arith.constant 0 : index
      %c0_11 = arith.constant 0 : index
      %13 = vector.load %arg5[%c0_10, %c0_11] : memref<16x128xf32, #tpu.memory_space<vmem>>, vector<16x128xf32>
      %cst_12 = arith.constant 1.41421354 : f32
      %14 = vector.broadcast %cst_12 : f32 to vector<16x128xf32>
      %15 = arith.mulf %13, %14 : vector<16x128xf32>
      %c0_13 = arith.constant 0 : index
      %c0_14 = arith.constant 0 : index
      %16 = vector.load %arg9[%c0_13, %c0_14] : memref<16x128xf32, #tpu.memory_space<vmem>>, vector<16x128xf32>
      %17 = arith.addf %15, %16 : vector<16x128xf32>
      %c0_15 = arith.constant 0 : index
      %c0_16 = arith.constant 0 : index
      %18 = vector.load %arg4[%c0_15, %c0_16] : memref<1x128xf32, #tpu.memory_space<vmem>>, vector<1x128xf32>
      %19 = vector.broadcast %18 : vector<1x128xf32> to vector<16x128xf32>
      %20 = arith.addf %17, %19 : vector<16x128xf32>
      %cst_17 = arith.constant dense<0.000000e+00> : vector<16xf32>
      %21 = vector.multi_reduction <add>, %20, %cst_17 [1] : vector<16x128xf32> to vector<16xf32>
      %22 = vector.shape_cast %21 : vector<16xf32> to vector<16x1xf32>
      %cst_18 = arith.constant 1.280000e+02 : f32
      %23 = vector.broadcast %cst_18 : f32 to vector<16x1xf32>
      %24 = arith.divf %22, %23 : vector<16x1xf32>
      %25 = vector.broadcast %24 : vector<16x1xf32> to vector<16x128xf32>
      %26 = arith.subf %20, %25 : vector<16x128xf32>
      %27 = arith.mulf %26, %26 : vector<16x128xf32>
      %cst_19 = arith.constant dense<0.000000e+00> : vector<16xf32>
      %28 = vector.multi_reduction <add>, %27, %cst_19 [1] : vector<16x128xf32> to vector<16xf32>
      %29 = vector.shape_cast %28 : vector<16xf32> to vector<16x1xf32>
      %cst_20 = arith.constant 1.280000e+02 : f32
      %30 = vector.broadcast %cst_20 : f32 to vector<16x1xf32>
      %31 = arith.divf %29, %30 : vector<16x1xf32>
      %32 = vector.broadcast %24 : vector<16x1xf32> to vector<16x128xf32>
      %33 = arith.subf %20, %32 : vector<16x128xf32>
      %cst_21 = arith.constant 9.99999974E-6 : f32
      %34 = vector.broadcast %cst_21 : f32 to vector<16x1xf32>
      %35 = arith.addf %31, %34 : vector<16x1xf32>
      %36 = math.rsqrt %35 : vector<16x1xf32>
      %37 = vector.broadcast %36 : vector<16x1xf32> to vector<16x128xf32>
      %38 = arith.mulf %33, %37 : vector<16x128xf32>
      %c0_22 = arith.constant 0 : index
      %c0_23 = arith.constant 0 : index
      %39 = vector.load %arg6[%c0_22, %c0_23] : memref<1x128xf32, #tpu.memory_space<vmem>>, vector<1x128xf32>
      %40 = vector.broadcast %39 : vector<1x128xf32> to vector<16x128xf32>
      %41 = arith.mulf %38, %40 : vector<16x128xf32>
      %c0_24 = arith.constant 0 : index
      %c0_25 = arith.constant 0 : index
      %42 = vector.load %arg7[%c0_24, %c0_25] : memref<1x128xf32, #tpu.memory_space<vmem>>, vector<1x128xf32>
      %43 = vector.broadcast %42 : vector<1x128xf32> to vector<16x128xf32>
      %44 = arith.addf %41, %43 : vector<16x128xf32>
      %c0_26 = arith.constant 0 : index
      %c0_27 = arith.constant 0 : index
      %45 = vector.load %arg8[%c0_26, %c0_27] : memref<16x128xf32, #tpu.memory_space<vmem>>, vector<16x128xf32>
      tpu.vector_store %arg8[%c0_26, %c0_27], %44 {strides = array<i32>} : memref<16x128xf32, #tpu.memory_space<vmem>>, vector<16x128xf32>,
    } else {
    }
    return
  }
  func.func @transform_0(%arg0: i32, %arg1: i32) -> (i32, i32) {
    %c0_i32 = arith.constant 0 : i32
    return %arg0, %arg1 : i32, i32
  }
  func.func @transform_1(%arg0: i32, %arg1: i32) -> (i32, i32) {
    %c0_i32 = arith.constant 0 : i32
    %c0_i32_0 = arith.constant 0 : i32
    return %arg1, %c0_i32 : i32, i32
  }
  func.func @transform_2(%arg0: i32, %arg1: i32) -> (i32, i32) {
    %c0_i32 = arith.constant 0 : i32
    %c0_i32_0 = arith.constant 0 : i32
    %c0_i32_1 = arith.constant 0 : i32
    return %c0_i32, %c0_i32_0 : i32, i32
  }
  func.func @transform_3(%arg0: i32, %arg1: i32) -> (i32, i32) {
    %c0_i32 = arith.constant 0 : i32
    %c0_i32_0 = arith.constant 0 : i32
    return %arg0, %c0_i32 : i32, i32
  }
  func.func @transform_4(%arg0: i32, %arg1: i32) -> (i32, i32) {
    %c0_i32 = arith.constant 0 : i32
    %c0_i32_0 = arith.constant 0 : i32
    %c0_i32_1 = arith.constant 0 : i32
    return %c0_i32, %c0_i32_0 : i32, i32
  }
  func.func @transform_5(%arg0: i32, %arg1: i32) -> (i32, i32) {
    %c0_i32 = arith.constant 0 : i32
    %c0_i32_0 = arith.constant 0 : i32
    %c0_i32_1 = arith.constant 0 : i32
    return %c0_i32, %c0_i32_0 : i32, i32
  }
  func.func @transform_6(%arg0: i32, %arg1: i32) -> (i32, i32) {
    %c0_i32 = arith.constant 0 : i32
    %c0_i32_0 = arith.constant 0 : i32
    return %arg0, %c0_i32 : i32, i32
  }
}

</mosaic_0001>

<llo_original>
// kernel: forward.13
$region0: #{forward.13}
  #allocation0 [shape = 'u32[]', space=smem, size = 0x4, offset = 0x4, fixed_abs, tag = 'smem constant byte address 0x4 - core index']
  #allocation1 [shape = 'u32[144,128]{1,0:T(1,128)}', space=vmem, size = 0x12000, scoped, tag = 'internal scratch']
  %s0 = inlined_call_operand.vmem [shape: f32[16,128], index: 0, kind: input, shape index: {}]
  %s1 = inlined_call_operand.vmem [shape: f32[16,128], index: 1, kind: input, shape index: {}]
  %s2 = inlined_call_operand.vmem [shape: f32[1,128], index: 2, kind: input, shape index: {}]
  %s3 = inlined_call_operand.vmem [shape: f32[1,128], index: 3, kind: input, shape index: {}]
  %s4 = inlined_call_operand.vmem [shape: f32[16,128], index: 4, kind: output, shape index: {}]
  %s5 = sld [smem:[#allocation0]]
  $region26: #{forward.13} parent=0
    _
  %s7 = ssub.s32 1, %s5
  %s8 = scalar_select 0, %s7, %s5
  // Predicated region
  $region2: #{forward.13} parent=0 // pred_check
    _
  $region3: #{forward.13} parent=0 // pred_check_branch
    %10 = sbr.rel (0) target = $region5
  $region4: #{forward.13} parent=0 // pred_region
    _
  $region5: #{forward.13} parent=0 // pred_fallthru
    _
  // Predicated region
  $region6: #{forward.13} parent=0 // pred_check
    _
  $region7: #{forward.13} parent=0 // pred_check_branch
    %12 = sbr.rel (0) target = $region9
  $region8: #{forward.13} parent=0 // pred_region
    _
  $region9: #{forward.13} parent=0 // pred_fallthru
    _
  // Predicated region
  $region10: #{forward.13} parent=0 // pred_check
    _
  $region11: #{forward.13} parent=0 // pred_check_branch
    %14 = sbr.rel (0) target = $region13
  $region12: #{forward.13} parent=0 // pred_region
    _
  $region13: #{forward.13} parent=0 // pred_fallthru
    _
  // Predicated region
  $region14: #{forward.13} parent=0 // pred_check
    _
  $region15: #{forward.13} parent=0 // pred_check_branch
    %16 = sbr.rel (0) target = $region17
  $region16: #{forward.13} parent=0 // pred_region
    _
  $region17: #{forward.13} parent=0 // pred_fallthru
    _
  %v17 = vld [vmem:[%s0] sm:$0xff]
  %v18 = vld [vmem:[%s0 + $0x8] sm:$0xff]
  %v19 = vld [vmem:[%s1] sm:$0xff]
  %v20 = vld [vmem:[%s1 + $0x8] sm:$0xff]
  %v21 = vadd.f32 %v17, %v19
  %v22 = vadd.f32 %v18, %v20
  %23 = vadd.xlane.f32.xlu0 %v21
  %v24 = vpop.xlane.xlu0 %23
  %25 = vadd.xlane.f32.xlu0 %v22
  %v26 = vpop.xlane.xlu0 %25
  %v27 = vrcp.pop 128.0
  %v28 = vmul.f32 %v24, %v27
  %v29 = vmul.f32 %v26, %v27
  %v30 = vsub.f32 %v21, %v28
  %v31 = vsub.f32 %v22, %v29
  %v32 = vmul.f32 %v30, %v30
  %v33 = vmul.f32 %v31, %v31
  %34 = vadd.xlane.f32.xlu0 %v32
  %v35 = vpop.xlane.xlu0 %34
  %36 = vadd.xlane.f32.xlu0 %v33
  %v37 = vpop.xlane.xlu0 %36
  %v38 = vmul.f32 %v35, %v27
  %v39 = vmul.f32 %v37, %v27
  %v40 = vadd.f32 %v38, 1e-05
  %v41 = vadd.f32 %v39, 1e-05
  %v42 = vrsqrt.pop %v40
  %v43 = vrsqrt.pop %v41
  %v44 = vmul.f32 %v30, %v42
  %v45 = vmul.f32 %v31, %v43
  %v46 = vld [vmem:[%s2] sm:$0x1]
  %v48 = vlaneseq
  %v49 = vshrl.u32 %v48, 7
  %v50 = vsub.s32 0, %v49
  %v51 = vrot.slane %v46, %v50
  %v53 = vmul.f32 %v44, %v51
  %v54 = vmul.f32 %v45, %v51
  %v55 = vld [vmem:[%s3] sm:$0x1]
  %v57 = vlaneseq
  %v58 = vshrl.u32 %v57, 7
  %v59 = vsub.s32 0, %v58
  %v60 = vrot.slane %v55, %v59
  %v62 = vadd.f32 %v53, %v60
  %v63 = vadd.f32 %v54, %v60
  %64 = vst [vmem:[%s4] sm:$0xff] %v62
  %65 = vst [vmem:[%s4 + $0x8] sm:$0xff] %v63
  // Predicated region
  $region18: #{forward.13} parent=0 // pred_check
    _
  $region19: #{forward.13} parent=0 // pred_check_branch
    %67 = sbr.rel (0) target = $region21
  $region20: #{forward.13} parent=0 // pred_region
    _
  $region21: #{forward.13} parent=0 // pred_fallthru
    _
  // Predicated region
  $region22: #{forward.13} parent=0 // pred_check
    _
  $region23: #{forward.13} parent=0 // pred_check_branch
    %69 = sbr.rel (0) target = $region25
  $region24: #{forward.13} parent=0 // pred_region
    _
  $region25: #{forward.13} parent=0 // pred_fallthru
    _

// kernel: forward.12
$region0: #{forward.12}
  #allocation0 [shape = 'u32[]', space=smem, size = 0x4, offset = 0x4, fixed_abs, tag = 'smem constant byte address 0x4 - core index']
  #allocation1 [shape = 'u32[144,128]{1,0:T(1,128)}', space=vmem, size = 0x12000, scoped, tag = 'internal scratch']
  %s0 = inlined_call_operand.vmem [shape: f32[16,256], index: 0, kind: input, shape index: {}]
  %s1 = inlined_call_operand.vmem [shape: bf16[256,16], index: 1, kind: input, shape index: {}]
  %s2 = inlined_call_operand.vmem [shape: f32[1,16], index: 2, kind: input, shape index: {}, may-alias: {2,4}]
  %s3 = inlined_call_operand.vmem [shape: f32[1,16], index: 3, kind: input, shape index: {}]
  %s4 = inlined_call_operand.vmem [shape: f32[1,16], index: 4, kind: input, shape index: {}, may-alias: {2,4}]
  %s5 = inlined_call_operand.vmem [shape: bf16[16,128], index: 5, kind: input, shape index: {}]
  %s6 = inlined_call_operand.vmem [shape: f32[1,128], index: 6, kind: input, shape index: {}]
  %s7 = inlined_call_operand.vmem [shape: f32[16,128], index: 7, kind: output, shape index: {}]
  %s8 = sld [smem:[#allocation0]]
  $region38: #{forward.12} parent=0
    _
  %s10 = ssub.s32 1, %s8
  %s11 = scalar_select 0, %s10, %s8
  // Predicated region
  $region2: #{forward.12} parent=0 // pred_check
    _
  $region3: #{forward.12} parent=0 // pred_check_branch
    %13 = sbr.rel (0) target = $region5
  $region4: #{forward.12} parent=0 // pred_region
    _
  $region5: #{forward.12} parent=0 // pred_fallthru
    _
  // Predicated region
  $region6: #{forward.12} parent=0 // pred_check
    _
  $region7: #{forward.12} parent=0 // pred_check_branch
    %15 = sbr.rel (0) target = $region9
  $region8: #{forward.12} parent=0 // pred_region
    _
  $region9: #{forward.12} parent=0 // pred_fallthru
    _
  // Predicated region
  $region10: #{forward.12} parent=0 // pred_check
    _
  $region11: #{forward.12} parent=0 // pred_check_branch
    %17 = sbr.rel (0) target = $region13
  $region12: #{forward.12} parent=0 // pred_region
    _
  $region13: #{forward.12} parent=0 // pred_fallthru
    _
  // Predicated region
  $region14: #{forward.12} parent=0 // pred_check
    _
  $region15: #{forward.12} parent=0 // pred_check_branch
    %19 = sbr.rel (0) target = $region17
  $region16: #{forward.12} parent=0 // pred_region
    _
  $region17: #{forward.12} parent=0 // pred_fallthru
    _
  // Predicated region
  $region18: #{forward.12} parent=0 // pred_check
    _
  $region19: #{forward.12} parent=0 // pred_check_branch
    %21 = sbr.rel (0) target = $region21
  $region20: #{forward.12} parent=0 // pred_region
    _
  $region21: #{forward.12} parent=0 // pred_fallthru
    _
  // Predicated region
  $region22: #{forward.12} parent=0 // pred_check
    _
  $region23: #{forward.12} parent=0 // pred_check_branch
    %23 = sbr.rel (0) target = $region25
  $region24: #{forward.12} parent=0 // pred_region
    _
  $region25: #{forward.12} parent=0 // pred_fallthru
    _
  // Predicated region
  $region26: #{forward.12} parent=0 // pred_check
    _
  $region27: #{forward.12} parent=0 // pred_check_branch
    %25 = sbr.rel (0) target = $region29
  $region28: #{forward.12} parent=0 // pred_region
    _
  $region29: #{forward.12} parent=0 // pred_fallthru
    _
  %v27 = vld [vmem:[%s0] sm:$0xff]
  %v28 = vld [vmem:[%s0 + $0x8] sm:$0xff]
  %v29 = vld [vmem:[%s0 + $0x10] sm:$0xff]
  %v30 = vld [vmem:[%s0 + $0x18] sm:$0xff]
  %v31 = vpack.c.bf16 %v29, %v27
  %v32 = vpack.c.bf16 %v30, %v28
  %v33 = vld [vmem:[%s1] sm:$0xf]
  %v34 = vld [vmem:[%s1 + $0x4] sm:$0xf]
  %v35 = vld [vmem:[%s1 + $0x8] sm:$0xf]
  %v36 = vld [vmem:[%s1 + $0xc] sm:$0xf]
  %v37 = vld [vmem:[%s1 + $0x10] sm:$0xf]
  %v38 = vld [vmem:[%s1 + $0x14] sm:$0xf]
  %v39 = vld [vmem:[%s1 + $0x18] sm:$0xf]
  %v40 = vld [vmem:[%s1 + $0x1c] sm:$0xf]
  %v41 = vld [vmem:[%s1 + $0x20] sm:$0xf]
  %v42 = vld [vmem:[%s1 + $0x24] sm:$0xf]
  %v43 = vld [vmem:[%s1 + $0x28] sm:$0xf]
  %v44 = vld [vmem:[%s1 + $0x2c] sm:$0xf]
  %v45 = vld [vmem:[%s1 + $0x30] sm:$0xf]
  %v46 = vld [vmem:[%s1 + $0x34] sm:$0xf]
  %v47 = vld [vmem:[%s1 + $0x38] sm:$0xf]
  %v48 = vld [vmem:[%s1 + $0x3c] sm:$0xf]
  %v49 = vld [vmem:[%s1 + $0x40] sm:$0xf]
  %v50 = vld [vmem:[%s1 + $0x44] sm:$0xf]
  %v51 = vld [vmem:[%s1 + $0x48] sm:$0xf]
  %v52 = vld [vmem:[%s1 + $0x4c] sm:$0xf]
  %v53 = vld [vmem:[%s1 + $0x50] sm:$0xf]
  %v54 = vld [vmem:[%s1 + $0x54] sm:$0xf]
  %v55 = vld [vmem:[%s1 + $0x58] sm:$0xf]
  %v56 = vld [vmem:[%s1 + $0x5c] sm:$0xf]
  %v57 = vld [vmem:[%s1 + $0x60] sm:$0xf]
  %v58 = vld [vmem:[%s1 + $0x64] sm:$0xf]
  %v59 = vld [vmem:[%s1 + $0x68] sm:$0xf]
  %v60 = vld [vmem:[%s1 + $0x6c] sm:$0xf]
  %v61 = vld [vmem:[%s1 + $0x70] sm:$0xf]
  %v62 = vld [vmem:[%s1 + $0x74] sm:$0xf]
  %v63 = vld [vmem:[%s1 + $0x78] sm:$0xf]
  %v64 = vld [vmem:[%s1 + $0x7c] sm:$0xf]
  %v65 = vld [vmem:[%s2] sm:$0x1]
  %v67 = vlaneseq
  %v68 = vshrl.u32 %v67, 7
  %v69 = vsub.s32 0, %v68
  %v70 = vrot.slane %v65, %v69
  %v104 = vunpack.c.l.b16 %v33
  %v105 = vunpack.c.l.b16 %v34
  %v106 = vunpack.c.l.b16 %v35
  %v107 = vunpack.c.l.b16 %v36
  %v108 = vunpack.c.l.b16 %v37
  %v109 = vunpack.c.l.b16 %v38
  %v110 = vunpack.c.l.b16 %v39
  %v111 = vunpack.c.l.b16 %v40
  %v112 = vunpack.c.l.b16 %v41
  %v113 = vunpack.c.l.b16 %v42
  %v114 = vunpack.c.l.b16 %v43
  %v115 = vunpack.c.l.b16 %v44
  %v116 = vunpack.c.l.b16 %v45
  %v117 = vunpack.c.l.b16 %v46
  %v118 = vunpack.c.l.b16 %v47
  %v119 = vunpack.c.l.b16 %v48
  %v120 = vunpack.c.l.b16 %v49
  %v121 = vunpack.c.l.b16 %v50
  %v122 = vunpack.c.l.b16 %v51
  %v123 = vunpack.c.l.b16 %v52
  %v124 = vunpack.c.l.b16 %v53
  %v125 = vunpack.c.l.b16 %v54
  %v126 = vunpack.c.l.b16 %v55
  %v127 = vunpack.c.l.b16 %v56
  %v128 = vunpack.c.l.b16 %v57
  %v129 = vunpack.c.l.b16 %v58
  %v130 = vunpack.c.l.b16 %v59
  %v131 = vunpack.c.l.b16 %v60
  %v132 = vunpack.c.l.b16 %v61
  %v133 = vunpack.c.l.b16 %v62
  %v134 = vunpack.c.l.b16 %v63
  %v135 = vunpack.c.l.b16 %v64
  %v136 = vpack.c.b16 %v105, %v104
  %v137 = vpack.c.b16 %v107, %v106
  %v138 = vpack.c.b16 %v109, %v108
  %v139 = vpack.c.b16 %v111, %v110
  %v140 = vpack.c.b16 %v113, %v112
  %v141 = vpack.c.b16 %v115, %v114
  %v142 = vpack.c.b16 %v117, %v116
  %v143 = vpack.c.b16 %v119, %v118
  %v144 = vpack.c.b16 %v121, %v120
  %v145 = vpack.c.b16 %v123, %v122
  %v146 = vpack.c.b16 %v125, %v124
  %v147 = vpack.c.b16 %v127, %v126
  %v148 = vpack.c.b16 %v129, %v128
  %v149 = vpack.c.b16 %v131, %v130
  %v150 = vpack.c.b16 %v133, %v132
  %v151 = vpack.c.b16 %v135, %v134
  %168 = vmatprep.subr.bf16.mxu0 0
  %169 = vmatpush1.bf16.msra.mxu0 %v136
  %170 = vmatprep.subr.bf16.mxu0 0
  %171 = vmatpush1.bf16.msra.mxu0 %v137
  %172 = vmatprep.subr.bf16.mxu0 0
  %173 = vmatpush1.bf16.msra.mxu0 %v138
  %174 = vmatprep.subr.bf16.mxu0 0
  %175 = vmatpush1.bf16.msra.mxu0 %v139
  %176 = vmatprep.subr.bf16.mxu0 0
  %177 = vmatpush1.bf16.msra.mxu0 %v140
  %178 = vmatprep.subr.bf16.mxu0 0
  %179 = vmatpush1.bf16.msra.mxu0 %v141
  %180 = vmatprep.subr.bf16.mxu0 0
  %181 = vmatpush1.bf16.msra.mxu0 %v142
  %182 = vmatprep.subr.bf16.mxu0 0
  %183 = vmatpush1.bf16.msra.mxu0 %v143
  %184 = vmatprep.subr.bf16.mxu0 0
  %185 = vmatpush1.bf16.msra.mxu0 %v144
  %186 = vmatprep.subr.bf16.mxu0 0
  %187 = vmatpush1.bf16.msra.mxu0 %v145
  %188 = vmatprep.subr.bf16.mxu0 0
  %189 = vmatpush1.bf16.msra.mxu0 %v146
  %190 = vmatprep.subr.bf16.mxu0 0
  %191 = vmatpush1.bf16.msra.mxu0 %v147
  %192 = vmatprep.subr.bf16.mxu0 0
  %193 = vmatpush1.bf16.msra.mxu0 %v148
  %194 = vmatprep.subr.bf16.mxu0 0
  %195 = vmatpush1.bf16.msra.mxu0 %v149
  %196 = vmatprep.subr.bf16.mxu0 0
  %197 = vmatpush1.bf16.msra.mxu0 %v150
  %198 = vmatprep.subr.bf16.mxu0 0
  %199 = vmatpush1.bf16.msra.mxu0 %v151
  %200 = vmatprep.mubr.bf16.mxu0 %v32
  %201 = vmatmul.mubr.bf16.gmra.mrb[0].mxu0 %v31
  %v202 = vpop.f32.mrb[0].mxu0
  %v203 = vadd.f32 %v70, %v202
  %v204 = vpop.f32.mrb[0].mxu0
  %v205 = vpop.f32.mrb[0].mxu0
  %v206 = vadd.f32 %v70, %v205
  %v207 = vpop.f32.mrb[0].mxu0
  %208 = vdwg.mxu0
  %vm209 = vcmask 130048
  %v210 = vsel %vm209, %v203, 0.0
  %211 = vadd.xlane.f32.xlu0 %v210
  %v212 = vpop.xlane.xlu0 %211
  %v213 = vsel %vm209, %v206, 0.0
  %214 = vadd.xlane.f32.xlu0 %v213
  %v215 = vpop.xlane.xlu0 %214
  %v216 = vrcp.pop 16.0
  %v217 = vmul.f32 %v212, %v216
  %v218 = vmul.f32 %v215, %v216
  %v219 = vsub.f32 %v203, %v217
  %v220 = vsub.f32 %v206, %v218
  %v221 = vmul.f32 %v219, %v219
  %v222 = vmul.f32 %v220, %v220
  %v223 = vsel %vm209, %v221, 0.0
  %224 = vadd.xlane.f32.xlu0 %v223
  %v225 = vpop.xlane.xlu0 %224
  %v226 = vsel %vm209, %v222, 0.0
  %227 = vadd.xlane.f32.xlu0 %v226
  %v228 = vpop.xlane.xlu0 %227
  %v229 = vmul.f32 %v225, %v216
  %v230 = vmul.f32 %v228, %v216
  %v231 = vadd.f32 %v229, 1e-05
  %v232 = vadd.f32 %v230, 1e-05
  %v233 = vrsqrt.pop %v231
  %v234 = vrsqrt.pop %v232
  %v235 = vmul.f32 %v219, %v233
  %v236 = vmul.f32 %v220, %v234
  %v237 = vld [vmem:[%s3] sm:$0x1]
  %v239 = vlaneseq
  %v240 = vshrl.u32 %v239, 7
  %v241 = vsub.s32 0, %v240
  %v242 = vrot.slane %v237, %v241
  %v244 = vmul.f32 %v235, %v242
  %v245 = vmul.f32 %v236, %v242
  %v246 = vld [vmem:[%s4] sm:$0x1]
  %v248 = vlaneseq
  %v249 = vshrl.u32 %v248, 7
  %v250 = vsub.s32 0, %v249
  %v251 = vrot.slane %v246, %v250
  %v253 = vadd.f32 %v244, %v251
  %v254 = vadd.f32 %v245, %v251
  %v255 = vpack.c.bf16 %v254, %v253
  %v256 = vld [vmem:[%s5] sm:$0xf]
  %v257 = vld [vmem:[%s5 + $0x4] sm:$0xf]
  %v258 = vld [vmem:[%s6] sm:$0x1]
  %v260 = vlaneseq
  %v261 = vshrl.u32 %v260, 7
  %v262 = vsub.s32 0, %v261
  %v263 = vrot.slane %v258, %v262
  %v267 = vunpack.c.l.b16 %v256
  %v268 = vunpack.c.l.b16 %v257
  %v269 = vpack.c.b16 %v268, %v267
  %v272 = vsel %vm209, %v255, 0
  %274 = vmatprep.subr.bf16.mxu0 0
  %275 = vmatpush1.bf16.msra.mxu0 %v269
  %276 = vmatprep.subr.bf16.mxu0 0
  %277 = vmatpush1.bf16.msra.mxu0 0
  %278 = vmatprep.subr.bf16.mxu0 0
  %279 = vmatpush1.bf16.msra.mxu0 0
  %280 = vmatprep.subr.bf16.mxu0 0
  %281 = vmatpush1.bf16.msra.mxu0 0
  %282 = vmatprep.subr.bf16.mxu0 0
  %283 = vmatpush1.bf16.msra.mxu0 0
  %284 = vmatprep.subr.bf16.mxu0 0
  %285 = vmatpush1.bf16.msra.mxu0 0
  %286 = vmatprep.subr.bf16.mxu0 0
  %287 = vmatpush1.bf16.msra.mxu0 0
  %288 = vmatprep.subr.bf16.mxu0 0
  %289 = vmatpush1.bf16.msra.mxu0 0
  %290 = vmatprep.subr.bf16.mxu0 0
  %291 = vmatpush1.bf16.msra.mxu0 0
  %292 = vmatprep.subr.bf16.mxu0 0
  %293 = vmatpush1.bf16.msra.mxu0 0
  %294 = vmatprep.subr.bf16.mxu0 0
  %295 = vmatpush1.bf16.msra.mxu0 0
  %296 = vmatprep.subr.bf16.mxu0 0
  %297 = vmatpush1.bf16.msra.mxu0 0
  %298 = vmatprep.subr.bf16.mxu0 0
  %299 = vmatpush1.bf16.msra.mxu0 0
  %300 = vmatprep.subr.bf16.mxu0 0
  %301 = vmatpush1.bf16.msra.mxu0 0
  %302 = vmatprep.subr.bf16.mxu0 0
  %303 = vmatpush1.bf16.msra.mxu0 0
  %304 = vmatprep.subr.bf16.mxu0 0
  %305 = vmatpush1.bf16.msra.mxu0 0
  %306 = vmatprep.mubr.bf16.mxu0 0
  %307 = vmatmul.mubr.bf16.gmra.mrb[0].mxu0 %v272
  %v308 = vpop.f32.mrb[0].mxu0
  %v309 = vadd.f32 %v263, %v308
  %v310 = vpop.f32.mrb[0].mxu0
  %v311 = vpop.f32.mrb[0].mxu0
  %v312 = vadd.f32 %v263, %v311
  %v313 = vpop.f32.mrb[0].mxu0
  %314 = vdwg.mxu0
  %315 = vst [vmem:[%s7] sm:$0xff] %v309
  %316 = vst [vmem:[%s7 + $0x8] sm:$0xff] %v312
  // Predicated region
  $region30: #{forward.12} parent=0 // pred_check
    _
  $region31: #{forward.12} parent=0 // pred_check_branch
    %318 = sbr.rel (0) target = $region33
  $region32: #{forward.12} parent=0 // pred_region
    _
  $region33: #{forward.12} parent=0 // pred_fallthru
    _
  // Predicated region
  $region34: #{forward.12} parent=0 // pred_check
    _
  $region35: #{forward.12} parent=0 // pred_check_branch
    %320 = sbr.rel (0) target = $region37
  $region36: #{forward.12} parent=0 // pred_region
    _
  $region37: #{forward.12} parent=0 // pred_fallthru
    _

// kernel: forward.14
$region0: #{forward.14}
  #allocation0 [shape = 'u32[]', space=smem, size = 0x4, offset = 0x4, fixed_abs, tag = 'smem constant byte address 0x4 - core index']
  #allocation1 [shape = 'u32[144,128]{1,0:T(1,128)}', space=vmem, size = 0x12000, scoped, tag = 'internal scratch']
  #allocation2 [shape = 'f32[16,128]{1,0:T(8,128)}', space=vmem, size = 0x2000, scoped, tag = 'scratch operand']
  %s0 = inlined_call_operand.vmem [shape: f32[16,128], index: 0, kind: input, shape index: {}]
  %s1 = inlined_call_operand.vmem [shape: bf16[128,384], index: 1, kind: input, shape index: {}]
  %s2 = inlined_call_operand.vmem [shape: f32[1,384], index: 2, kind: input, shape index: {}]
  %s3 = inlined_call_operand.vmem [shape: f32[16,384], index: 3, kind: output, shape index: {}]
  %s4 = sld [smem:[#allocation0]]
  $region128: #{forward.14} parent=0
    _
  %s6 = ssub.s32 1, %s4
  %s7 = scalar_select 0, %s6, %s4
  $region1: #{forward.14} parent=0
    #allocation3 [shape = 'u8[65536]{0}', space=vmem, size = 0x10000, scoped, tag = 'input window, operand 1']
    #allocation4 [shape = 'u8[16384]{0}', space=vmem, size = 0x4000, scoped, tag = 'output window, operand 0']
    loop: start=0, step=1, limit=5
    $region2: #{forward.14} parent=1 // loop_pre_header
      _
    $region3: #{forward.14} parent=1 // loop_header
      %s9 = sphi 0, %s13
      %p10 = scmp.ge.s32.totalorder %s9, 5
      %s16 = sphi 0, %s35
      %s17 = sphi 0, %s31
      %s18 = sphi 0, %s27
      %s19 = sphi 0, %s16
      %s20 = sphi 0, %s17
      %s21 = sphi 0, %s18
      %s22 = sphi 0, %s19
      %s23 = sphi 0, %s20
      %s24 = sphi 0, %s21
      %s40 = sphi 0, %s42
      %s43 = sphi 0, %s40
      %s44 = sphi 0, %s43
      %s60 = sphi 0, %s44
      %s68 = sphi 0, %s70
      %s71 = sphi 0, %s68
      %s72 = sphi 0, %s71
      %s88 = sphi 0, %s72
      %s94 = sphi 0, %s96
      %s97 = sphi 0, %s94
      %s98 = sphi 0, %s97
      %s114 = sphi 0, %s98
      %s122 = sphi 0, %s124
      %s125 = sphi 0, %s122
      %s126 = sphi 0, %s125
      %s142 = sphi 0, %s126
    $region4: #{forward.14} parent=1 // loop_header_branch
      %12 = sbr.rel (%p10) target = $region8
    $region5: #{forward.14} parent=1 // loop_body
      %s14 = ssub.s32 %s9, 1
      %s15 = ssub.s32 %s9, 2
      %s25 = sadd.s32 1, %s18
      %p26 = scmp.ge.s32.totalorder %s25, 1
      %s27 = scalar_select %p26, 0, %s25
      %s28 = sadd.s32 1, %s17
      %s29 = scalar_select %p26, %s28, %s17
      %p30 = scmp.ge.s32.totalorder %s29, 3
      %s31 = scalar_select %p30, 0, %s29
      %s32 = sadd.s32 1, %s16
      %s33 = scalar_select %p30, %s32, %s16
      %p34 = scmp.ge.s32.totalorder %s33, 1
      %s35 = scalar_select %p34, 0, %s33
      %s36 = ssub.s32 %s16, %s35
      %s37 = ssub.s32 %s18, %s27
      %s38 = sor.u32 %s36, %s37
      %p39 = scmp.eq.s32.totalorder %s38, 0
      %s41 = sadd.s32 %s40, 1
      %s42 = scalar_select %p39, %s40, %s41
      %p45 = pneg %p39
      %p46 = scmp.eq.s32.totalorder %s9, 2
      %p47 = por %p45, %p46
      %p48 = scmp.ne.s32.totalorder %s40, %s43
      %p49 = scmp.eq.s32.totalorder %s9, 0
      %p50 = por %p48, %p49
      %p51 = scmp.ne.s32.totalorder %s40, %s43
      %p52 = scmp.eq.s32.totalorder %s14, 2
      %p53 = por %p51, %p52
      %p54 = scmp.ne.s32.totalorder %s43, %s44
      %p55 = scmp.eq.s32.totalorder %s14, 0
      %p56 = por %p54, %p55
      %p57 = scmp.ne.s32.totalorder %s43, %s44
      %p58 = scmp.eq.s32.totalorder %s15, 2
      %p59 = por %p57, %p58
      %p61 = scmp.ne.s32.totalorder %s44, %s60
      %p62 = scmp.eq.s32.totalorder %s15, 0
      %p63 = por %p61, %p62
      %s64 = ssub.s32 %s18, %s27
      %s65 = ssub.s32 %s17, %s31
      %s66 = sor.u32 %s64, %s65
      %p67 = scmp.eq.s32.totalorder %s66, 0
      %s69 = sadd.s32 %s68, 1
      %s70 = scalar_select %p67, %s68, %s69
      %p73 = pneg %p67
      %p74 = scmp.eq.s32.totalorder %s9, 2
      %p75 = por %p73, %p74
      %p76 = scmp.ne.s32.totalorder %s68, %s71
      %p77 = scmp.eq.s32.totalorder %s9, 0
      %p78 = por %p76, %p77
      %p79 = scmp.ne.s32.totalorder %s68, %s71
      %p80 = scmp.eq.s32.totalorder %s14, 2
      %p81 = por %p79, %p80
      %p82 = scmp.ne.s32.totalorder %s71, %s72
      %p83 = scmp.eq.s32.totalorder %s14, 0
      %p84 = por %p82, %p83
      %p85 = scmp.ne.s32.totalorder %s71, %s72
      %p86 = scmp.eq.s32.totalorder %s15, 2
      %p87 = por %p85, %p86
      %p89 = scmp.ne.s32.totalorder %s72, %s88
      %p90 = scmp.eq.s32.totalorder %s15, 0
      %p91 = por %p89, %p90
      %s92 = ssub.s32 %s17, %s31
      %p93 = scmp.eq.s32.totalorder %s92, 0
      %s95 = sadd.s32 %s94, 1
      %s96 = scalar_select %p93, %s94, %s95
      %p99 = pneg %p93
      %p100 = scmp.eq.s32.totalorder %s9, 2
      %p101 = por %p99, %p100
      %p102 = scmp.ne.s32.totalorder %s94, %s97
      %p103 = scmp.eq.s32.totalorder %s9, 0
      %p104 = por %p102, %p103
      %p105 = scmp.ne.s32.totalorder %s94, %s97
      %p106 = scmp.eq.s32.totalorder %s14, 2
      %p107 = por %p105, %p106
      %p108 = scmp.ne.s32.totalorder %s97, %s98
      %p109 = scmp.eq.s32.totalorder %s14, 0
      %p110 = por %p108, %p109
      %p111 = scmp.ne.s32.totalorder %s97, %s98
      %p112 = scmp.eq.s32.totalorder %s15, 2
      %p113 = por %p111, %p112
      %p115 = scmp.ne.s32.totalorder %s98, %s114
      %p116 = scmp.eq.s32.totalorder %s15, 0
      %p117 = por %p115, %p116
      %s118 = ssub.s32 %s16, %s35
      %s119 = ssub.s32 %s17, %s31
      %s120 = sor.u32 %s118, %s119
      %p121 = scmp.eq.s32.totalorder %s120, 0
      %s123 = sadd.s32 %s122, 1
      %s124 = scalar_select %p121, %s122, %s123
      %p127 = pneg %p121
      %p128 = scmp.eq.s32.totalorder %s9, 2
      %p129 = por %p127, %p128
      %p130 = scmp.ne.s32.totalorder %s122, %s125
      %p131 = scmp.eq.s32.totalorder %s9, 0
      %p132 = por %p130, %p131
      %p133 = scmp.ne.s32.totalorder %s122, %s125
      %p134 = scmp.eq.s32.totalorder %s14, 2
      %p135 = por %p133, %p134
      %p136 = scmp.ne.s32.totalorder %s125, %s126
      %p137 = scmp.eq.s32.totalorder %s14, 0
      %p138 = por %p136, %p137
      %p139 = scmp.ne.s32.totalorder %s125, %s126
      %p140 = scmp.eq.s32.totalorder %s15, 2
      %p141 = por %p139, %p140
      %p143 = scmp.ne.s32.totalorder %s126, %s142
      %p144 = scmp.eq.s32.totalorder %s15, 0
      %p145 = por %p143, %p144
      %p146 = scmp.le.s32.totalorder 1, %s9
      %p147 = scmp.lt.s32.totalorder %s9, 4
      %p148 = pnand %p146, %p147
      %p149 = pneg %p148
      // Predicated region
      $region9: #{forward.14} parent=5 // pred_check
        _
      $region10: #{forward.14} parent=5 // pred_check_branch
        %151 = sbr.rel (%p148) target = $region12
      $region11: #{forward.14} parent=5 // pred_region
        %s152 = ssub.s32 %s9, 1
        // Predicated region
        $region13: #{forward.14} parent=11 // pred_check
          %p153 = pneg %p56
        $region14: #{forward.14} parent=11 // pred_check_branch
          %155 = sbr.rel (%p153) target = $region16
        $region15: #{forward.14} parent=11 // pred_region
          %s156 = smul.u32 2, %s19
          %p157 = scmp.lt.s32.totalorder %s156, 1
          %s158 = scalar_select %p157, %s156, 1
          %p159 = scmp.lt.s32.totalorder %s21, 0
          %s160 = scalar_select %p159, %s21, 0
          %s161 = sadd.s32 %s160, %s158
          %s162 = smul.addr %s161, 8
          %s163 = scalar_lea.vmem %s0, %s162
          %s164 = smul.u32 2, %s19
        $region16: #{forward.14} parent=11 // pred_fallthru
          _
      $region12: #{forward.14} parent=5 // pred_fallthru
        _
      %p165 = scmp.lt.s32.totalorder %s9, 3
      // Predicated region
      $region17: #{forward.14} parent=5 // pred_check
        %p166 = pneg %p165
      $region18: #{forward.14} parent=5 // pred_check_branch
        %168 = sbr.rel (%p166) target = $region20
      $region19: #{forward.14} parent=5 // pred_region
        // Predicated region
        $region21: #{forward.14} parent=19 // pred_check
          %p169 = pneg %p78
        $region22: #{forward.14} parent=19 // pred_check_branch
          %171 = sbr.rel (%p169) target = $region24
        $region23: #{forward.14} parent=19 // pred_region
          %s172 = sand.u32 %s68, 1
          %s173 = sand.u32 %s68, 1
          %s174 = smul.addr %s173, 64
          %s175 = scalar_lea.vmem [#allocation3], %s174
          %s176 = smul.u32 16, %s18
          %s177 = smul.addr %s176, 3
          %s178 = sadd.s32 %s17, %s177
          %s179 = smul.addr %s178, 4
          %s180 = scalar_lea.vmem %s1, %s179
          // Predicated region
          $region25: #{forward.14} parent=23 // pred_check
            _
          $region26: #{forward.14} parent=23 // pred_check_branch
            %182 = sbr.rel (0) target = $region28
          $region27: #{forward.14} parent=23 // pred_region
            // Predicated region
            $region29: #{forward.14} parent=27 // pred_check
              _
            $region30: #{forward.14} parent=27 // pred_check_branch
              %184 = sbr.rel target = $region32
            $region31: #{forward.14} parent=27 // pred_region
              // Predicated region
              $region44: #{forward.14} parent=31 // pred_check
                _
              $region45: #{forward.14} parent=31 // pred_check_branch
                %229 = sbr.rel (0) target = $region47
              $region46: #{forward.14} parent=31 // pred_region
                loop: start=0, step=1, limit=1
                $region48: #{forward.14} parent=46 // loop_pre_header
                  _
                $region49: #{forward.14} parent=46 // loop_header
                  %s231 = sphi 0, %s235
                  %p232 = scmp.ge.s32.totalorder %s231, 1
                  %s236 = sphi %s180, %s180
                  %s237 = sphi %s175, %s175
                $region50: #{forward.14} parent=46 // loop_header_branch
                  %234 = sbr.rel (%p232) target = $region54
                $region51: #{forward.14} parent=46 // loop_body
                  _
                $region52: #{forward.14} parent=46 // loop_footer
                  %s235 = sadd.s32 1, %s231
                $region53: #{forward.14} parent=46 // loop_footer_branch
                  %230 = sbr.rel target = $region49
                $region54: #{forward.14} parent=46 // loop_exit
                  _
                loop: start=0, step=1, limit=1
                $region55: #{forward.14} parent=46 // loop_pre_header
                  _
                $region56: #{forward.14} parent=46 // loop_header
                  %s240 = sphi 0, %s244
                  %p241 = scmp.ge.s32.totalorder %s240, 1
                  %s245 = sphi %s180, %s180
                  %s246 = sphi %s175, %s175
                $region57: #{forward.14} parent=46 // loop_header_branch
                  %243 = sbr.rel (%p241) target = $region61
                $region58: #{forward.14} parent=46 // loop_body
                  %v247 = vld [vmem:[%s245] sm:$0xf]
                  %248 = vst [vmem:[%s246] sm:$0xf] %v247
                  %v249 = vld [vmem:[%s245 + $0xc] sm:$0xf]
                  %250 = vst [vmem:[%s246 + $0x4] sm:$0xf] %v249
                  %v251 = vld [vmem:[%s245 + $0x18] sm:$0xf]
                  %252 = vst [vmem:[%s246 + $0x8] sm:$0xf] %v251
                  %v253 = vld [vmem:[%s245 + $0x24] sm:$0xf]
                  %254 = vst [vmem:[%s246 + $0xc] sm:$0xf] %v253
                  %v255 = vld [vmem:[%s245 + $0x30] sm:$0xf]
                  %256 = vst [vmem:[%s246 + $0x10] sm:$0xf] %v255
                  %v257 = vld [vmem:[%s245 + $0x3c] sm:$0xf]
                  %258 = vst [vmem:[%s246 + $0x14] sm:$0xf] %v257
                  %v259 = vld [vmem:[%s245 + $0x48] sm:$0xf]
                  %260 = vst [vmem:[%s246 + $0x18] sm:$0xf] %v259
                  %v261 = vld [vmem:[%s245 + $0x54] sm:$0xf]
                  %262 = vst [vmem:[%s246 + $0x1c] sm:$0xf] %v261
                  %v263 = vld [vmem:[%s245 + $0x60] sm:$0xf]
                  %264 = vst [vmem:[%s246 + $0x20] sm:$0xf] %v263
                  %v265 = vld [vmem:[%s245 + $0x6c] sm:$0xf]
                  %266 = vst [vmem:[%s246 + $0x24] sm:$0xf] %v265
                  %v267 = vld [vmem:[%s245 + $0x78] sm:$0xf]
                  %268 = vst [vmem:[%s246 + $0x28] sm:$0xf] %v267
                  %v269 = vld [vmem:[%s245 + $0x84] sm:$0xf]
                  %270 = vst [vmem:[%s246 + $0x2c] sm:$0xf] %v269
                  %v271 = vld [vmem:[%s245 + $0x90] sm:$0xf]
                  %272 = vst [vmem:[%s246 + $0x30] sm:$0xf] %v271
                  %v273 = vld [vmem:[%s245 + $0x9c] sm:$0xf]
                  %274 = vst [vmem:[%s246 + $0x34] sm:$0xf] %v273
                  %v275 = vld [vmem:[%s245 + $0xa8] sm:$0xf]
                  %276 = vst [vmem:[%s246 + $0x38] sm:$0xf] %v275
                  %v277 = vld [vmem:[%s245 + $0xb4] sm:$0xf]
                  %278 = vst [vmem:[%s246 + $0x3c] sm:$0xf] %v277
                $region59: #{forward.14} parent=46 // loop_footer
                  %s244 = sadd.s32 1, %s240
                $region60: #{forward.14} parent=46 // loop_footer_branch
                  %239 = sbr.rel target = $region56
                $region61: #{forward.14} parent=46 // loop_exit
                  _
              $region47: #{forward.14} parent=31 // pred_fallthru
                _
            $region32: #{forward.14} parent=27 // pred_fallthru
              _
            // Predicated region
            $region33: #{forward.14} parent=27 // pred_check
              _
            $region34: #{forward.14} parent=27 // pred_check_branch
              %186 = sbr.rel (0) target = $region36
            $region35: #{forward.14} parent=27 // pred_region
              loop: start=0, step=1, limit=1
              $region37: #{forward.14} parent=35 // loop_pre_header
                _
              $region38: #{forward.14} parent=35 // loop_header
                %s189 = sphi 0, %s193
                %p190 = scmp.ge.s32.totalorder %s189, 1
                %s194 = sphi %s180, %s180
                %s195 = sphi %s175, %s175
              $region39: #{forward.14} parent=35 // loop_header_branch
                %192 = sbr.rel (%p190) target = $region43
              $region40: #{forward.14} parent=35 // loop_body
                %v196 = vld [vmem:[%s194] sm:$0xf]
                %197 = vst [vmem:[%s195] sm:$0xf] %v196
                %v198 = vld [vmem:[%s194 + $0xc] sm:$0xf]
                %199 = vst [vmem:[%s195 + $0x4] sm:$0xf] %v198
                %v200 = vld [vmem:[%s194 + $0x18] sm:$0xf]
                %201 = vst [vmem:[%s195 + $0x8] sm:$0xf] %v200
                %v202 = vld [vmem:[%s194 + $0x24] sm:$0xf]
                %203 = vst [vmem:[%s195 + $0xc] sm:$0xf] %v202
                %v204 = vld [vmem:[%s194 + $0x30] sm:$0xf]
                %205 = vst [vmem:[%s195 + $0x10] sm:$0xf] %v204
                %v206 = vld [vmem:[%s194 + $0x3c] sm:$0xf]
                %207 = vst [vmem:[%s195 + $0x14] sm:$0xf] %v206
                %v208 = vld [vmem:[%s194 + $0x48] sm:$0xf]
                %209 = vst [vmem:[%s195 + $0x18] sm:$0xf] %v208
                %v210 = vld [vmem:[%s194 + $0x54] sm:$0xf]
                %211 = vst [vmem:[%s195 + $0x1c] sm:$0xf] %v210
                %v212 = vld [vmem:[%s194 + $0x60] sm:$0xf]
                %213 = vst [vmem:[%s195 + $0x20] sm:$0xf] %v212
                %v214 = vld [vmem:[%s194 + $0x6c] sm:$0xf]
                %215 = vst [vmem:[%s195 + $0x24] sm:$0xf] %v214
                %v216 = vld [vmem:[%s194 + $0x78] sm:$0xf]
                %217 = vst [vmem:[%s195 + $0x28] sm:$0xf] %v216
                %v218 = vld [vmem:[%s194 + $0x84] sm:$0xf]
                %219 = vst [vmem:[%s195 + $0x2c] sm:$0xf] %v218
                %v220 = vld [vmem:[%s194 + $0x90] sm:$0xf]
                %221 = vst [vmem:[%s195 + $0x30] sm:$0xf] %v220
                %v222 = vld [vmem:[%s194 + $0x9c] sm:$0xf]
                %223 = vst [vmem:[%s195 + $0x34] sm:$0xf] %v222
                %v224 = vld [vmem:[%s194 + $0xa8] sm:$0xf]
                %225 = vst [vmem:[%s195 + $0x38] sm:$0xf] %v224
                %v226 = vld [vmem:[%s194 + $0xb4] sm:$0xf]
                %227 = vst [vmem:[%s195 + $0x3c] sm:$0xf] %v226
              $region41: #{forward.14} parent=35 // loop_footer
                %s193 = sadd.s32 1, %s189
              $region42: #{forward.14} parent=35 // loop_footer_branch
                %188 = sbr.rel target = $region38
              $region43: #{forward.14} parent=35 // loop_exit
                _
            $region36: #{forward.14} parent=27 // pred_fallthru
              _
          $region28: #{forward.14} parent=23 // pred_fallthru
            _
          %279 = vnop
        $region24: #{forward.14} parent=19 // pred_fallthru
          _
        // Predicated region
        $region62: #{forward.14} parent=19 // pred_check
          %p280 = pneg %p104
        $region63: #{forward.14} parent=19 // pred_check_branch
          %282 = sbr.rel (%p280) target = $region65
        $region64: #{forward.14} parent=19 // pred_region
          %p283 = scmp.lt.s32.totalorder %s17, 2
          %s284 = scalar_select %p283, %s17, 2
          %s285 = scalar_lea.vmem %s2, %s284
        $region65: #{forward.14} parent=19 // pred_fallthru
          _
      $region20: #{forward.14} parent=5 // pred_fallthru
        _
      %p286 = scmp.le.s32.totalorder 1, %s9
      %p287 = scmp.lt.s32.totalorder %s9, 4
      %p288 = pnand %p286, %p287
      %p289 = pneg %p288
      // Predicated region
      $region66: #{forward.14} parent=5 // pred_check
        _
      $region67: #{forward.14} parent=5 // pred_check_branch
        %291 = sbr.rel (%p288) target = $region69
      $region68: #{forward.14} parent=5 // pred_region
        %s292 = ssub.s32 %s9, 1
        %s293 = sand.u32 %s71, 1
        %s294 = sand.u32 %s71, 1
        %s295 = smul.addr %s294, 64
        %s296 = scalar_lea.vmem [#allocation3], %s295
        // Predicated region
        $region70: #{forward.14} parent=68 // pred_check
          %p297 = pneg %p84
        $region71: #{forward.14} parent=68 // pred_check_branch
          %299 = sbr.rel (%p297) target = $region73
        $region72: #{forward.14} parent=68 // pred_region
          _
        $region73: #{forward.14} parent=68 // pred_fallthru
          _
        %s300 = smul.u32 2, %s19
        %p301 = scmp.lt.s32.totalorder %s300, 1
        %s302 = scalar_select %p301, %s300, 1
        %p303 = scmp.lt.s32.totalorder %s21, 0
        %s304 = scalar_select %p303, %s21, 0
        %s305 = sadd.s32 %s304, %s302
        %s306 = smul.addr %s305, 8
        %s307 = scalar_lea.vmem %s0, %s306
        %p308 = pneg %p56
        %p309 = pneg %p53
        %s310 = sand.u32 %s71, 1
        %s311 = sand.u32 %s71, 1
        %s312 = smul.addr %s311, 64
        %s313 = scalar_lea.vmem [#allocation3], %s312
        %p314 = pneg %p84
        %p315 = pneg %p81
        %p316 = scmp.lt.s32.totalorder %s20, 2
        %s317 = scalar_select %p316, %s20, 2
        %s318 = scalar_lea.vmem %s2, %s317
        %p319 = pneg %p110
        %p320 = pneg %p107
        %p321 = pneg %p138
        %p322 = pneg %p135
        %s323 = sand.u32 %s125, 1
        %s324 = sand.u32 %s125, 1
        %s325 = smul.addr %s324, 16
        %s326 = scalar_lea.vmem [#allocation4], %s325
        %s327 = smul.u32 2, %s19
        %p328 = scmp.lt.s32.totalorder %s327, 1
        %s329 = scalar_select %p328, %s327, 1
        %p330 = scmp.lt.s32.totalorder %s21, 0
        %s331 = scalar_select %p330, %s21, 0
        %s332 = sadd.s32 %s331, %s329
        %s333 = smul.addr %s332, 8
        %s334 = scalar_lea.vmem %s0, %s333
        %s335 = smul.u32 2, %s19
        %s336 = smul.u32 16, %s21
        %p337 = scmp.lt.s32.totalorder %s20, 2
        %s338 = scalar_select %p337, %s20, 2
        %s339 = scalar_lea.vmem %s2, %s338
        %s340 = smul.u32 2, %s19
        %p342 = scmp.eq.s32.totalorder %s21, 0
        // Predicated region
        $region74: #{forward.14} parent=68 // pred_check
          %p343 = pneg %p342
        $region75: #{forward.14} parent=68 // pred_check_branch
          %345 = sbr.rel (%p343) target = $region77
        $region76: #{forward.14} parent=68 // pred_region
          %346 = vst [vmem:[#allocation2] sm:$0xff] 0.0
          %347 = vst [vmem:[#allocation2 + $0x8] sm:$0xff] 0.0
        $region77: #{forward.14} parent=68 // pred_fallthru
          _
        %v348 = vld [vmem:[#allocation2] sm:$0xff]
        %v349 = vld [vmem:[#allocation2 + $0x8] sm:$0xff]
        %v350 = vld [vmem:[%s334] sm:$0xff]
        %v351 = vld [vmem:[%s334 + $0x8] sm:$0xff]
        %v352 = vpack.c.bf16 %v351, %v350
        %v353 = vld [vmem:[%s296] sm:$0xf]
        %v354 = vld [vmem:[%s296 + $0x4] sm:$0xf]
        %v355 = vld [vmem:[%s296 + $0x8] sm:$0xf]
        %v356 = vld [vmem:[%s296 + $0xc] sm:$0xf]
        %v357 = vld [vmem:[%s296 + $0x10] sm:$0xf]
        %v358 = vld [vmem:[%s296 + $0x14] sm:$0xf]
        %v359 = vld [vmem:[%s296 + $0x18] sm:$0xf]
        %v360 = vld [vmem:[%s296 + $0x1c] sm:$0xf]
        %v361 = vld [vmem:[%s296 + $0x20] sm:$0xf]
        %v362 = vld [vmem:[%s296 + $0x24] sm:$0xf]
        %v363 = vld [vmem:[%s296 + $0x28] sm:$0xf]
        %v364 = vld [vmem:[%s296 + $0x2c] sm:$0xf]
        %v365 = vld [vmem:[%s296 + $0x30] sm:$0xf]
        %v366 = vld [vmem:[%s296 + $0x34] sm:$0xf]
        %v367 = vld [vmem:[%s296 + $0x38] sm:$0xf]
        %v368 = vld [vmem:[%s296 + $0x3c] sm:$0xf]
        %v385 = vunpack.c.l.b16 %v353
        %v386 = vunpack.c.l.b16 %v354
        %v387 = vunpack.c.l.b16 %v355
        %v388 = vunpack.c.l.b16 %v356
        %v389 = vunpack.c.l.b16 %v357
        %v390 = vunpack.c.l.b16 %v358
        %v391 = vunpack.c.l.b16 %v359
        %v392 = vunpack.c.l.b16 %v360
        %v393 = vunpack.c.l.b16 %v361
        %v394 = vunpack.c.l.b16 %v362
        %v395 = vunpack.c.l.b16 %v363
        %v396 = vunpack.c.l.b16 %v364
        %v397 = vunpack.c.l.b16 %v365
        %v398 = vunpack.c.l.b16 %v366
        %v399 = vunpack.c.l.b16 %v367
        %v400 = vunpack.c.l.b16 %v368
        %v401 = vpack.c.b16 %v386, %v385
        %v402 = vpack.c.b16 %v388, %v387
        %v403 = vpack.c.b16 %v390, %v389
        %v404 = vpack.c.b16 %v392, %v391
        %v405 = vpack.c.b16 %v394, %v393
        %v406 = vpack.c.b16 %v396, %v395
        %v407 = vpack.c.b16 %v398, %v397
        %v408 = vpack.c.b16 %v400, %v399
        %417 = vmatprep.subr.bf16.mxu0 0
        %418 = vmatpush1.bf16.msra.mxu0 %v401
        %419 = vmatprep.subr.bf16.mxu0 0
        %420 = vmatpush1.bf16.msra.mxu0 %v402
        %421 = vmatprep.subr.bf16.mxu0 0
        %422 = vmatpush1.bf16.msra.mxu0 %v403
        %423 = vmatprep.subr.bf16.mxu0 0
        %424 = vmatpush1.bf16.msra.mxu0 %v404
        %425 = vmatprep.subr.bf16.mxu0 0
        %426 = vmatpush1.bf16.msra.mxu0 %v405
        %427 = vmatprep.subr.bf16.mxu0 0
        %428 = vmatpush1.bf16.msra.mxu0 %v406
        %429 = vmatprep.subr.bf16.mxu0 0
        %430 = vmatpush1.bf16.msra.mxu0 %v407
        %431 = vmatprep.subr.bf16.mxu0 0
        %432 = vmatpush1.bf16.msra.mxu0 %v408
        %433 = vmatprep.subr.bf16.mxu0 0
        %434 = vmatpush1.bf16.msra.mxu0 0
        %435 = vmatprep.subr.bf16.mxu0 0
        %436 = vmatpush1.bf16.msra.mxu0 0
        %437 = vmatprep.subr.bf16.mxu0 0
        %438 = vmatpush1.bf16.msra.mxu0 0
        %439 = vmatprep.subr.bf16.mxu0 0
        %440 = vmatpush1.bf16.msra.mxu0 0
        %441 = vmatprep.subr.bf16.mxu0 0
        %442 = vmatpush1.bf16.msra.mxu0 0
        %443 = vmatprep.subr.bf16.mxu0 0
        %444 = vmatpush1.bf16.msra.mxu0 0
        %445 = vmatprep.subr.bf16.mxu0 0
        %446 = vmatpush1.bf16.msra.mxu0 0
        %447 = vmatprep.subr.bf16.mxu0 0
        %448 = vmatpush1.bf16.msra.mxu0 0
        %449 = vmatprep.mubr.bf16.mxu0 0
        %450 = vmatmul.mubr.bf16.gmra.mrb[0].mxu0 %v352
        %v451 = vpop.f32.mrb[0].mxu0
        %v452 = vadd.f32 0.0, %v451
        %v453 = vpop.f32.mrb[0].mxu0
        %v454 = vpop.f32.mrb[0].mxu0
        %v455 = vadd.f32 0.0, %v454
        %v456 = vpop.f32.mrb[0].mxu0
        %457 = vdwg.mxu0
        %v458 = vadd.f32 %v348, %v452
        %v459 = vadd.f32 %v349, %v455
        %460 = vst [vmem:[#allocation2] sm:$0xff] %v458
        %461 = vst [vmem:[#allocation2 + $0x8] sm:$0xff] %v459
        // Predicated region
        $region78: #{forward.14} parent=68 // pred_check
          %p462 = pneg %p342
        $region79: #{forward.14} parent=68 // pred_check_branch
          %464 = sbr.rel (%p462) target = $region81
        $region80: #{forward.14} parent=68 // pred_region
          %v465 = vld [vmem:[#allocation2] sm:$0xff]
          %v466 = vld [vmem:[#allocation2 + $0x8] sm:$0xff]
          %v467 = vld [vmem:[%s339] sm:$0x1]
          %v469 = vlaneseq
          %v470 = vshrl.u32 %v469, 7
          %v471 = vsub.s32 0, %v470
          %v472 = vrot.slane %v467, %v471
          %v474 = vadd.f32 %v465, %v472
          %v475 = vadd.f32 %v466, %v472
          %476 = vst [vmem:[%s326] sm:$0xff] %v474
          %477 = vst [vmem:[%s326 + $0x8] sm:$0xff] %v475
        $region81: #{forward.14} parent=68 // pred_fallthru
          _
        %s478 = sand.u32 %s125, 1
        %s479 = sand.u32 %s125, 1
        %s480 = smul.addr %s479, 16
        %s481 = scalar_lea.vmem [#allocation4], %s480
        // Predicated region
        $region82: #{forward.14} parent=68 // pred_check
          %p482 = pneg %p135
        $region83: #{forward.14} parent=68 // pred_check_branch
          %484 = sbr.rel (%p482) target = $region85
        $region84: #{forward.14} parent=68 // pred_region
          %s485 = smul.u32 2, %s19
          %s486 = smul.addr %s485, 3
          %s487 = sadd.s32 %s20, %s486
          %s488 = smul.addr %s487, 8
          %s489 = scalar_lea.vmem %s3, %s488
          // Predicated region
          $region86: #{forward.14} parent=84 // pred_check
            _
          $region87: #{forward.14} parent=84 // pred_check_branch
            %491 = sbr.rel (0) target = $region89
          $region88: #{forward.14} parent=84 // pred_region
            // Predicated region
            $region90: #{forward.14} parent=88 // pred_check
              _
            $region91: #{forward.14} parent=88 // pred_check_branch
              %493 = sbr.rel (0) target = $region93
            $region92: #{forward.14} parent=88 // pred_region
              // Predicated region
              $region105: #{forward.14} parent=92 // pred_check
                _
              $region106: #{forward.14} parent=92 // pred_check_branch
                %510 = sbr.rel (0) target = $region108
              $region107: #{forward.14} parent=92 // pred_region
                loop: start=0, step=1, limit=1
                $region109: #{forward.14} parent=107 // loop_pre_header
                  _
                $region110: #{forward.14} parent=107 // loop_header
                  %s512 = sphi 0, %s516
                  %p513 = scmp.ge.s32.totalorder %s512, 1
                  %s517 = sphi %s481, %s481
                  %s518 = sphi %s489, %s489
                $region111: #{forward.14} parent=107 // loop_header_branch
                  %515 = sbr.rel (%p513) target = $region115
                $region112: #{forward.14} parent=107 // loop_body
                  %v519 = vld [vmem:[%s517] sm:$0xff]
                  %520 = vst [vmem:[%s518] sm:$0xff] %v519
                  %v521 = vld [vmem:[%s517 + $0x8] sm:$0xff]
                  %522 = vst [vmem:[%s518 + $0x18] sm:$0xff] %v521
                $region113: #{forward.14} parent=107 // loop_footer
                  %s516 = sadd.s32 1, %s512
                $region114: #{forward.14} parent=107 // loop_footer_branch
                  %511 = sbr.rel target = $region110
                $region115: #{forward.14} parent=107 // loop_exit
                  _
              $region108: #{forward.14} parent=92 // pred_fallthru
                _
              // Predicated region
              $region116: #{forward.14} parent=92 // pred_check
                _
              $region117: #{forward.14} parent=92 // pred_check_branch
                %524 = sbr.rel target = $region119
              $region118: #{forward.14} parent=92 // pred_region
                _
              $region119: #{forward.14} parent=92 // pred_fallthru
                _
            $region93: #{forward.14} parent=88 // pred_fallthru
              _
            // Predicated region
            $region94: #{forward.14} parent=88 // pred_check
              _
            $region95: #{forward.14} parent=88 // pred_check_branch
              %495 = sbr.rel target = $region97
            $region96: #{forward.14} parent=88 // pred_region
              loop: start=0, step=1, limit=1
              $region98: #{forward.14} parent=96 // loop_pre_header
                _
              $region99: #{forward.14} parent=96 // loop_header
                %s498 = sphi 0, %s502
                %p499 = scmp.ge.s32.totalorder %s498, 1
                %s503 = sphi %s481, %s481
                %s504 = sphi %s489, %s489
              $region100: #{forward.14} parent=96 // loop_header_branch
                %501 = sbr.rel (%p499) target = $region104
              $region101: #{forward.14} parent=96 // loop_body
                %v505 = vld [vmem:[%s503] sm:$0xff]
                %506 = vst [vmem:[%s504] sm:$0xff] %v505
                %v507 = vld [vmem:[%s503 + $0x8] sm:$0xff]
                %508 = vst [vmem:[%s504 + $0x18] sm:$0xff] %v507
              $region102: #{forward.14} parent=96 // loop_footer
                %s502 = sadd.s32 1, %s498
              $region103: #{forward.14} parent=96 // loop_footer_branch
                %497 = sbr.rel target = $region99
              $region104: #{forward.14} parent=96 // loop_exit
                _
            $region97: #{forward.14} parent=88 // pred_fallthru
              _
          $region89: #{forward.14} parent=84 // pred_fallthru
            _
          %525 = vnop
        $region85: #{forward.14} parent=68 // pred_fallthru
          _
      $region69: #{forward.14} parent=5 // pred_fallthru
        _
      %p526 = scmp.le.s32.totalorder 2, %s9
      // Predicated region
      $region120: #{forward.14} parent=5 // pred_check
        %p527 = pneg %p526
      $region121: #{forward.14} parent=5 // pred_check_branch
        %529 = sbr.rel (%p527) target = $region123
      $region122: #{forward.14} parent=5 // pred_region
        %s530 = ssub.s32 %s9, 2
        // Predicated region
        $region124: #{forward.14} parent=122 // pred_check
          %p531 = pneg %p141
        $region125: #{forward.14} parent=122 // pred_check_branch
          %533 = sbr.rel (%p531) target = $region127
        $region126: #{forward.14} parent=122 // pred_region
          %s534 = sand.u32 %s126, 1
          %s535 = sand.u32 %s126, 1
          %s536 = smul.addr %s535, 16
          %s537 = scalar_lea.vmem [#allocation4], %s536
        $region127: #{forward.14} parent=122 // pred_fallthru
          _
      $region123: #{forward.14} parent=5 // pred_fallthru
        _
    $region6: #{forward.14} parent=1 // loop_footer
      %s13 = sadd.s32 1, %s9
    $region7: #{forward.14} parent=1 // loop_footer_branch
      %8 = sbr.rel target = $region3
    $region8: #{forward.14} parent=1 // loop_exit
      _

// kernel: forward.16
$region0: #{forward.16}
  #allocation0 [shape = 'u32[]', space=smem, size = 0x4, offset = 0x4, fixed_abs, tag = 'smem constant byte address 0x4 - core index']
  #allocation1 [shape = 'u32[144,128]{1,0:T(1,128)}', space=vmem, size = 0x12000, scoped, tag = 'internal scratch']
  #allocation2 [shape = 'f32[16,128]{1,0:T(8,128)}', space=vmem, size = 0x2000, scoped, tag = 'scratch operand']
  %s0 = inlined_call_operand.vmem [shape: f32[16,128], index: 0, kind: input, shape index: {}]
  %s1 = inlined_call_operand.vmem [shape: bf16[128,128], index: 1, kind: input, shape index: {}]
  %s2 = inlined_call_operand.vmem [shape: f32[1,128], index: 2, kind: input, shape index: {}, may-alias: {2,5}]
  %s3 = inlined_call_operand.vmem [shape: f32[16,128], index: 3, kind: input, shape index: {}]
  %s4 = inlined_call_operand.vmem [shape: f32[1,128], index: 4, kind: input, shape index: {}]
  %s5 = inlined_call_operand.vmem [shape: f32[1,128], index: 5, kind: input, shape index: {}, may-alias: {2,5}]
  %s6 = inlined_call_operand.vmem [shape: f32[16,128], index: 6, kind: output, shape index: {}]
  %s7 = sld [smem:[#allocation0]]
  $region42: #{forward.16} parent=0
    _
  %s9 = ssub.s32 1, %s7
  %s10 = scalar_select 0, %s9, %s7
  // Predicated region
  $region2: #{forward.16} parent=0 // pred_check
    _
  $region3: #{forward.16} parent=0 // pred_check_branch
    %12 = sbr.rel (0) target = $region5
  $region4: #{forward.16} parent=0 // pred_region
    _
  $region5: #{forward.16} parent=0 // pred_fallthru
    _
  // Predicated region
  $region6: #{forward.16} parent=0 // pred_check
    _
  $region7: #{forward.16} parent=0 // pred_check_branch
    %14 = sbr.rel (0) target = $region9
  $region8: #{forward.16} parent=0 // pred_region
    _
  $region9: #{forward.16} parent=0 // pred_fallthru
    _
  // Predicated region
  $region10: #{forward.16} parent=0 // pred_check
    _
  $region11: #{forward.16} parent=0 // pred_check_branch
    %16 = sbr.rel (0) target = $region13
  $region12: #{forward.16} parent=0 // pred_region
    _
  $region13: #{forward.16} parent=0 // pred_fallthru
    _
  // Predicated region
  $region14: #{forward.16} parent=0 // pred_check
    _
  $region15: #{forward.16} parent=0 // pred_check_branch
    %18 = sbr.rel (0) target = $region17
  $region16: #{forward.16} parent=0 // pred_region
    _
  $region17: #{forward.16} parent=0 // pred_fallthru
    _
  // Predicated region
  $region18: #{forward.16} parent=0 // pred_check
    _
  $region19: #{forward.16} parent=0 // pred_check_branch
    %20 = sbr.rel (0) target = $region21
  $region20: #{forward.16} parent=0 // pred_region
    _
  $region21: #{forward.16} parent=0 // pred_fallthru
    _
  // Predicated region
  $region22: #{forward.16} parent=0 // pred_check
    _
  $region23: #{forward.16} parent=0 // pred_check_branch
    %22 = sbr.rel (0) target = $region25
  $region24: #{forward.16} parent=0 // pred_region
    _
  $region25: #{forward.16} parent=0 // pred_fallthru
    _
  %p24 = scmp.eq.s32.totalorder 0, 0
  // Predicated region
  $region26: #{forward.16} parent=0 // pred_check
    %p25 = pneg %p24
  $region27: #{forward.16} parent=0 // pred_check_branch
    %27 = sbr.rel (%p25) target = $region29
  $region28: #{forward.16} parent=0 // pred_region
    %28 = vst [vmem:[#allocation2] sm:$0xff] 0.0
    %29 = vst [vmem:[#allocation2 + $0x8] sm:$0xff] 0.0
  $region29: #{forward.16} parent=0 // pred_fallthru
    _
  %v30 = vld [vmem:[#allocation2] sm:$0xff]
  %v31 = vld [vmem:[#allocation2 + $0x8] sm:$0xff]
  %v32 = vld [vmem:[%s0] sm:$0xff]
  %v33 = vld [vmem:[%s0 + $0x8] sm:$0xff]
  %v34 = vpack.c.bf16 %v33, %v32
  %v35 = vld [vmem:[%s1] sm:$0xf]
  %v36 = vld [vmem:[%s1 + $0x4] sm:$0xf]
  %v37 = vld [vmem:[%s1 + $0x8] sm:$0xf]
  %v38 = vld [vmem:[%s1 + $0xc] sm:$0xf]
  %v39 = vld [vmem:[%s1 + $0x10] sm:$0xf]
  %v40 = vld [vmem:[%s1 + $0x14] sm:$0xf]
  %v41 = vld [vmem:[%s1 + $0x18] sm:$0xf]
  %v42 = vld [vmem:[%s1 + $0x1c] sm:$0xf]
  %v43 = vld [vmem:[%s1 + $0x20] sm:$0xf]
  %v44 = vld [vmem:[%s1 + $0x24] sm:$0xf]
  %v45 = vld [vmem:[%s1 + $0x28] sm:$0xf]
  %v46 = vld [vmem:[%s1 + $0x2c] sm:$0xf]
  %v47 = vld [vmem:[%s1 + $0x30] sm:$0xf]
  %v48 = vld [vmem:[%s1 + $0x34] sm:$0xf]
  %v49 = vld [vmem:[%s1 + $0x38] sm:$0xf]
  %v50 = vld [vmem:[%s1 + $0x3c] sm:$0xf]
  %v67 = vunpack.c.l.b16 %v35
  %v68 = vunpack.c.l.b16 %v36
  %v69 = vunpack.c.l.b16 %v37
  %v70 = vunpack.c.l.b16 %v38
  %v71 = vunpack.c.l.b16 %v39
  %v72 = vunpack.c.l.b16 %v40
  %v73 = vunpack.c.l.b16 %v41
  %v74 = vunpack.c.l.b16 %v42
  %v75 = vunpack.c.l.b16 %v43
  %v76 = vunpack.c.l.b16 %v44
  %v77 = vunpack.c.l.b16 %v45
  %v78 = vunpack.c.l.b16 %v46
  %v79 = vunpack.c.l.b16 %v47
  %v80 = vunpack.c.l.b16 %v48
  %v81 = vunpack.c.l.b16 %v49
  %v82 = vunpack.c.l.b16 %v50
  %v83 = vpack.c.b16 %v68, %v67
  %v84 = vpack.c.b16 %v70, %v69
  %v85 = vpack.c.b16 %v72, %v71
  %v86 = vpack.c.b16 %v74, %v73
  %v87 = vpack.c.b16 %v76, %v75
  %v88 = vpack.c.b16 %v78, %v77
  %v89 = vpack.c.b16 %v80, %v79
  %v90 = vpack.c.b16 %v82, %v81
  %99 = vmatprep.subr.bf16.mxu0 0
  %100 = vmatpush1.bf16.msra.mxu0 %v83
  %101 = vmatprep.subr.bf16.mxu0 0
  %102 = vmatpush1.bf16.msra.mxu0 %v84
  %103 = vmatprep.subr.bf16.mxu0 0
  %104 = vmatpush1.bf16.msra.mxu0 %v85
  %105 = vmatprep.subr.bf16.mxu0 0
  %106 = vmatpush1.bf16.msra.mxu0 %v86
  %107 = vmatprep.subr.bf16.mxu0 0
  %108 = vmatpush1.bf16.msra.mxu0 %v87
  %109 = vmatprep.subr.bf16.mxu0 0
  %110 = vmatpush1.bf16.msra.mxu0 %v88
  %111 = vmatprep.subr.bf16.mxu0 0
  %112 = vmatpush1.bf16.msra.mxu0 %v89
  %113 = vmatprep.subr.bf16.mxu0 0
  %114 = vmatpush1.bf16.msra.mxu0 %v90
  %115 = vmatprep.subr.bf16.mxu0 0
  %116 = vmatpush1.bf16.msra.mxu0 0
  %117 = vmatprep.subr.bf16.mxu0 0
  %118 = vmatpush1.bf16.msra.mxu0 0
  %119 = vmatprep.subr.bf16.mxu0 0
  %120 = vmatpush1.bf16.msra.mxu0 0
  %121 = vmatprep.subr.bf16.mxu0 0
  %122 = vmatpush1.bf16.msra.mxu0 0
  %123 = vmatprep.subr.bf16.mxu0 0
  %124 = vmatpush1.bf16.msra.mxu0 0
  %125 = vmatprep.subr.bf16.mxu0 0
  %126 = vmatpush1.bf16.msra.mxu0 0
  %127 = vmatprep.subr.bf16.mxu0 0
  %128 = vmatpush1.bf16.msra.mxu0 0
  %129 = vmatprep.subr.bf16.mxu0 0
  %130 = vmatpush1.bf16.msra.mxu0 0
  %131 = vmatprep.mubr.bf16.mxu0 0
  %132 = vmatmul.mubr.bf16.gmra.mrb[0].mxu0 %v34
  %v133 = vpop.f32.mrb[0].mxu0
  %v134 = vadd.f32 0.0, %v133
  %v135 = vpop.f32.mrb[0].mxu0
  %v136 = vpop.f32.mrb[0].mxu0
  %v137 = vadd.f32 0.0, %v136
  %v138 = vpop.f32.mrb[0].mxu0
  %139 = vdwg.mxu0
  %v140 = vadd.f32 %v30, %v134
  %v141 = vadd.f32 %v31, %v137
  %142 = vst [vmem:[#allocation2] sm:$0xff] %v140
  %143 = vst [vmem:[#allocation2 + $0x8] sm:$0xff] %v141
  // Predicated region
  $region30: #{forward.16} parent=0 // pred_check
    %p144 = pneg %p24
  $region31: #{forward.16} parent=0 // pred_check_branch
    %146 = sbr.rel (%p144) target = $region33
  $region32: #{forward.16} parent=0 // pred_region
    %v147 = vld [vmem:[%s3] sm:$0xff]
    %v148 = vld [vmem:[%s3 + $0x8] sm:$0xff]
    %v149 = vmul.f32 %v147, 1.4142135
    %v150 = vmul.f32 %v148, 1.4142135
    %v151 = vld [vmem:[#allocation2] sm:$0xff]
    %v152 = vld [vmem:[#allocation2 + $0x8] sm:$0xff]
    %v153 = vadd.f32 %v149, %v151
    %v154 = vadd.f32 %v150, %v152
    %v155 = vld [vmem:[%s2] sm:$0x1]
    %v157 = vlaneseq
    %v158 = vshrl.u32 %v157, 7
    %v159 = vsub.s32 0, %v158
    %v160 = vrot.slane %v155, %v159
    %v162 = vadd.f32 %v153, %v160
    %v163 = vadd.f32 %v154, %v160
    %164 = vadd.xlane.f32.xlu0 %v162
    %v165 = vpop.xlane.xlu0 %164
    %166 = vadd.xlane.f32.xlu0 %v163
    %v167 = vpop.xlane.xlu0 %166
    %v168 = vrcp.pop 128.0
    %v169 = vmul.f32 %v165, %v168
    %v170 = vmul.f32 %v167, %v168
    %v171 = vsub.f32 %v162, %v169
    %v172 = vsub.f32 %v163, %v170
    %v173 = vmul.f32 %v171, %v171
    %v174 = vmul.f32 %v172, %v172
    %175 = vadd.xlane.f32.xlu0 %v173
    %v176 = vpop.xlane.xlu0 %175
    %177 = vadd.xlane.f32.xlu0 %v174
    %v178 = vpop.xlane.xlu0 %177
    %v179 = vmul.f32 %v176, %v168
    %v180 = vmul.f32 %v178, %v168
    %v181 = vadd.f32 %v179, 1e-05
    %v182 = vadd.f32 %v180, 1e-05
    %v183 = vrsqrt.pop %v181
    %v184 = vrsqrt.pop %v182
    %v185 = vmul.f32 %v171, %v183
    %v186 = vmul.f32 %v172, %v184
    %v187 = vld [vmem:[%s4] sm:$0x1]
    %v189 = vlaneseq
    %v190 = vshrl.u32 %v189, 7
    %v191 = vsub.s32 0, %v190
    %v192 = vrot.slane %v187, %v191
    %v194 = vmul.f32 %v185, %v192
    %v195 = vmul.f32 %v186, %v192
    %v196 = vld [vmem:[%s5] sm:$0x1]
    %v198 = vlaneseq
    %v199 = vshrl.u32 %v198, 7
    %v200 = vsub.s32 0, %v199
    %v201 = vrot.slane %v196, %v200
    %v203 = vadd.f32 %v194, %v201
    %v204 = vadd.f32 %v195, %v201
    %205 = vst [vmem:[%s6] sm:$0xff] %v203
    %206 = vst [vmem:[%s6 + $0x8] sm:$0xff] %v204
  $region33: #{forward.16} parent=0 // pred_fallthru
    _
  // Predicated region
  $region34: #{forward.16} parent=0 // pred_check
    _
  $region35: #{forward.16} parent=0 // pred_check_branch
    %208 = sbr.rel (0) target = $region37
  $region36: #{forward.16} parent=0 // pred_region
    _
  $region37: #{forward.16} parent=0 // pred_fallthru
    _
  // Predicated region
  $region38: #{forward.16} parent=0 // pred_check
    _
  $region39: #{forward.16} parent=0 // pred_check_branch
    %210 = sbr.rel (0) target = $region41
  $region40: #{forward.16} parent=0 // pred_region
    _
  $region41: #{forward.16} parent=0 // pred_fallthru
    _

// kernel: forward.15
$region0: #{forward.15}
  #allocation0 [shape = 'u32[]', space=smem, size = 0x4, offset = 0x4, fixed_abs, tag = 'smem constant byte address 0x4 - core index']
  #allocation1 [shape = 'u32[144,128]{1,0:T(1,128)}', space=vmem, size = 0x12000, scoped, tag = 'internal scratch']
  #allocation2 [shape = 'f32[4,8,1]{2,1,0:T(8,128)}', space=vmem, size = 0x4000, scoped, tag = 'scratch operand']
  #allocation3 [shape = 'f32[4,8,1]{2,1,0:T(8,128)}', space=vmem, size = 0x4000, scoped, tag = 'scratch operand']
  #allocation4 [shape = 'f32[4,8,32]{2,1,0:T(8,128)}', space=vmem, size = 0x4000, scoped, tag = 'scratch operand']
  %s0 = inlined_call_operand.vmem [shape: f32[2,8,384], index: 0, kind: input, shape index: {}, may-alias: {0,1,2}]
  %s1 = inlined_call_operand.vmem [shape: f32[2,8,384], index: 1, kind: input, shape index: {}, may-alias: {0,1,2}]
  %s2 = inlined_call_operand.vmem [shape: f32[2,8,384], index: 2, kind: input, shape index: {}, may-alias: {0,1,2}]
  %s3 = inlined_call_operand.vmem [shape: f32[2,1,8], index: 3, kind: input, shape index: {}]
  %s4 = inlined_call_operand.vmem [shape: f32[2,8,128], index: 4, kind: output, shape index: {}]
  %s5 = sld [smem:[#allocation0]]
  $region57: #{forward.15} parent=0
    _
  %s7 = ssub.s32 1, %s5
  %s8 = scalar_select 0, %s7, %s5
  loop: start=0, step=1, limit=4
  $region2: #{forward.15} parent=0 // loop_pre_header
    _
  $region3: #{forward.15} parent=0 // loop_header
    %s10 = sphi 0, %s14
    %p11 = scmp.ge.s32.totalorder %s10, 4
    %s17 = sphi 0, %s36
    %s18 = sphi 0, %s32
    %s19 = sphi 0, %s28
    %s20 = sphi 0, %s17
    %s21 = sphi 0, %s18
    %s22 = sphi 0, %s19
    %s23 = sphi 0, %s20
    %s24 = sphi 0, %s21
    %s25 = sphi 0, %s22
    %s41 = sphi 0, %s43
    %s44 = sphi 0, %s41
    %s45 = sphi 0, %s44
    %s61 = sphi 0, %s45
    %s69 = sphi 0, %s71
    %s72 = sphi 0, %s69
    %s73 = sphi 0, %s72
    %s89 = sphi 0, %s73
    %s97 = sphi 0, %s99
    %s100 = sphi 0, %s97
    %s101 = sphi 0, %s100
    %s117 = sphi 0, %s101
    %s125 = sphi 0, %s127
    %s128 = sphi 0, %s125
    %s129 = sphi 0, %s128
    %s145 = sphi 0, %s129
    %s153 = sphi 0, %s155
    %s156 = sphi 0, %s153
    %s157 = sphi 0, %s156
    %s173 = sphi 0, %s157
  $region4: #{forward.15} parent=0 // loop_header_branch
    %13 = sbr.rel (%p11) target = $region8
  $region5: #{forward.15} parent=0 // loop_body
    %s15 = ssub.s32 %s10, 1
    %s16 = ssub.s32 %s10, 2
    %s26 = sadd.s32 1, %s19
    %p27 = scmp.ge.s32.totalorder %s26, 1
    %s28 = scalar_select %p27, 0, %s26
    %s29 = sadd.s32 1, %s18
    %s30 = scalar_select %p27, %s29, %s18
    %p31 = scmp.ge.s32.totalorder %s30, 1
    %s32 = scalar_select %p31, 0, %s30
    %s33 = sadd.s32 1, %s17
    %s34 = scalar_select %p31, %s33, %s17
    %p35 = scmp.ge.s32.totalorder %s34, 2
    %s36 = scalar_select %p35, 0, %s34
    %s37 = ssub.s32 %s17, %s36
    %s38 = ssub.s32 %s18, %s32
    %s39 = sor.u32 %s37, %s38
    %p40 = scmp.eq.s32.totalorder %s39, 0
    %s42 = sadd.s32 %s41, 1
    %s43 = scalar_select %p40, %s41, %s42
    %p46 = pneg %p40
    %p47 = scmp.eq.s32.totalorder %s10, 1
    %p48 = por %p46, %p47
    %p49 = scmp.ne.s32.totalorder %s41, %s44
    %p50 = scmp.eq.s32.totalorder %s10, 0
    %p51 = por %p49, %p50
    %p52 = scmp.ne.s32.totalorder %s41, %s44
    %p53 = scmp.eq.s32.totalorder %s15, 1
    %p54 = por %p52, %p53
    %p55 = scmp.ne.s32.totalorder %s44, %s45
    %p56 = scmp.eq.s32.totalorder %s15, 0
    %p57 = por %p55, %p56
    %p58 = scmp.ne.s32.totalorder %s44, %s45
    %p59 = scmp.eq.s32.totalorder %s16, 1
    %p60 = por %p58, %p59
    %p62 = scmp.ne.s32.totalorder %s45, %s61
    %p63 = scmp.eq.s32.totalorder %s16, 0
    %p64 = por %p62, %p63
    %s65 = ssub.s32 %s17, %s36
    %s66 = ssub.s32 %s19, %s28
    %s67 = sor.u32 %s65, %s66
    %p68 = scmp.eq.s32.totalorder %s67, 0
    %s70 = sadd.s32 %s69, 1
    %s71 = scalar_select %p68, %s69, %s70
    %p74 = pneg %p68
    %p75 = scmp.eq.s32.totalorder %s10, 1
    %p76 = por %p74, %p75
    %p77 = scmp.ne.s32.totalorder %s69, %s72
    %p78 = scmp.eq.s32.totalorder %s10, 0
    %p79 = por %p77, %p78
    %p80 = scmp.ne.s32.totalorder %s69, %s72
    %p81 = scmp.eq.s32.totalorder %s15, 1
    %p82 = por %p80, %p81
    %p83 = scmp.ne.s32.totalorder %s72, %s73
    %p84 = scmp.eq.s32.totalorder %s15, 0
    %p85 = por %p83, %p84
    %p86 = scmp.ne.s32.totalorder %s72, %s73
    %p87 = scmp.eq.s32.totalorder %s16, 1
    %p88 = por %p86, %p87
    %p90 = scmp.ne.s32.totalorder %s73, %s89
    %p91 = scmp.eq.s32.totalorder %s16, 0
    %p92 = por %p90, %p91
    %s93 = ssub.s32 %s17, %s36
    %s94 = ssub.s32 %s19, %s28
    %s95 = sor.u32 %s93, %s94
    %p96 = scmp.eq.s32.totalorder %s95, 0
    %s98 = sadd.s32 %s97, 1
    %s99 = scalar_select %p96, %s97, %s98
    %p102 = pneg %p96
    %p103 = scmp.eq.s32.totalorder %s10, 1
    %p104 = por %p102, %p103
    %p105 = scmp.ne.s32.totalorder %s97, %s100
    %p106 = scmp.eq.s32.totalorder %s10, 0
    %p107 = por %p105, %p106
    %p108 = scmp.ne.s32.totalorder %s97, %s100
    %p109 = scmp.eq.s32.totalorder %s15, 1
    %p110 = por %p108, %p109
    %p111 = scmp.ne.s32.totalorder %s100, %s101
    %p112 = scmp.eq.s32.totalorder %s15, 0
    %p113 = por %p111, %p112
    %p114 = scmp.ne.s32.totalorder %s100, %s101
    %p115 = scmp.eq.s32.totalorder %s16, 1
    %p116 = por %p114, %p115
    %p118 = scmp.ne.s32.totalorder %s101, %s117
    %p119 = scmp.eq.s32.totalorder %s16, 0
    %p120 = por %p118, %p119
    %s121 = ssub.s32 %s17, %s36
    %s122 = ssub.s32 %s19, %s28
    %s123 = sor.u32 %s121, %s122
    %p124 = scmp.eq.s32.totalorder %s123, 0
    %s126 = sadd.s32 %s125, 1
    %s127 = scalar_select %p124, %s125, %s126
    %p130 = pneg %p124
    %p131 = scmp.eq.s32.totalorder %s10, 1
    %p132 = por %p130, %p131
    %p133 = scmp.ne.s32.totalorder %s125, %s128
    %p134 = scmp.eq.s32.totalorder %s10, 0
    %p135 = por %p133, %p134
    %p136 = scmp.ne.s32.totalorder %s125, %s128
    %p137 = scmp.eq.s32.totalorder %s15, 1
    %p138 = por %p136, %p137
    %p139 = scmp.ne.s32.totalorder %s128, %s129
    %p140 = scmp.eq.s32.totalorder %s15, 0
    %p141 = por %p139, %p140
    %p142 = scmp.ne.s32.totalorder %s128, %s129
    %p143 = scmp.eq.s32.totalorder %s16, 1
    %p144 = por %p142, %p143
    %p146 = scmp.ne.s32.totalorder %s129, %s145
    %p147 = scmp.eq.s32.totalorder %s16, 0
    %p148 = por %p146, %p147
    %s149 = ssub.s32 %s17, %s36
    %s150 = ssub.s32 %s18, %s32
    %s151 = sor.u32 %s149, %s150
    %p152 = scmp.eq.s32.totalorder %s151, 0
    %s154 = sadd.s32 %s153, 1
    %s155 = scalar_select %p152, %s153, %s154
    %p158 = pneg %p152
    %p159 = scmp.eq.s32.totalorder %s10, 1
    %p160 = por %p158, %p159
    %p161 = scmp.ne.s32.totalorder %s153, %s156
    %p162 = scmp.eq.s32.totalorder %s10, 0
    %p163 = por %p161, %p162
    %p164 = scmp.ne.s32.totalorder %s153, %s156
    %p165 = scmp.eq.s32.totalorder %s15, 1
    %p166 = por %p164, %p165
    %p167 = scmp.ne.s32.totalorder %s156, %s157
    %p168 = scmp.eq.s32.totalorder %s15, 0
    %p169 = por %p167, %p168
    %p170 = scmp.ne.s32.totalorder %s156, %s157
    %p171 = scmp.eq.s32.totalorder %s16, 1
    %p172 = por %p170, %p171
    %p174 = scmp.ne.s32.totalorder %s157, %s173
    %p175 = scmp.eq.s32.totalorder %s16, 0
    %p176 = por %p174, %p175
    %p177 = scmp.le.s32.totalorder 1, %s10
    %p178 = scmp.lt.s32.totalorder %s10, 3
    %p179 = pnand %p177, %p178
    %p180 = pneg %p179
    // Predicated region
    $region9: #{forward.15} parent=5 // pred_check
      _
    $region10: #{forward.15} parent=5 // pred_check_branch
      %182 = sbr.rel (%p179) target = $region12
    $region11: #{forward.15} parent=5 // pred_region
      %s183 = ssub.s32 %s10, 1
    $region12: #{forward.15} parent=5 // pred_fallthru
      _
    %p184 = scmp.lt.s32.totalorder %s10, 2
    // Predicated region
    $region13: #{forward.15} parent=5 // pred_check
      %p185 = pneg %p184
    $region14: #{forward.15} parent=5 // pred_check_branch
      %187 = sbr.rel (%p185) target = $region16
    $region15: #{forward.15} parent=5 // pred_region
      // Predicated region
      $region17: #{forward.15} parent=15 // pred_check
        %p188 = pneg %p51
      $region18: #{forward.15} parent=15 // pred_check_branch
        %190 = sbr.rel (%p188) target = $region20
      $region19: #{forward.15} parent=15 // pred_region
        %p191 = scmp.lt.s32.totalorder %s17, 1
        %s192 = scalar_select %p191, %s17, 1
        %p193 = scmp.lt.s32.totalorder %s18, 0
        %s194 = scalar_select %p193, %s18, 0
        %s195 = smul.addr %s194, 3
        %s196 = smul.addr %s192, 3
        %s197 = sadd.s32 %s195, %s196
        %s198 = smul.addr %s197, 8
        %s199 = scalar_lea.vmem %s0, %s198
      $region20: #{forward.15} parent=15 // pred_fallthru
        _
      // Predicated region
      $region21: #{forward.15} parent=15 // pred_check
        %p200 = pneg %p79
      $region22: #{forward.15} parent=15 // pred_check_branch
        %202 = sbr.rel (%p200) target = $region24
      $region23: #{forward.15} parent=15 // pred_region
        %p203 = scmp.lt.s32.totalorder %s17, 1
        %s204 = scalar_select %p203, %s17, 1
        %p205 = scmp.lt.s32.totalorder %s19, 0
        %s206 = scalar_select %p205, %s19, 0
        %s207 = smul.addr %s206, 3
        %s208 = sadd.s32 1, %s207
        %s209 = smul.addr %s204, 3
        %s210 = sadd.s32 %s208, %s209
        %s211 = smul.addr %s210, 8
        %s212 = scalar_lea.vmem %s1, %s211
      $region24: #{forward.15} parent=15 // pred_fallthru
        _
      // Predicated region
      $region25: #{forward.15} parent=15 // pred_check
        %p213 = pneg %p107
      $region26: #{forward.15} parent=15 // pred_check_branch
        %215 = sbr.rel (%p213) target = $region28
      $region27: #{forward.15} parent=15 // pred_region
        %p216 = scmp.lt.s32.totalorder %s17, 1
        %s217 = scalar_select %p216, %s17, 1
        %p218 = scmp.lt.s32.totalorder %s19, 0
        %s219 = scalar_select %p218, %s19, 0
        %s220 = smul.addr %s219, 3
        %s221 = sadd.s32 2, %s220
        %s222 = smul.addr %s217, 3
        %s223 = sadd.s32 %s221, %s222
        %s224 = smul.addr %s223, 8
        %s225 = scalar_lea.vmem %s2, %s224
      $region28: #{forward.15} parent=15 // pred_fallthru
        _
      // Predicated region
      $region29: #{forward.15} parent=15 // pred_check
        %p226 = pneg %p135
      $region30: #{forward.15} parent=15 // pred_check_branch
        %228 = sbr.rel (%p226) target = $region32
      $region31: #{forward.15} parent=15 // pred_region
        %p229 = scmp.lt.s32.totalorder %s17, 1
        %s230 = scalar_select %p229, %s17, 1
        %p231 = scmp.lt.s32.totalorder %s19, 0
        %s232 = scalar_select %p231, %s19, 0
        %s233 = sadd.s32 %s232, %s230
        %s234 = scalar_lea.vmem %s3, %s233
      $region32: #{forward.15} parent=15 // pred_fallthru
        _
    $region16: #{forward.15} parent=5 // pred_fallthru
      _
    %p235 = scmp.le.s32.totalorder 1, %s10
    %p236 = scmp.lt.s32.totalorder %s10, 3
    %p237 = pnand %p235, %p236
    %p238 = pneg %p237
    // Predicated region
    $region33: #{forward.15} parent=5 // pred_check
      _
    $region34: #{forward.15} parent=5 // pred_check_branch
      %240 = sbr.rel (%p237) target = $region36
    $region35: #{forward.15} parent=5 // pred_region
      %s241 = ssub.s32 %s10, 1
      %p242 = scmp.lt.s32.totalorder %s20, 1
      %s243 = scalar_select %p242, %s20, 1
      %p244 = scmp.lt.s32.totalorder %s21, 0
      %s245 = scalar_select %p244, %s21, 0
      %s246 = smul.addr %s245, 3
      %s247 = smul.addr %s243, 3
      %s248 = sadd.s32 %s246, %s247
      %s249 = smul.addr %s248, 8
      %s250 = scalar_lea.vmem %s0, %s249
      %p251 = pneg %p57
      %p252 = pneg %p54
      %p253 = scmp.lt.s32.totalorder %s20, 1
      %s254 = scalar_select %p253, %s20, 1
      %p255 = scmp.lt.s32.totalorder %s22, 0
      %s256 = scalar_select %p255, %s22, 0
      %s257 = smul.addr %s256, 3
      %s258 = sadd.s32 1, %s257
      %s259 = smul.addr %s254, 3
      %s260 = sadd.s32 %s258, %s259
      %s261 = smul.addr %s260, 8
      %s262 = scalar_lea.vmem %s1, %s261
      %p263 = pneg %p85
      %p264 = pneg %p82
      %p265 = scmp.lt.s32.totalorder %s20, 1
      %s266 = scalar_select %p265, %s20, 1
      %p267 = scmp.lt.s32.totalorder %s22, 0
      %s268 = scalar_select %p267, %s22, 0
      %s269 = smul.addr %s268, 3
      %s270 = sadd.s32 2, %s269
      %s271 = smul.addr %s266, 3
      %s272 = sadd.s32 %s270, %s271
      %s273 = smul.addr %s272, 8
      %s274 = scalar_lea.vmem %s2, %s273
      %p275 = pneg %p113
      %p276 = pneg %p110
      %p277 = scmp.lt.s32.totalorder %s20, 1
      %s278 = scalar_select %p277, %s20, 1
      %p279 = scmp.lt.s32.totalorder %s22, 0
      %s280 = scalar_select %p279, %s22, 0
      %s281 = sadd.s32 %s280, %s278
      %s282 = scalar_lea.vmem %s3, %s281
      %p283 = pneg %p141
      %p284 = pneg %p138
      %p285 = pneg %p169
      %p286 = pneg %p166
      %p287 = scmp.lt.s32.totalorder %s20, 1
      %s288 = scalar_select %p287, %s20, 1
      %p289 = scmp.lt.s32.totalorder %s21, 0
      %s290 = scalar_select %p289, %s21, 0
      %s291 = sadd.s32 %s290, %s288
      %s292 = smul.addr %s291, 8
      %s293 = scalar_lea.vmem %s4, %s292
      %p294 = scmp.lt.s32.totalorder %s20, 1
      %s295 = scalar_select %p294, %s20, 1
      %p296 = scmp.lt.s32.totalorder %s21, 0
      %s297 = scalar_select %p296, %s21, 0
      %s298 = smul.addr %s297, 3
      %s299 = smul.addr %s295, 3
      %s300 = sadd.s32 %s298, %s299
      %s301 = smul.addr %s300, 8
      %s302 = scalar_lea.vmem %s0, %s301
      %p303 = scmp.lt.s32.totalorder %s20, 1
      %s304 = scalar_select %p303, %s20, 1
      %p305 = scmp.lt.s32.totalorder %s22, 0
      %s306 = scalar_select %p305, %s22, 0
      %s307 = smul.addr %s306, 3
      %s308 = sadd.s32 1, %s307
      %s309 = smul.addr %s304, 3
      %s310 = sadd.s32 %s308, %s309
      %s311 = smul.addr %s310, 8
      %s312 = scalar_lea.vmem %s1, %s311
      %p313 = scmp.lt.s32.totalorder %s20, 1
      %s314 = scalar_select %p313, %s20, 1
      %p315 = scmp.lt.s32.totalorder %s22, 0
      %s316 = scalar_select %p315, %s22, 0
      %s317 = smul.addr %s316, 3
      %s318 = sadd.s32 2, %s317
      %s319 = smul.addr %s314, 3
      %s320 = sadd.s32 %s318, %s319
      %s321 = smul.addr %s320, 8
      %s322 = scalar_lea.vmem %s2, %s321
      %p323 = scmp.lt.s32.totalorder %s20, 1
      %s324 = scalar_select %p323, %s20, 1
      %p325 = scmp.lt.s32.totalorder %s22, 0
      %s326 = scalar_select %p325, %s22, 0
      %s327 = sadd.s32 %s326, %s324
      %s328 = scalar_lea.vmem %s3, %s327
      %p329 = scmp.lt.s32.totalorder %s20, 1
      %s330 = scalar_select %p329, %s20, 1
      %p331 = scmp.lt.s32.totalorder %s21, 0
      %s332 = scalar_select %p331, %s21, 0
      %s333 = sadd.s32 %s332, %s330
      %s334 = smul.addr %s333, 8
      %s335 = scalar_lea.vmem %s4, %s334
      %p337 = scmp.eq.s32.totalorder %s22, 0
      // Predicated region
      $region37: #{forward.15} parent=35 // pred_check
        %p338 = pneg %p337
      $region38: #{forward.15} parent=35 // pred_check_branch
        %340 = sbr.rel (%p338) target = $region40
      $region39: #{forward.15} parent=35 // pred_region
        %vm341 = vcmask 7168
        %342 = vst.msk [vmem:[#allocation2] sm:$0xff] %vm341, -inf
        %343 = vst.msk [vmem:[#allocation2 + $0x8] sm:$0xff] %vm341, -inf
        %344 = vst.msk [vmem:[#allocation2 + $0x10] sm:$0xff] %vm341, -inf
        %345 = vst.msk [vmem:[#allocation2 + $0x18] sm:$0xff] %vm341, -inf
        %346 = vst.msk [vmem:[#allocation3] sm:$0xff] %vm341, 0.0
        %347 = vst.msk [vmem:[#allocation3 + $0x8] sm:$0xff] %vm341, 0.0
        %348 = vst.msk [vmem:[#allocation3 + $0x10] sm:$0xff] %vm341, 0.0
        %349 = vst.msk [vmem:[#allocation3 + $0x18] sm:$0xff] %vm341, 0.0
        %vm350 = vcmask 261120
        %351 = vst.msk [vmem:[#allocation4] sm:$0xff] %vm350, 0.0
        %352 = vst.msk [vmem:[#allocation4 + $0x8] sm:$0xff] %vm350, 0.0
        %353 = vst.msk [vmem:[#allocation4 + $0x10] sm:$0xff] %vm350, 0.0
        %354 = vst.msk [vmem:[#allocation4 + $0x18] sm:$0xff] %vm350, 0.0
      $region40: #{forward.15} parent=35 // pred_fallthru
        _
      %v355 = vld [vmem:[%s302] sm:$0xff]
      %v356 = vpack.c.bf16 %v355, %v355
      %v357 = vld [vmem:[%s312] sm:$0xff]
      %v358 = vpack.c.bf16 %v357, %v357
      %v359 = vld [vmem:[%s322] sm:$0xff]
      %v360 = vpack.c.bf16 %v359, %v359
      %v361 = vld [vmem:[%s328] sm:$0x1]
      %vm362 = vcmask 261120
      %v364 = vsel %vm362, %v356, 0
      %v367 = vsel %vm362, %v358, 0
      %369 = vmatprep.subr.bf16.mxu0 0
      %370 = vmatpush1.bf16.xpose.msra.mxu0 %v367
      %371 = vmatprep.subr.bf16.mxu0 0
      %372 = vmatpush1.bf16.xpose.msra.mxu0 0
      %373 = vmatprep.subr.bf16.mxu0 0
      %374 = vmatpush1.bf16.xpose.msra.mxu0 0
      %375 = vmatprep.subr.bf16.mxu0 0
      %376 = vmatpush1.bf16.xpose.msra.mxu0 0
      %377 = vmatprep.subr.bf16.mxu0 0
      %378 = vmatpush1.bf16.xpose.msra.mxu0 0
      %379 = vmatprep.subr.bf16.mxu0 0
      %380 = vmatpush1.bf16.xpose.msra.mxu0 0
      %381 = vmatprep.subr.bf16.mxu0 0
      %382 = vmatpush1.bf16.xpose.msra.mxu0 0
      %383 = vmatprep.subr.bf16.mxu0 0
      %384 = vmatpush1.bf16.xpose.msra.mxu0 0
      %385 = vmatprep.subr.bf16.mxu0 0
      %386 = vmatpush1.bf16.xpose.msra.mxu0 0
      %387 = vmatprep.subr.bf16.mxu0 0
      %388 = vmatpush1.bf16.xpose.msra.mxu0 0
      %389 = vmatprep.subr.bf16.mxu0 0
      %390 = vmatpush1.bf16.xpose.msra.mxu0 0
      %391 = vmatprep.subr.bf16.mxu0 0
      %392 = vmatpush1.bf16.xpose.msra.mxu0 0
      %393 = vmatprep.subr.bf16.mxu0 0
      %394 = vmatpush1.bf16.xpose.msra.mxu0 0
      %395 = vmatprep.subr.bf16.mxu0 0
      %396 = vmatpush1.bf16.xpose.msra.mxu0 0
      %397 = vmatprep.subr.bf16.mxu0 0
      %398 = vmatpush1.bf16.xpose.msra.mxu0 0
      %399 = vmatprep.subr.bf16.mxu0 0
      %400 = vmatpush1.bf16.xpose.msra.mxu0 0
      %401 = vmatprep.mubr.bf16.mxu0 0
      %402 = vmatmul.mubr.bf16.gmra.mrb[0].mxu0 %v364
      %v403 = vpop.f32.mrb[0].mxu0
      %v404 = vadd.f32 0.0, %v403
      %v405 = vpop.f32.mrb[0].mxu0
      %v406 = vpop.f32.mrb[0].mxu0
      %v407 = vpop.f32.mrb[0].mxu0
      %408 = vdwg.mxu0
      %v409 = vmul.f32 %v404, 0.17677669
      %v411 = vlaneseq
      %v412 = vshrl.u32 %v411, 7
      %v413 = vsub.s32 0, %v412
      %v414 = vrot.slane %v361, %v413
      %v416 = vadd.f32 %v409, %v414
      %v417 = vld [vmem:[#allocation2] sm:$0xff]
      %vm418 = vcmask 64512
      %v419 = vsel %vm418, %v416, -inf
      %420 = vmax.xlane.f32.xlu0 %v419
      %v421 = vpop.xlane.xlu0 %420
      %v422 = vmax.f32 %v417, %v421
      %v423 = vsub.f32 %v417, %v422
      %v424 = vmul.f32 %v423, 1.442695
      %v425 = vpow.pop %v424
      %427 = vset.pattern.permute.xlu0 0
      %428 = vperm.xlu0 %427, %v422
      %v429 = vpop.permute.xlu0 %428
      %v431 = vsub.f32 %v416, %v429
      %v432 = vmul.f32 %v431, 1.442695
      %v433 = vpow.pop %v432
      %v434 = vld [vmem:[#allocation3] sm:$0xff]
      %v435 = vmul.f32 %v425, %v434
      %v436 = vsel %vm418, %v433, 0.0
      %437 = vadd.xlane.f32.xlu0 %v436
      %v438 = vpop.xlane.xlu0 %437
      %v439 = vadd.f32 %v435, %v438
      %vm440 = vcmask 7168
      %441 = vst.msk [vmem:[#allocation3] sm:$0xff] %vm440, %v439
      %v442 = vld [vmem:[#allocation4] sm:$0xff]
      %444 = vset.pattern.permute.xlu0 0
      %445 = vperm.xlu0 %444, %v425
      %v446 = vpop.permute.xlu0 %445
      %v448 = vmul.f32 %v446, %v442
      %v449 = vpack.c.bf16 %v433, %v433
      %v451 = vsel %vm418, %v449, 0
      %vm453 = vcmask 1043456
      %v455 = vsel %vm453, %v360, 0
      %457 = vmatprep.subr.bf16.mxu0 0
      %458 = vmatpush1.bf16.msra.mxu0 %v455
      %459 = vmatprep.subr.bf16.mxu0 0
      %460 = vmatpush1.bf16.msra.mxu0 0
      %461 = vmatprep.subr.bf16.mxu0 0
      %462 = vmatpush1.bf16.msra.mxu0 0
      %463 = vmatprep.subr.bf16.mxu0 0
      %464 = vmatpush1.bf16.msra.mxu0 0
      %465 = vmatprep.subr.bf16.mxu0 0
      %466 = vmatpush1.bf16.msra.mxu0 0
      %467 = vmatprep.subr.bf16.mxu0 0
      %468 = vmatpush1.bf16.msra.mxu0 0
      %469 = vmatprep.subr.bf16.mxu0 0
      %470 = vmatpush1.bf16.msra.mxu0 0
      %471 = vmatprep.subr.bf16.mxu0 0
      %472 = vmatpush1.bf16.msra.mxu0 0
      %473 = vmatprep.subr.bf16.mxu0 0
      %474 = vmatpush1.bf16.msra.mxu0 0
      %475 = vmatprep.subr.bf16.mxu0 0
      %476 = vmatpush1.bf16.msra.mxu0 0
      %477 = vmatprep.subr.bf16.mxu0 0
      %478 = vmatpush1.bf16.msra.mxu0 0
      %479 = vmatprep.subr.bf16.mxu0 0
      %480 = vmatpush1.bf16.msra.mxu0 0
      %481 = vmatprep.subr.bf16.mxu0 0
      %482 = vmatpush1.bf16.msra.mxu0 0
      %483 = vmatprep.subr.bf16.mxu0 0
      %484 = vmatpush1.bf16.msra.mxu0 0
      %485 = vmatprep.subr.bf16.mxu0 0
      %486 = vmatpush1.bf16.msra.mxu0 0
      %487 = vmatprep.subr.bf16.mxu0 0
      %488 = vmatpush1.bf16.msra.mxu0 0
      %489 = vmatprep.mubr.bf16.mxu0 0
      %490 = vmatmul.mubr.bf16.gmra.mrb[0].mxu0 %v451
      %v491 = vpop.f32.mrb[0].mxu0
      %v492 = vadd.f32 0.0, %v491
      %v493 = vpop.f32.mrb[0].mxu0
      %v494 = vpop.f32.mrb[0].mxu0
      %v495 = vpop.f32.mrb[0].mxu0
      %496 = vdwg.mxu0
      %v497 = vadd.f32 %v448, %v492
      %498 = vst.msk [vmem:[#allocation4] sm:$0xff] %vm362, %v497
      %499 = vst.msk [vmem:[#allocation2] sm:$0xff] %vm440, %v422
      %501 = vrot.lane.b32.xlu0 %v356, 96
      %v502 = vpop.permute.xlu0 %501
      %504 = vrot.lane.b32.xlu0 %v358, 96
      %v505 = vpop.permute.xlu0 %504
      %v507 = vsel %vm362, %v502, 0
      %v510 = vsel %vm362, %v505, 0
      %512 = vmatprep.subr.bf16.mxu0 0
      %513 = vmatpush1.bf16.xpose.msra.mxu0 %v510
      %514 = vmatprep.subr.bf16.mxu0 0
      %515 = vmatpush1.bf16.xpose.msra.mxu0 0
      %516 = vmatprep.subr.bf16.mxu0 0
      %517 = vmatpush1.bf16.xpose.msra.mxu0 0
      %518 = vmatprep.subr.bf16.mxu0 0
      %519 = vmatpush1.bf16.xpose.msra.mxu0 0
      %520 = vmatprep.subr.bf16.mxu0 0
      %521 = vmatpush1.bf16.xpose.msra.mxu0 0
      %522 = vmatprep.subr.bf16.mxu0 0
      %523 = vmatpush1.bf16.xpose.msra.mxu0 0
      %524 = vmatprep.subr.bf16.mxu0 0
      %525 = vmatpush1.bf16.xpose.msra.mxu0 0
      %526 = vmatprep.subr.bf16.mxu0 0
      %527 = vmatpush1.bf16.xpose.msra.mxu0 0
      %528 = vmatprep.subr.bf16.mxu0 0
      %529 = vmatpush1.bf16.xpose.msra.mxu0 0
      %530 = vmatprep.subr.bf16.mxu0 0
      %531 = vmatpush1.bf16.xpose.msra.mxu0 0
      %532 = vmatprep.subr.bf16.mxu0 0
      %533 = vmatpush1.bf16.xpose.msra.mxu0 0
      %534 = vmatprep.subr.bf16.mxu0 0
      %535 = vmatpush1.bf16.xpose.msra.mxu0 0
      %536 = vmatprep.subr.bf16.mxu0 0
      %537 = vmatpush1.bf16.xpose.msra.mxu0 0
      %538 = vmatprep.subr.bf16.mxu0 0
      %539 = vmatpush1.bf16.xpose.msra.mxu0 0
      %540 = vmatprep.subr.bf16.mxu0 0
      %541 = vmatpush1.bf16.xpose.msra.mxu0 0
      %542 = vmatprep.subr.bf16.mxu0 0
      %543 = vmatpush1.bf16.xpose.msra.mxu0 0
      %544 = vmatprep.mubr.bf16.mxu0 0
      %545 = vmatmul.mubr.bf16.gmra.mrb[0].mxu0 %v507
      %v546 = vpop.f32.mrb[0].mxu0
      %v547 = vadd.f32 0.0, %v546
      %v548 = vpop.f32.mrb[0].mxu0
      %v549 = vpop.f32.mrb[0].mxu0
      %v550 = vpop.f32.mrb[0].mxu0
      %551 = vdwg.mxu0
      %v552 = vmul.f32 %v547, 0.17677669
      %v553 = vadd.f32 %v552, %v414
      %s554 = scalar_lea.vmem [#allocation2], 8
      %v555 = vld [vmem:[%s554] sm:$0xff]
      %v556 = vsel %vm418, %v553, -inf
      %557 = vmax.xlane.f32.xlu0 %v556
      %v558 = vpop.xlane.xlu0 %557
      %v559 = vmax.f32 %v555, %v558
      %v560 = vsub.f32 %v555, %v559
      %v561 = vmul.f32 %v560, 1.442695
      %v562 = vpow.pop %v561
      %564 = vset.pattern.permute.xlu0 0
      %565 = vperm.xlu0 %564, %v559
      %v566 = vpop.permute.xlu0 %565
      %v568 = vsub.f32 %v553, %v566
      %v569 = vmul.f32 %v568, 1.442695
      %v570 = vpow.pop %v569
      %s571 = scalar_lea.vmem [#allocation3], 8
      %v572 = vld [vmem:[%s571] sm:$0xff]
      %v573 = vmul.f32 %v562, %v572
      %v574 = vsel %vm418, %v570, 0.0
      %575 = vadd.xlane.f32.xlu0 %v574
      %v576 = vpop.xlane.xlu0 %575
      %v577 = vadd.f32 %v573, %v576
      %578 = vst.msk [vmem:[%s571] sm:$0xff] %vm440, %v577
      %s579 = scalar_lea.vmem [#allocation4], 8
      %v580 = vld [vmem:[%s579] sm:$0xff]
      %582 = vset.pattern.permute.xlu0 0
      %583 = vperm.xlu0 %582, %v562
      %v584 = vpop.permute.xlu0 %583
      %v586 = vmul.f32 %v584, %v580
      %v587 = vpack.c.bf16 %v570, %v570
      %589 = vrot.lane.b32.xlu0 %v360, 96
      %v590 = vpop.permute.xlu0 %589
      %v592 = vsel %vm418, %v587, 0
      %v595 = vsel %vm453, %v590, 0
      %597 = vmatprep.subr.bf16.mxu0 0
      %598 = vmatpush1.bf16.msra.mxu0 %v595
      %599 = vmatprep.subr.bf16.mxu0 0
      %600 = vmatpush1.bf16.msra.mxu0 0
      %601 = vmatprep.subr.bf16.mxu0 0
      %602 = vmatpush1.bf16.msra.mxu0 0
      %603 = vmatprep.subr.bf16.mxu0 0
      %604 = vmatpush1.bf16.msra.mxu0 0
      %605 = vmatprep.subr.bf16.mxu0 0
      %606 = vmatpush1.bf16.msra.mxu0 0
      %607 = vmatprep.subr.bf16.mxu0 0
      %608 = vmatpush1.bf16.msra.mxu0 0
      %609 = vmatprep.subr.bf16.mxu0 0
      %610 = vmatpush1.bf16.msra.mxu0 0
      %611 = vmatprep.subr.bf16.mxu0 0
      %612 = vmatpush1.bf16.msra.mxu0 0
      %613 = vmatprep.subr.bf16.mxu0 0
      %614 = vmatpush1.bf16.msra.mxu0 0
      %615 = vmatprep.subr.bf16.mxu0 0
      %616 = vmatpush1.bf16.msra.mxu0 0
      %617 = vmatprep.subr.bf16.mxu0 0
      %618 = vmatpush1.bf16.msra.mxu0 0
      %619 = vmatprep.subr.bf16.mxu0 0
      %620 = vmatpush1.bf16.msra.mxu0 0
      %621 = vmatprep.subr.bf16.mxu0 0
      %622 = vmatpush1.bf16.msra.mxu0 0
      %623 = vmatprep.subr.bf16.mxu0 0
      %624 = vmatpush1.bf16.msra.mxu0 0
      %625 = vmatprep.subr.bf16.mxu0 0
      %626 = vmatpush1.bf16.msra.mxu0 0
      %627 = vmatprep.subr.bf16.mxu0 0
      %628 = vmatpush1.bf16.msra.mxu0 0
      %629 = vmatprep.mubr.bf16.mxu0 0
      %630 = vmatmul.mubr.bf16.gmra.mrb[0].mxu0 %v592
      %v631 = vpop.f32.mrb[0].mxu0
      %v632 = vadd.f32 0.0, %v631
      %v633 = vpop.f32.mrb[0].mxu0
      %v634 = vpop.f32.mrb[0].mxu0
      %v635 = vpop.f32.mrb[0].mxu0
      %636 = vdwg.mxu0
      %v637 = vadd.f32 %v586, %v632
      %638 = vst.msk [vmem:[%s579] sm:$0xff] %vm362, %v637
      %639 = vst.msk [vmem:[%s554] sm:$0xff] %vm440, %v559
      %640 = vrot.lane.b32.xlu0 %v356, 64
      %v641 = vpop.permute.xlu0 %640
      %642 = vrot.lane.b32.xlu0 %v358, 64
      %v643 = vpop.permute.xlu0 %642
      %v645 = vsel %vm362, %v641, 0
      %v648 = vsel %vm362, %v643, 0
      %650 = vmatprep.subr.bf16.mxu0 0
      %651 = vmatpush1.bf16.xpose.msra.mxu0 %v648
      %652 = vmatprep.subr.bf16.mxu0 0
      %653 = vmatpush1.bf16.xpose.msra.mxu0 0
      %654 = vmatprep.subr.bf16.mxu0 0
      %655 = vmatpush1.bf16.xpose.msra.mxu0 0
      %656 = vmatprep.subr.bf16.mxu0 0
      %657 = vmatpush1.bf16.xpose.msra.mxu0 0
      %658 = vmatprep.subr.bf16.mxu0 0
      %659 = vmatpush1.bf16.xpose.msra.mxu0 0
      %660 = vmatprep.subr.bf16.mxu0 0
      %661 = vmatpush1.bf16.xpose.msra.mxu0 0
      %662 = vmatprep.subr.bf16.mxu0 0
      %663 = vmatpush1.bf16.xpose.msra.mxu0 0
      %664 = vmatprep.subr.bf16.mxu0 0
      %665 = vmatpush1.bf16.xpose.msra.mxu0 0
      %666 = vmatprep.subr.bf16.mxu0 0
      %667 = vmatpush1.bf16.xpose.msra.mxu0 0
      %668 = vmatprep.subr.bf16.mxu0 0
      %669 = vmatpush1.bf16.xpose.msra.mxu0 0
      %670 = vmatprep.subr.bf16.mxu0 0
      %671 = vmatpush1.bf16.xpose.msra.mxu0 0
      %672 = vmatprep.subr.bf16.mxu0 0
      %673 = vmatpush1.bf16.xpose.msra.mxu0 0
      %674 = vmatprep.subr.bf16.mxu0 0
      %675 = vmatpush1.bf16.xpose.msra.mxu0 0
      %676 = vmatprep.subr.bf16.mxu0 0
      %677 = vmatpush1.bf16.xpose.msra.mxu0 0
      %678 = vmatprep.subr.bf16.mxu0 0
      %679 = vmatpush1.bf16.xpose.msra.mxu0 0
      %680 = vmatprep.subr.bf16.mxu0 0
      %681 = vmatpush1.bf16.xpose.msra.mxu0 0
      %682 = vmatprep.mubr.bf16.mxu0 0
      %683 = vmatmul.mubr.bf16.gmra.mrb[0].mxu0 %v645
      %v684 = vpop.f32.mrb[0].mxu0
      %v685 = vadd.f32 0.0, %v684
      %v686 = vpop.f32.mrb[0].mxu0
      %v687 = vpop.f32.mrb[0].mxu0
      %v688 = vpop.f32.mrb[0].mxu0
      %689 = vdwg.mxu0
      %v690 = vmul.f32 %v685, 0.17677669
      %v691 = vadd.f32 %v690, %v414
      %s692 = scalar_lea.vmem [#allocation2], 16
      %v693 = vld [vmem:[%s692] sm:$0xff]
      %v694 = vsel %vm418, %v691, -inf
      %695 = vmax.xlane.f32.xlu0 %v694
      %v696 = vpop.xlane.xlu0 %695
      %v697 = vmax.f32 %v693, %v696
      %v698 = vsub.f32 %v693, %v697
      %v699 = vmul.f32 %v698, 1.442695
      %v700 = vpow.pop %v699
      %702 = vset.pattern.permute.xlu0 0
      %703 = vperm.xlu0 %702, %v697
      %v704 = vpop.permute.xlu0 %703
      %v706 = vsub.f32 %v691, %v704
      %v707 = vmul.f32 %v706, 1.442695
      %v708 = vpow.pop %v707
      %s709 = scalar_lea.vmem [#allocation3], 16
      %v710 = vld [vmem:[%s709] sm:$0xff]
      %v711 = vmul.f32 %v700, %v710
      %v712 = vsel %vm418, %v708, 0.0
      %713 = vadd.xlane.f32.xlu0 %v712
      %v714 = vpop.xlane.xlu0 %713
      %v715 = vadd.f32 %v711, %v714
      %716 = vst.msk [vmem:[%s709] sm:$0xff] %vm440, %v715
      %s717 = scalar_lea.vmem [#allocation4], 16
      %v718 = vld [vmem:[%s717] sm:$0xff]
      %720 = vset.pattern.permute.xlu0 0
      %721 = vperm.xlu0 %720, %v700
      %v722 = vpop.permute.xlu0 %721
      %v724 = vmul.f32 %v722, %v718
      %v725 = vpack.c.bf16 %v708, %v708
      %726 = vrot.lane.b32.xlu0 %v360, 64
      %v727 = vpop.permute.xlu0 %726
      %v729 = vsel %vm418, %v725, 0
      %v732 = vsel %vm453, %v727, 0
      %734 = vmatprep.subr.bf16.mxu0 0
      %735 = vmatpush1.bf16.msra.mxu0 %v732
      %736 = vmatprep.subr.bf16.mxu0 0
      %737 = vmatpush1.bf16.msra.mxu0 0
      %738 = vmatprep.subr.bf16.mxu0 0
      %739 = vmatpush1.bf16.msra.mxu0 0
      %740 = vmatprep.subr.bf16.mxu0 0
      %741 = vmatpush1.bf16.msra.mxu0 0
      %742 = vmatprep.subr.bf16.mxu0 0
      %743 = vmatpush1.bf16.msra.mxu0 0
      %744 = vmatprep.subr.bf16.mxu0 0
      %745 = vmatpush1.bf16.msra.mxu0 0
      %746 = vmatprep.subr.bf16.mxu0 0
      %747 = vmatpush1.bf16.msra.mxu0 0
      %748 = vmatprep.subr.bf16.mxu0 0
      %749 = vmatpush1.bf16.msra.mxu0 0
      %750 = vmatprep.subr.bf16.mxu0 0
      %751 = vmatpush1.bf16.msra.mxu0 0
      %752 = vmatprep.subr.bf16.mxu0 0
      %753 = vmatpush1.bf16.msra.mxu0 0
      %754 = vmatprep.subr.bf16.mxu0 0
      %755 = vmatpush1.bf16.msra.mxu0 0
      %756 = vmatprep.subr.bf16.mxu0 0
      %757 = vmatpush1.bf16.msra.mxu0 0
      %758 = vmatprep.subr.bf16.mxu0 0
      %759 = vmatpush1.bf16.msra.mxu0 0
      %760 = vmatprep.subr.bf16.mxu0 0
      %761 = vmatpush1.bf16.msra.mxu0 0
      %762 = vmatprep.subr.bf16.mxu0 0
      %763 = vmatpush1.bf16.msra.mxu0 0
      %764 = vmatprep.subr.bf16.mxu0 0
      %765 = vmatpush1.bf16.msra.mxu0 0
      %766 = vmatprep.mubr.bf16.mxu0 0
      %767 = vmatmul.mubr.bf16.gmra.mrb[0].mxu0 %v729
      %v768 = vpop.f32.mrb[0].mxu0
      %v769 = vadd.f32 0.0, %v768
      %v770 = vpop.f32.mrb[0].mxu0
      %v771 = vpop.f32.mrb[0].mxu0
      %v772 = vpop.f32.mrb[0].mxu0
      %773 = vdwg.mxu0
      %v774 = vadd.f32 %v724, %v769
      %775 = vst.msk [vmem:[%s717] sm:$0xff] %vm362, %v774
      %776 = vst.msk [vmem:[%s692] sm:$0xff] %vm440, %v697
      %777 = vrot.lane.b32.xlu0 %v356, 32
      %v778 = vpop.permute.xlu0 %777
      %779 = vrot.lane.b32.xlu0 %v358, 32
      %v780 = vpop.permute.xlu0 %779
      %v782 = vsel %vm362, %v778, 0
      %v785 = vsel %vm362, %v780, 0
      %787 = vmatprep.subr.bf16.mxu0 0
      %788 = vmatpush1.bf16.xpose.msra.mxu0 %v785
      %789 = vmatprep.subr.bf16.mxu0 0
      %790 = vmatpush1.bf16.xpose.msra.mxu0 0
      %791 = vmatprep.subr.bf16.mxu0 0
      %792 = vmatpush1.bf16.xpose.msra.mxu0 0
      %793 = vmatprep.subr.bf16.mxu0 0
      %794 = vmatpush1.bf16.xpose.msra.mxu0 0
      %795 = vmatprep.subr.bf16.mxu0 0
      %796 = vmatpush1.bf16.xpose.msra.mxu0 0
      %797 = vmatprep.subr.bf16.mxu0 0
      %798 = vmatpush1.bf16.xpose.msra.mxu0 0
      %799 = vmatprep.subr.bf16.mxu0 0
      %800 = vmatpush1.bf16.xpose.msra.mxu0 0
      %801 = vmatprep.subr.bf16.mxu0 0
      %802 = vmatpush1.bf16.xpose.msra.mxu0 0
      %803 = vmatprep.subr.bf16.mxu0 0
      %804 = vmatpush1.bf16.xpose.msra.mxu0 0
      %805 = vmatprep.subr.bf16.mxu0 0
      %806 = vmatpush1.bf16.xpose.msra.mxu0 0
      %807 = vmatprep.subr.bf16.mxu0 0
      %808 = vmatpush1.bf16.xpose.msra.mxu0 0
      %809 = vmatprep.subr.bf16.mxu0 0
      %810 = vmatpush1.bf16.xpose.msra.mxu0 0
      %811 = vmatprep.subr.bf16.mxu0 0
      %812 = vmatpush1.bf16.xpose.msra.mxu0 0
      %813 = vmatprep.subr.bf16.mxu0 0
      %814 = vmatpush1.bf16.xpose.msra.mxu0 0
      %815 = vmatprep.subr.bf16.mxu0 0
      %816 = vmatpush1.bf16.xpose.msra.mxu0 0
      %817 = vmatprep.subr.bf16.mxu0 0
      %818 = vmatpush1.bf16.xpose.msra.mxu0 0
      %819 = vmatprep.mubr.bf16.mxu0 0
      %820 = vmatmul.mubr.bf16.gmra.mrb[0].mxu0 %v782
      %v821 = vpop.f32.mrb[0].mxu0
      %v822 = vadd.f32 0.0, %v821
      %v823 = vpop.f32.mrb[0].mxu0
      %v824 = vpop.f32.mrb[0].mxu0
      %v825 = vpop.f32.mrb[0].mxu0
      %826 = vdwg.mxu0
      %v827 = vmul.f32 %v822, 0.17677669
      %v828 = vadd.f32 %v827, %v414
      %s829 = scalar_lea.vmem [#allocation2], 24
      %v830 = vld [vmem:[%s829] sm:$0xff]
      %v831 = vsel %vm418, %v828, -inf
      %832 = vmax.xlane.f32.xlu0 %v831
      %v833 = vpop.xlane.xlu0 %832
      %v834 = vmax.f32 %v830, %v833
      %v835 = vsub.f32 %v830, %v834
      %v836 = vmul.f32 %v835, 1.442695
      %v837 = vpow.pop %v836
      %839 = vset.pattern.permute.xlu0 0
      %840 = vperm.xlu0 %839, %v834
      %v841 = vpop.permute.xlu0 %840
      %v843 = vsub.f32 %v828, %v841
      %v844 = vmul.f32 %v843, 1.442695
      %v845 = vpow.pop %v844
      %s846 = scalar_lea.vmem [#allocation3], 24
      %v847 = vld [vmem:[%s846] sm:$0xff]
      %v848 = vmul.f32 %v837, %v847
      %v849 = vsel %vm418, %v845, 0.0
      %850 = vadd.xlane.f32.xlu0 %v849
      %v851 = vpop.xlane.xlu0 %850
      %v852 = vadd.f32 %v848, %v851
      %853 = vst.msk [vmem:[%s846] sm:$0xff] %vm440, %v852
      %s854 = scalar_lea.vmem [#allocation4], 24
      %v855 = vld [vmem:[%s854] sm:$0xff]
      %857 = vset.pattern.permute.xlu0 0
      %858 = vperm.xlu0 %857, %v837
      %v859 = vpop.permute.xlu0 %858
      %v861 = vmul.f32 %v859, %v855
      %v862 = vpack.c.bf16 %v845, %v845
      %863 = vrot.lane.b32.xlu0 %v360, 32
      %v864 = vpop.permute.xlu0 %863
      %v866 = vsel %vm418, %v862, 0
      %v869 = vsel %vm453, %v864, 0
      %871 = vmatprep.subr.bf16.mxu0 0
      %872 = vmatpush1.bf16.msra.mxu0 %v869
      %873 = vmatprep.subr.bf16.mxu0 0
      %874 = vmatpush1.bf16.msra.mxu0 0
      %875 = vmatprep.subr.bf16.mxu0 0
      %876 = vmatpush1.bf16.msra.mxu0 0
      %877 = vmatprep.subr.bf16.mxu0 0
      %878 = vmatpush1.bf16.msra.mxu0 0
      %879 = vmatprep.subr.bf16.mxu0 0
      %880 = vmatpush1.bf16.msra.mxu0 0
      %881 = vmatprep.subr.bf16.mxu0 0
      %882 = vmatpush1.bf16.msra.mxu0 0
      %883 = vmatprep.subr.bf16.mxu0 0
      %884 = vmatpush1.bf16.msra.mxu0 0
      %885 = vmatprep.subr.bf16.mxu0 0
      %886 = vmatpush1.bf16.msra.mxu0 0
      %887 = vmatprep.subr.bf16.mxu0 0
      %888 = vmatpush1.bf16.msra.mxu0 0
      %889 = vmatprep.subr.bf16.mxu0 0
      %890 = vmatpush1.bf16.msra.mxu0 0
      %891 = vmatprep.subr.bf16.mxu0 0
      %892 = vmatpush1.bf16.msra.mxu0 0
      %893 = vmatprep.subr.bf16.mxu0 0
      %894 = vmatpush1.bf16.msra.mxu0 0
      %895 = vmatprep.subr.bf16.mxu0 0
      %896 = vmatpush1.bf16.msra.mxu0 0
      %897 = vmatprep.subr.bf16.mxu0 0
      %898 = vmatpush1.bf16.msra.mxu0 0
      %899 = vmatprep.subr.bf16.mxu0 0
      %900 = vmatpush1.bf16.msra.mxu0 0
      %901 = vmatprep.subr.bf16.mxu0 0
      %902 = vmatpush1.bf16.msra.mxu0 0
      %903 = vmatprep.mubr.bf16.mxu0 0
      %904 = vmatmul.mubr.bf16.gmra.mrb[0].mxu0 %v866
      %v905 = vpop.f32.mrb[0].mxu0
      %v906 = vadd.f32 0.0, %v905
      %v907 = vpop.f32.mrb[0].mxu0
      %v908 = vpop.f32.mrb[0].mxu0
      %v909 = vpop.f32.mrb[0].mxu0
      %910 = vdwg.mxu0
      %v911 = vadd.f32 %v861, %v906
      %912 = vst.msk [vmem:[%s854] sm:$0xff] %vm362, %v911
      %913 = vst.msk [vmem:[%s829] sm:$0xff] %vm440, %v834
      // Predicated region
      $region41: #{forward.15} parent=35 // pred_check
        %p914 = pneg %p337
      $region42: #{forward.15} parent=35 // pred_check_branch
        %916 = sbr.rel (%p914) target = $region44
      $region43: #{forward.15} parent=35 // pred_region
        %v917 = vld [vmem:[#allocation4] sm:$0xff]
        %v918 = vld [vmem:[#allocation3] sm:$0xff]
        %v919 = vrcp.pop %v918
        %921 = vset.pattern.permute.xlu0 0
        %922 = vperm.xlu0 %921, %v919
        %v923 = vpop.permute.xlu0 %922
        %v925 = vmul.f32 %v917, %v923
        %v926 = vld [vmem:[%s579] sm:$0xff]
        %v927 = vld [vmem:[%s571] sm:$0xff]
        %v928 = vrcp.pop %v927
        %930 = vset.pattern.permute.xlu0 0
        %931 = vperm.xlu0 %930, %v928
        %v932 = vpop.permute.xlu0 %931
        %v934 = vmul.f32 %v926, %v932
        %v935 = vld [vmem:[%s717] sm:$0xff]
        %v936 = vld [vmem:[%s709] sm:$0xff]
        %v937 = vrcp.pop %v936
        %939 = vset.pattern.permute.xlu0 0
        %940 = vperm.xlu0 %939, %v937
        %v941 = vpop.permute.xlu0 %940
        %v943 = vmul.f32 %v935, %v941
        %v944 = vld [vmem:[%s854] sm:$0xff]
        %v945 = vld [vmem:[%s846] sm:$0xff]
        %v946 = vrcp.pop %v945
        %948 = vset.pattern.permute.xlu0 0
        %949 = vperm.xlu0 %948, %v946
        %v950 = vpop.permute.xlu0 %949
        %v952 = vmul.f32 %v944, %v950
        %954 = vrot.lane.b32.xlu0 %v934, 32
        %v955 = vpop.permute.xlu0 %954
        %958 = vrot.lane.b32.xlu0 %v943, 64
        %v959 = vpop.permute.xlu0 %958
        %962 = vrot.lane.b32.xlu0 %v952, 96
        %v963 = vpop.permute.xlu0 %962
        %v965 = vsel %vm362, %v925, %v955
        %vm966 = vcmask 523264
        %v967 = vsel %vm966, %v965, %v959
        %vm968 = vcmask 785408
        %v969 = vsel %vm968, %v967, %v963
        %970 = vst [vmem:[%s335] sm:$0xff] %v969
      $region44: #{forward.15} parent=35 // pred_fallthru
        _
      %p971 = scmp.lt.s32.totalorder %s20, 1
      %s972 = scalar_select %p971, %s20, 1
      %p973 = scmp.lt.s32.totalorder %s21, 0
      %s974 = scalar_select %p973, %s21, 0
      %s975 = sadd.s32 %s974, %s972
      %s976 = smul.addr %s975, 8
      %s977 = scalar_lea.vmem %s4, %s976
      // Predicated region
      $region45: #{forward.15} parent=35 // pred_check
        %p978 = pneg %p166
      $region46: #{forward.15} parent=35 // pred_check_branch
        %980 = sbr.rel (%p978) target = $region48
      $region47: #{forward.15} parent=35 // pred_region
        _
      $region48: #{forward.15} parent=35 // pred_fallthru
        _
    $region36: #{forward.15} parent=5 // pred_fallthru
      _
    %p981 = scmp.le.s32.totalorder 2, %s10
    // Predicated region
    $region49: #{forward.15} parent=5 // pred_check
      %p982 = pneg %p981
    $region50: #{forward.15} parent=5 // pred_check_branch
      %984 = sbr.rel (%p982) target = $region52
    $region51: #{forward.15} parent=5 // pred_region
      %s985 = ssub.s32 %s10, 2
      // Predicated region
      $region53: #{forward.15} parent=51 // pred_check
        %p986 = pneg %p172
      $region54: #{forward.15} parent=51 // pred_check_branch
        %988 = sbr.rel (%p986) target = $region56
      $region55: #{forward.15} parent=51 // pred_region
        %p989 = scmp.lt.s32.totalorder %s23, 1
        %s990 = scalar_select %p989, %s23, 1
        %p991 = scmp.lt.s32.totalorder %s24, 0
        %s992 = scalar_select %p991, %s24, 0
        %s993 = sadd.s32 %s992, %s990
        %s994 = smul.addr %s993, 8
        %s995 = scalar_lea.vmem %s4, %s994
      $region56: #{forward.15} parent=51 // pred_fallthru
        _
    $region52: #{forward.15} parent=5 // pred_fallthru
      _
  $region6: #{forward.15} parent=0 // loop_footer
    %s14 = sadd.s32 1, %s10
  $region7: #{forward.15} parent=0 // loop_footer_branch
    %9 = sbr.rel target = $region3
  $region8: #{forward.15} parent=0 // loop_exit
    _

// kernel: forward.18
$region0: #{forward.18}
  #allocation0 [shape = 'u32[]', space=smem, size = 0x4, offset = 0x4, fixed_abs, tag = 'smem constant byte address 0x4 - core index']
  #allocation1 [shape = 'u32[144,128]{1,0:T(1,128)}', space=vmem, size = 0x12000, scoped, tag = 'internal scratch']
  #allocation2 [shape = 'f32[16,128]{1,0:T(8,128)}', space=vmem, size = 0x2000, scoped, tag = 'scratch operand']
  %s0 = inlined_call_operand.vmem [shape: f32[16,256], index: 0, kind: input, shape index: {}]
  %s1 = inlined_call_operand.vmem [shape: bf16[256,128], index: 1, kind: input, shape index: {}]
  %s2 = inlined_call_operand.vmem [shape: f32[1,128], index: 2, kind: input, shape index: {}, may-alias: {2,5}]
  %s3 = inlined_call_operand.vmem [shape: f32[16,128], index: 3, kind: input, shape index: {}]
  %s4 = inlined_call_operand.vmem [shape: f32[1,128], index: 4, kind: input, shape index: {}]
  %s5 = inlined_call_operand.vmem [shape: f32[1,128], index: 5, kind: input, shape index: {}, may-alias: {2,5}]
  %s6 = inlined_call_operand.vmem [shape: f32[16,128], index: 6, kind: output, shape index: {}]
  %s7 = sld [smem:[#allocation0]]
  $region42: #{forward.18} parent=0
    _
  %s9 = ssub.s32 1, %s7
  %s10 = scalar_select 0, %s9, %s7
  // Predicated region
  $region2: #{forward.18} parent=0 // pred_check
    _
  $region3: #{forward.18} parent=0 // pred_check_branch
    %12 = sbr.rel (0) target = $region5
  $region4: #{forward.18} parent=0 // pred_region
    _
  $region5: #{forward.18} parent=0 // pred_fallthru
    _
  // Predicated region
  $region6: #{forward.18} parent=0 // pred_check
    _
  $region7: #{forward.18} parent=0 // pred_check_branch
    %14 = sbr.rel (0) target = $region9
  $region8: #{forward.18} parent=0 // pred_region
    _
  $region9: #{forward.18} parent=0 // pred_fallthru
    _
  // Predicated region
  $region10: #{forward.18} parent=0 // pred_check
    _
  $region11: #{forward.18} parent=0 // pred_check_branch
    %16 = sbr.rel (0) target = $region13
  $region12: #{forward.18} parent=0 // pred_region
    _
  $region13: #{forward.18} parent=0 // pred_fallthru
    _
  // Predicated region
  $region14: #{forward.18} parent=0 // pred_check
    _
  $region15: #{forward.18} parent=0 // pred_check_branch
    %18 = sbr.rel (0) target = $region17
  $region16: #{forward.18} parent=0 // pred_region
    _
  $region17: #{forward.18} parent=0 // pred_fallthru
    _
  // Predicated region
  $region18: #{forward.18} parent=0 // pred_check
    _
  $region19: #{forward.18} parent=0 // pred_check_branch
    %20 = sbr.rel (0) target = $region21
  $region20: #{forward.18} parent=0 // pred_region
    _
  $region21: #{forward.18} parent=0 // pred_fallthru
    _
  // Predicated region
  $region22: #{forward.18} parent=0 // pred_check
    _
  $region23: #{forward.18} parent=0 // pred_check_branch
    %22 = sbr.rel (0) target = $region25
  $region24: #{forward.18} parent=0 // pred_region
    _
  $region25: #{forward.18} parent=0 // pred_fallthru
    _
  %p24 = scmp.eq.s32.totalorder 0, 0
  // Predicated region
  $region26: #{forward.18} parent=0 // pred_check
    %p25 = pneg %p24
  $region27: #{forward.18} parent=0 // pred_check_branch
    %27 = sbr.rel (%p25) target = $region29
  $region28: #{forward.18} parent=0 // pred_region
    %28 = vst [vmem:[#allocation2] sm:$0xff] 0.0
    %29 = vst [vmem:[#allocation2 + $0x8] sm:$0xff] 0.0
  $region29: #{forward.18} parent=0 // pred_fallthru
    _
  %v30 = vld [vmem:[#allocation2] sm:$0xff]
  %v31 = vld [vmem:[#allocation2 + $0x8] sm:$0xff]
  %v32 = vld [vmem:[%s0] sm:$0xff]
  %v33 = vld [vmem:[%s0 + $0x8] sm:$0xff]
  %v34 = vld [vmem:[%s0 + $0x10] sm:$0xff]
  %v35 = vld [vmem:[%s0 + $0x18] sm:$0xff]
  %v36 = vpack.c.bf16 %v34, %v32
  %v37 = vpack.c.bf16 %v35, %v33
  %v38 = vld [vmem:[%s1] sm:$0xf]
  %v39 = vld [vmem:[%s1 + $0x4] sm:$0xf]
  %v40 = vld [vmem:[%s1 + $0x8] sm:$0xf]
  %v41 = vld [vmem:[%s1 + $0xc] sm:$0xf]
  %v42 = vld [vmem:[%s1 + $0x10] sm:$0xf]
  %v43 = vld [vmem:[%s1 + $0x14] sm:$0xf]
  %v44 = vld [vmem:[%s1 + $0x18] sm:$0xf]
  %v45 = vld [vmem:[%s1 + $0x1c] sm:$0xf]
  %v46 = vld [vmem:[%s1 + $0x20] sm:$0xf]
  %v47 = vld [vmem:[%s1 + $0x24] sm:$0xf]
  %v48 = vld [vmem:[%s1 + $0x28] sm:$0xf]
  %v49 = vld [vmem:[%s1 + $0x2c] sm:$0xf]
  %v50 = vld [vmem:[%s1 + $0x30] sm:$0xf]
  %v51 = vld [vmem:[%s1 + $0x34] sm:$0xf]
  %v52 = vld [vmem:[%s1 + $0x38] sm:$0xf]
  %v53 = vld [vmem:[%s1 + $0x3c] sm:$0xf]
  %v54 = vld [vmem:[%s1 + $0x40] sm:$0xf]
  %v55 = vld [vmem:[%s1 + $0x44] sm:$0xf]
  %v56 = vld [vmem:[%s1 + $0x48] sm:$0xf]
  %v57 = vld [vmem:[%s1 + $0x4c] sm:$0xf]
  %v58 = vld [vmem:[%s1 + $0x50] sm:$0xf]
  %v59 = vld [vmem:[%s1 + $0x54] sm:$0xf]
  %v60 = vld [vmem:[%s1 + $0x58] sm:$0xf]
  %v61 = vld [vmem:[%s1 + $0x5c] sm:$0xf]
  %v62 = vld [vmem:[%s1 + $0x60] sm:$0xf]
  %v63 = vld [vmem:[%s1 + $0x64] sm:$0xf]
  %v64 = vld [vmem:[%s1 + $0x68] sm:$0xf]
  %v65 = vld [vmem:[%s1 + $0x6c] sm:$0xf]
  %v66 = vld [vmem:[%s1 + $0x70] sm:$0xf]
  %v67 = vld [vmem:[%s1 + $0x74] sm:$0xf]
  %v68 = vld [vmem:[%s1 + $0x78] sm:$0xf]
  %v69 = vld [vmem:[%s1 + $0x7c] sm:$0xf]
  %v102 = vunpack.c.l.b16 %v38
  %v103 = vunpack.c.l.b16 %v39
  %v104 = vunpack.c.l.b16 %v40
  %v105 = vunpack.c.l.b16 %v41
  %v106 = vunpack.c.l.b16 %v42
  %v107 = vunpack.c.l.b16 %v43
  %v108 = vunpack.c.l.b16 %v44
  %v109 = vunpack.c.l.b16 %v45
  %v110 = vunpack.c.l.b16 %v46
  %v111 = vunpack.c.l.b16 %v47
  %v112 = vunpack.c.l.b16 %v48
  %v113 = vunpack.c.l.b16 %v49
  %v114 = vunpack.c.l.b16 %v50
  %v115 = vunpack.c.l.b16 %v51
  %v116 = vunpack.c.l.b16 %v52
  %v117 = vunpack.c.l.b16 %v53
  %v118 = vunpack.c.l.b16 %v54
  %v119 = vunpack.c.l.b16 %v55
  %v120 = vunpack.c.l.b16 %v56
  %v121 = vunpack.c.l.b16 %v57
  %v122 = vunpack.c.l.b16 %v58
  %v123 = vunpack.c.l.b16 %v59
  %v124 = vunpack.c.l.b16 %v60
  %v125 = vunpack.c.l.b16 %v61
  %v126 = vunpack.c.l.b16 %v62
  %v127 = vunpack.c.l.b16 %v63
  %v128 = vunpack.c.l.b16 %v64
  %v129 = vunpack.c.l.b16 %v65
  %v130 = vunpack.c.l.b16 %v66
  %v131 = vunpack.c.l.b16 %v67
  %v132 = vunpack.c.l.b16 %v68
  %v133 = vunpack.c.l.b16 %v69
  %v134 = vpack.c.b16 %v103, %v102
  %v135 = vpack.c.b16 %v105, %v104
  %v136 = vpack.c.b16 %v107, %v106
  %v137 = vpack.c.b16 %v109, %v108
  %v138 = vpack.c.b16 %v111, %v110
  %v139 = vpack.c.b16 %v113, %v112
  %v140 = vpack.c.b16 %v115, %v114
  %v141 = vpack.c.b16 %v117, %v116
  %v142 = vpack.c.b16 %v119, %v118
  %v143 = vpack.c.b16 %v121, %v120
  %v144 = vpack.c.b16 %v123, %v122
  %v145 = vpack.c.b16 %v125, %v124
  %v146 = vpack.c.b16 %v127, %v126
  %v147 = vpack.c.b16 %v129, %v128
  %v148 = vpack.c.b16 %v131, %v130
  %v149 = vpack.c.b16 %v133, %v132
  %166 = vmatprep.subr.bf16.mxu0 0
  %167 = vmatpush1.bf16.msra.mxu0 %v134
  %168 = vmatprep.subr.bf16.mxu0 0
  %169 = vmatpush1.bf16.msra.mxu0 %v135
  %170 = vmatprep.subr.bf16.mxu0 0
  %171 = vmatpush1.bf16.msra.mxu0 %v136
  %172 = vmatprep.subr.bf16.mxu0 0
  %173 = vmatpush1.bf16.msra.mxu0 %v137
  %174 = vmatprep.subr.bf16.mxu0 0
  %175 = vmatpush1.bf16.msra.mxu0 %v138
  %176 = vmatprep.subr.bf16.mxu0 0
  %177 = vmatpush1.bf16.msra.mxu0 %v139
  %178 = vmatprep.subr.bf16.mxu0 0
  %179 = vmatpush1.bf16.msra.mxu0 %v140
  %180 = vmatprep.subr.bf16.mxu0 0
  %181 = vmatpush1.bf16.msra.mxu0 %v141
  %182 = vmatprep.subr.bf16.mxu0 0
  %183 = vmatpush1.bf16.msra.mxu0 %v142
  %184 = vmatprep.subr.bf16.mxu0 0
  %185 = vmatpush1.bf16.msra.mxu0 %v143
  %186 = vmatprep.subr.bf16.mxu0 0
  %187 = vmatpush1.bf16.msra.mxu0 %v144
  %188 = vmatprep.subr.bf16.mxu0 0
  %189 = vmatpush1.bf16.msra.mxu0 %v145
  %190 = vmatprep.subr.bf16.mxu0 0
  %191 = vmatpush1.bf16.msra.mxu0 %v146
  %192 = vmatprep.subr.bf16.mxu0 0
  %193 = vmatpush1.bf16.msra.mxu0 %v147
  %194 = vmatprep.subr.bf16.mxu0 0
  %195 = vmatpush1.bf16.msra.mxu0 %v148
  %196 = vmatprep.subr.bf16.mxu0 0
  %197 = vmatpush1.bf16.msra.mxu0 %v149
  %198 = vmatprep.mubr.bf16.mxu0 %v37
  %199 = vmatmul.mubr.bf16.gmra.mrb[0].mxu0 %v36
  %v200 = vpop.f32.mrb[0].mxu0
  %v201 = vadd.f32 0.0, %v200
  %v202 = vpop.f32.mrb[0].mxu0
  %v203 = vpop.f32.mrb[0].mxu0
  %v204 = vadd.f32 0.0, %v203
  %v205 = vpop.f32.mrb[0].mxu0
  %206 = vdwg.mxu0
  %v207 = vadd.f32 %v30, %v201
  %v208 = vadd.f32 %v31, %v204
  %209 = vst [vmem:[#allocation2] sm:$0xff] %v207
  %210 = vst [vmem:[#allocation2 + $0x8] sm:$0xff] %v208
  // Predicated region
  $region30: #{forward.18} parent=0 // pred_check
    %p211 = pneg %p24
  $region31: #{forward.18} parent=0 // pred_check_branch
    %213 = sbr.rel (%p211) target = $region33
  $region32: #{forward.18} parent=0 // pred_region
    %v214 = vld [vmem:[%s3] sm:$0xff]
    %v215 = vld [vmem:[%s3 + $0x8] sm:$0xff]
    %v216 = vmul.f32 %v214, 1.4142135
    %v217 = vmul.f32 %v215, 1.4142135
    %v218 = vld [vmem:[#allocation2] sm:$0xff]
    %v219 = vld [vmem:[#allocation2 + $0x8] sm:$0xff]
    %v220 = vadd.f32 %v216, %v218
    %v221 = vadd.f32 %v217, %v219
    %v222 = vld [vmem:[%s2] sm:$0x1]
    %v224 = vlaneseq
    %v225 = vshrl.u32 %v224, 7
    %v226 = vsub.s32 0, %v225
    %v227 = vrot.slane %v222, %v226
    %v229 = vadd.f32 %v220, %v227
    %v230 = vadd.f32 %v221, %v227
    %231 = vadd.xlane.f32.xlu0 %v229
    %v232 = vpop.xlane.xlu0 %231
    %233 = vadd.xlane.f32.xlu0 %v230
    %v234 = vpop.xlane.xlu0 %233
    %v235 = vrcp.pop 128.0
    %v236 = vmul.f32 %v232, %v235
    %v237 = vmul.f32 %v234, %v235
    %v238 = vsub.f32 %v229, %v236
    %v239 = vsub.f32 %v230, %v237
    %v240 = vmul.f32 %v238, %v238
    %v241 = vmul.f32 %v239, %v239
    %242 = vadd.xlane.f32.xlu0 %v240
    %v243 = vpop.xlane.xlu0 %242
    %244 = vadd.xlane.f32.xlu0 %v241
    %v245 = vpop.xlane.xlu0 %244
    %v246 = vmul.f32 %v243, %v235
    %v247 = vmul.f32 %v245, %v235
    %v248 = vadd.f32 %v246, 1e-05
    %v249 = vadd.f32 %v247, 1e-05
    %v250 = vrsqrt.pop %v248
    %v251 = vrsqrt.pop %v249
    %v252 = vmul.f32 %v238, %v250
    %v253 = vmul.f32 %v239, %v251
    %v254 = vld [vmem:[%s4] sm:$0x1]
    %v256 = vlaneseq
    %v257 = vshrl.u32 %v256, 7
    %v258 = vsub.s32 0, %v257
    %v259 = vrot.slane %v254, %v258
    %v261 = vmul.f32 %v252, %v259
    %v262 = vmul.f32 %v253, %v259
    %v263 = vld [vmem:[%s5] sm:$0x1]
    %v265 = vlaneseq
    %v266 = vshrl.u32 %v265, 7
    %v267 = vsub.s32 0, %v266
    %v268 = vrot.slane %v263, %v267
    %v270 = vadd.f32 %v261, %v268
    %v271 = vadd.f32 %v262, %v268
    %272 = vst [vmem:[%s6] sm:$0xff] %v270
    %273 = vst [vmem:[%s6 + $0x8] sm:$0xff] %v271
  $region33: #{forward.18} parent=0 // pred_fallthru
    _
  // Predicated region
  $region34: #{forward.18} parent=0 // pred_check
    _
  $region35: #{forward.18} parent=0 // pred_check_branch
    %275 = sbr.rel (0) target = $region37
  $region36: #{forward.18} parent=0 // pred_region
    _
  $region37: #{forward.18} parent=0 // pred_fallthru
    _
  // Predicated region
  $region38: #{forward.18} parent=0 // pred_check
    _
  $region39: #{forward.18} parent=0 // pred_check_branch
    %277 = sbr.rel (0) target = $region41
  $region40: #{forward.18} parent=0 // pred_region
    _
  $region41: #{forward.18} parent=0 // pred_fallthru
    _

// kernel: forward.17
$region0: #{forward.17}
  #allocation0 [shape = 'u32[]', space=smem, size = 0x4, offset = 0x4, fixed_abs, tag = 'smem constant byte address 0x4 - core index']
  #allocation1 [shape = 'u32[144,128]{1,0:T(1,128)}', space=vmem, size = 0x12000, scoped, tag = 'internal scratch']
  #allocation2 [shape = 'f32[16,256]{1,0:T(8,128)}', space=vmem, size = 0x4000, scoped, tag = 'scratch operand']
  %s0 = inlined_call_operand.vmem [shape: f32[16,128], index: 0, kind: input, shape index: {}]
  %s1 = inlined_call_operand.vmem [shape: bf16[128,256], index: 1, kind: input, shape index: {}]
  %s2 = inlined_call_operand.vmem [shape: f32[1,256], index: 2, kind: input, shape index: {}]
  %s3 = inlined_call_operand.vmem [shape: f32[16,256], index: 3, kind: output, shape index: {}]
  %s4 = sld [smem:[#allocation0]]
  $region30: #{forward.17} parent=0
    _
  %s6 = ssub.s32 1, %s4
  %s7 = scalar_select 0, %s6, %s4
  // Predicated region
  $region2: #{forward.17} parent=0 // pred_check
    _
  $region3: #{forward.17} parent=0 // pred_check_branch
    %9 = sbr.rel (0) target = $region5
  $region4: #{forward.17} parent=0 // pred_region
    _
  $region5: #{forward.17} parent=0 // pred_fallthru
    _
  // Predicated region
  $region6: #{forward.17} parent=0 // pred_check
    _
  $region7: #{forward.17} parent=0 // pred_check_branch
    %11 = sbr.rel (0) target = $region9
  $region8: #{forward.17} parent=0 // pred_region
    _
  $region9: #{forward.17} parent=0 // pred_fallthru
    _
  // Predicated region
  $region10: #{forward.17} parent=0 // pred_check
    _
  $region11: #{forward.17} parent=0 // pred_check_branch
    %13 = sbr.rel (0) target = $region13
  $region12: #{forward.17} parent=0 // pred_region
    _
  $region13: #{forward.17} parent=0 // pred_fallthru
    _
  %p15 = scmp.eq.s32.totalorder 0, 0
  // Predicated region
  $region14: #{forward.17} parent=0 // pred_check
    %p16 = pneg %p15
  $region15: #{forward.17} parent=0 // pred_check_branch
    %18 = sbr.rel (%p16) target = $region17
  $region16: #{forward.17} parent=0 // pred_region
    %19 = vst [vmem:[#allocation2] sm:$0xff] 0.0
    %20 = vst [vmem:[#allocation2 + $0x8] sm:$0xff] 0.0
    %21 = vst [vmem:[#allocation2 + $0x10] sm:$0xff] 0.0
    %22 = vst [vmem:[#allocation2 + $0x18] sm:$0xff] 0.0
  $region17: #{forward.17} parent=0 // pred_fallthru
    _
  %v23 = vld [vmem:[#allocation2] sm:$0xff]
  %v24 = vld [vmem:[#allocation2 + $0x8] sm:$0xff]
  %v25 = vld [vmem:[#allocation2 + $0x10] sm:$0xff]
  %v26 = vld [vmem:[#allocation2 + $0x18] sm:$0xff]
  %v27 = vld [vmem:[%s0] sm:$0xff]
  %v28 = vld [vmem:[%s0 + $0x8] sm:$0xff]
  %v29 = vpack.c.bf16 %v28, %v27
  %v30 = vld [vmem:[%s1] sm:$0xff]
  %v31 = vld [vmem:[%s1 + $0x8] sm:$0xff]
  %v32 = vld [vmem:[%s1 + $0x10] sm:$0xff]
  %v33 = vld [vmem:[%s1 + $0x18] sm:$0xff]
  %v34 = vld [vmem:[%s1 + $0x20] sm:$0xff]
  %v35 = vld [vmem:[%s1 + $0x28] sm:$0xff]
  %v36 = vld [vmem:[%s1 + $0x30] sm:$0xff]
  %v37 = vld [vmem:[%s1 + $0x38] sm:$0xff]
  %v38 = vld [vmem:[%s1 + $0x40] sm:$0xff]
  %v39 = vld [vmem:[%s1 + $0x48] sm:$0xff]
  %v40 = vld [vmem:[%s1 + $0x50] sm:$0xff]
  %v41 = vld [vmem:[%s1 + $0x58] sm:$0xff]
  %v42 = vld [vmem:[%s1 + $0x60] sm:$0xff]
  %v43 = vld [vmem:[%s1 + $0x68] sm:$0xff]
  %v44 = vld [vmem:[%s1 + $0x70] sm:$0xff]
  %v45 = vld [vmem:[%s1 + $0x78] sm:$0xff]
  %v62 = vunpack.c.l.b16 %v30
  %v63 = vunpack.c.h.b16 %v30
  %v64 = vunpack.c.l.b16 %v31
  %v65 = vunpack.c.h.b16 %v31
  %v66 = vunpack.c.l.b16 %v32
  %v67 = vunpack.c.h.b16 %v32
  %v68 = vunpack.c.l.b16 %v33
  %v69 = vunpack.c.h.b16 %v33
  %v70 = vunpack.c.l.b16 %v34
  %v71 = vunpack.c.h.b16 %v34
  %v72 = vunpack.c.l.b16 %v35
  %v73 = vunpack.c.h.b16 %v35
  %v74 = vunpack.c.l.b16 %v36
  %v75 = vunpack.c.h.b16 %v36
  %v76 = vunpack.c.l.b16 %v37
  %v77 = vunpack.c.h.b16 %v37
  %v78 = vunpack.c.l.b16 %v38
  %v79 = vunpack.c.h.b16 %v38
  %v80 = vunpack.c.l.b16 %v39
  %v81 = vunpack.c.h.b16 %v39
  %v82 = vunpack.c.l.b16 %v40
  %v83 = vunpack.c.h.b16 %v40
  %v84 = vunpack.c.l.b16 %v41
  %v85 = vunpack.c.h.b16 %v41
  %v86 = vunpack.c.l.b16 %v42
  %v87 = vunpack.c.h.b16 %v42
  %v88 = vunpack.c.l.b16 %v43
  %v89 = vunpack.c.h.b16 %v43
  %v90 = vunpack.c.l.b16 %v44
  %v91 = vunpack.c.h.b16 %v44
  %v92 = vunpack.c.l.b16 %v45
  %v93 = vunpack.c.h.b16 %v45
  %v94 = vpack.c.b16 %v64, %v62
  %v95 = vpack.c.b16 %v65, %v63
  %v96 = vpack.c.b16 %v68, %v66
  %v97 = vpack.c.b16 %v69, %v67
  %v98 = vpack.c.b16 %v72, %v70
  %v99 = vpack.c.b16 %v73, %v71
  %v100 = vpack.c.b16 %v76, %v74
  %v101 = vpack.c.b16 %v77, %v75
  %v102 = vpack.c.b16 %v80, %v78
  %v103 = vpack.c.b16 %v81, %v79
  %v104 = vpack.c.b16 %v84, %v82
  %v105 = vpack.c.b16 %v85, %v83
  %v106 = vpack.c.b16 %v88, %v86
  %v107 = vpack.c.b16 %v89, %v87
  %v108 = vpack.c.b16 %v92, %v90
  %v109 = vpack.c.b16 %v93, %v91
  %126 = vmatprep.subr.bf16.mxu0 %v95
  %127 = vmatpush1.bf16.msra.mxu0 %v94
  %128 = vmatprep.subr.bf16.mxu0 %v97
  %129 = vmatpush1.bf16.msra.mxu0 %v96
  %130 = vmatprep.subr.bf16.mxu0 %v99
  %131 = vmatpush1.bf16.msra.mxu0 %v98
  %132 = vmatprep.subr.bf16.mxu0 %v101
  %133 = vmatpush1.bf16.msra.mxu0 %v100
  %134 = vmatprep.subr.bf16.mxu0 %v103
  %135 = vmatpush1.bf16.msra.mxu0 %v102
  %136 = vmatprep.subr.bf16.mxu0 %v105
  %137 = vmatpush1.bf16.msra.mxu0 %v104
  %138 = vmatprep.subr.bf16.mxu0 %v107
  %139 = vmatpush1.bf16.msra.mxu0 %v106
  %140 = vmatprep.subr.bf16.mxu0 %v109
  %141 = vmatpush1.bf16.msra.mxu0 %v108
  %142 = vmatprep.subr.bf16.mxu0 0
  %143 = vmatpush1.bf16.msra.mxu0 0
  %144 = vmatprep.subr.bf16.mxu0 0
  %145 = vmatpush1.bf16.msra.mxu0 0
  %146 = vmatprep.subr.bf16.mxu0 0
  %147 = vmatpush1.bf16.msra.mxu0 0
  %148 = vmatprep.subr.bf16.mxu0 0
  %149 = vmatpush1.bf16.msra.mxu0 0
  %150 = vmatprep.subr.bf16.mxu0 0
  %151 = vmatpush1.bf16.msra.mxu0 0
  %152 = vmatprep.subr.bf16.mxu0 0
  %153 = vmatpush1.bf16.msra.mxu0 0
  %154 = vmatprep.subr.bf16.mxu0 0
  %155 = vmatpush1.bf16.msra.mxu0 0
  %156 = vmatprep.subr.bf16.mxu0 0
  %157 = vmatpush1.bf16.msra.mxu0 0
  %158 = vmatprep.mubr.bf16.mxu0 0
  %159 = vmatmul.mubr.bf16.gmra.mrb[0].mxu0 %v29
  %v160 = vpop.f32.mrb[0].mxu0
  %v161 = vadd.f32 0.0, %v160
  %v162 = vpop.f32.mrb[0].mxu0
  %v163 = vadd.f32 0.0, %v162
  %v164 = vpop.f32.mrb[0].mxu0
  %v165 = vadd.f32 0.0, %v164
  %v166 = vpop.f32.mrb[0].mxu0
  %v167 = vadd.f32 0.0, %v166
  %168 = vdwg.mxu0
  %v169 = vadd.f32 %v23, %v161
  %v170 = vadd.f32 %v24, %v163
  %v171 = vadd.f32 %v25, %v165
  %v172 = vadd.f32 %v26, %v167
  %173 = vst [vmem:[#allocation2] sm:$0xff] %v169
  %174 = vst [vmem:[#allocation2 + $0x8] sm:$0xff] %v170
  %175 = vst [vmem:[#allocation2 + $0x10] sm:$0xff] %v171
  %176 = vst [vmem:[#allocation2 + $0x18] sm:$0xff] %v172
  // Predicated region
  $region18: #{forward.17} parent=0 // pred_check
    %p177 = pneg %p15
  $region19: #{forward.17} parent=0 // pred_check_branch
    %179 = sbr.rel (%p177) target = $region21
  $region20: #{forward.17} parent=0 // pred_region
    %v180 = vld [vmem:[#allocation2] sm:$0xff]
    %v181 = vld [vmem:[#allocation2 + $0x8] sm:$0xff]
    %v182 = vld [vmem:[#allocation2 + $0x10] sm:$0xff]
    %v183 = vld [vmem:[#allocation2 + $0x18] sm:$0xff]
    %v184 = vld [vmem:[%s2] sm:$0x3]
    %v186 = vlaneseq
    %v187 = vshrl.u32 %v186, 7
    %v188 = vsub.s32 0, %v187
    %v189 = vrot.slane %v184, %v188
    %v190 = vlaneseq
    %v191 = vshrl.u32 %v190, 7
    %v192 = vsub.s32 1, %v191
    %v193 = vrot.slane %v184, %v192
    %v196 = vadd.f32 %v180, %v189
    %v197 = vadd.f32 %v181, %v193
    %v198 = vadd.f32 %v182, %v189
    %v199 = vadd.f32 %v183, %v193
    %v200 = vmul.f32 %v196, 0.5
    %v201 = vmul.f32 %v197, 0.5
    %v202 = vmul.f32 %v198, 0.5
    %v203 = vmul.f32 %v199, 0.5
    %v204 = vmul.f32 %v196, 0.70710677
    %v205 = vmul.f32 %v197, 0.70710677
    %v206 = vmul.f32 %v198, 0.70710677
    %v207 = vmul.f32 %v199, 0.70710677
    %v208 = verf.f32.pop %v204
    %v209 = verf.f32.pop %v205
    %v210 = verf.f32.pop %v206
    %v211 = verf.f32.pop %v207
    %v212 = vadd.f32 %v208, 1.0
    %v213 = vadd.f32 %v209, 1.0
    %v214 = vadd.f32 %v210, 1.0
    %v215 = vadd.f32 %v211, 1.0
    %v216 = vmul.f32 %v200, %v212
    %v217 = vmul.f32 %v201, %v213
    %v218 = vmul.f32 %v202, %v214
    %v219 = vmul.f32 %v203, %v215
    %220 = vst [vmem:[%s3] sm:$0xff] %v216
    %221 = vst [vmem:[%s3 + $0x8] sm:$0xff] %v217
    %222 = vst [vmem:[%s3 + $0x10] sm:$0xff] %v218
    %223 = vst [vmem:[%s3 + $0x18] sm:$0xff] %v219
  $region21: #{forward.17} parent=0 // pred_fallthru
    _
  // Predicated region
  $region22: #{forward.17} parent=0 // pred_check
    _
  $region23: #{forward.17} parent=0 // pred_check_branch
    %225 = sbr.rel (0) target = $region25
  $region24: #{forward.17} parent=0 // pred_region
    _
  $region25: #{forward.17} parent=0 // pred_fallthru
    _
  // Predicated region
  $region26: #{forward.17} parent=0 // pred_check
    _
  $region27: #{forward.17} parent=0 // pred_check_branch
    %227 = sbr.rel (0) target = $region29
  $region28: #{forward.17} parent=0 // pred_region
    _
  $region29: #{forward.17} parent=0 // pred_fallthru
    _

// kernel: forward.23
$region0: #{forward.23}
  #allocation0 [shape = 'u32[]', space=smem, size = 0x4, offset = 0x4, fixed_abs, tag = 'smem constant byte address 0x4 - core index']
  #allocation1 [shape = 'u32[144,128]{1,0:T(1,128)}', space=vmem, size = 0x12000, scoped, tag = 'internal scratch']
  #allocation2 [shape = 'f32[16,128]{1,0:T(8,128)}', space=vmem, size = 0x2000, scoped, tag = 'scratch operand']
  %s0 = inlined_call_operand.vmem [shape: f32[16,256], index: 0, kind: input, shape index: {}]
  %s1 = inlined_call_operand.vmem [shape: bf16[256,128], index: 1, kind: input, shape index: {}]
  %s2 = inlined_call_operand.vmem [shape: f32[1,128], index: 2, kind: input, shape index: {}, may-alias: {2,5}]
  %s3 = inlined_call_operand.vmem [shape: f32[16,128], index: 3, kind: input, shape index: {}]
  %s4 = inlined_call_operand.vmem [shape: f32[1,128], index: 4, kind: input, shape index: {}]
  %s5 = inlined_call_operand.vmem [shape: f32[1,128], index: 5, kind: input, shape index: {}, may-alias: {2,5}]
  %s6 = inlined_call_operand.hbm [shape: f32[16,128], index: 6, kind: output, shape index: {}]
  %s7 = sld [smem:[#allocation0]]
  $region42: #{forward.23} parent=0
    _
  %s9 = ssub.s32 1, %s7
  %s10 = scalar_select 0, %s9, %s7
  $region1: #{forward.23} parent=0
    #allocation3 [shape = 'u8[8192]{0}', space=vmem, size = 0x2000, scoped, tag = 'output window, operand 0, single buffered']
    #allocation4 [shape = 's32[1]{0}', space=sflag, size = 0x4, scoped, tag = 'scoped memory for forward.23']
    %11 = vsyncpa [#allocation4], 0
    // Predicated region
    $region2: #{forward.23} parent=1 // pred_check
      _
    $region3: #{forward.23} parent=1 // pred_check_branch
      %13 = sbr.rel (0) target = $region5
    $region4: #{forward.23} parent=1 // pred_region
      _
    $region5: #{forward.23} parent=1 // pred_fallthru
      _
    // Predicated region
    $region6: #{forward.23} parent=1 // pred_check
      _
    $region7: #{forward.23} parent=1 // pred_check_branch
      %15 = sbr.rel (0) target = $region9
    $region8: #{forward.23} parent=1 // pred_region
      _
    $region9: #{forward.23} parent=1 // pred_fallthru
      _
    // Predicated region
    $region10: #{forward.23} parent=1 // pred_check
      _
    $region11: #{forward.23} parent=1 // pred_check_branch
      %17 = sbr.rel (0) target = $region13
    $region12: #{forward.23} parent=1 // pred_region
      _
    $region13: #{forward.23} parent=1 // pred_fallthru
      _
    // Predicated region
    $region14: #{forward.23} parent=1 // pred_check
      _
    $region15: #{forward.23} parent=1 // pred_check_branch
      %19 = sbr.rel (0) target = $region17
    $region16: #{forward.23} parent=1 // pred_region
      _
    $region17: #{forward.23} parent=1 // pred_fallthru
      _
    // Predicated region
    $region18: #{forward.23} parent=1 // pred_check
      _
    $region19: #{forward.23} parent=1 // pred_check_branch
      %21 = sbr.rel (0) target = $region21
    $region20: #{forward.23} parent=1 // pred_region
      _
    $region21: #{forward.23} parent=1 // pred_fallthru
      _
    // Predicated region
    $region22: #{forward.23} parent=1 // pred_check
      _
    $region23: #{forward.23} parent=1 // pred_check_branch
      %23 = sbr.rel (0) target = $region25
    $region24: #{forward.23} parent=1 // pred_region
      _
    $region25: #{forward.23} parent=1 // pred_fallthru
      _
    %p25 = scmp.eq.s32.totalorder 0, 0
    // Predicated region
    $region26: #{forward.23} parent=1 // pred_check
      %p26 = pneg %p25
    $region27: #{forward.23} parent=1 // pred_check_branch
      %28 = sbr.rel (%p26) target = $region29
    $region28: #{forward.23} parent=1 // pred_region
      %29 = vst [vmem:[#allocation2] sm:$0xff] 0.0
      %30 = vst [vmem:[#allocation2 + $0x8] sm:$0xff] 0.0
    $region29: #{forward.23} parent=1 // pred_fallthru
      _
    %v31 = vld [vmem:[#allocation2] sm:$0xff]
    %v32 = vld [vmem:[#allocation2 + $0x8] sm:$0xff]
    %v33 = vld [vmem:[%s0] sm:$0xff]
    %v34 = vld [vmem:[%s0 + $0x8] sm:$0xff]
    %v35 = vld [vmem:[%s0 + $0x10] sm:$0xff]
    %v36 = vld [vmem:[%s0 + $0x18] sm:$0xff]
    %v37 = vpack.c.bf16 %v35, %v33
    %v38 = vpack.c.bf16 %v36, %v34
    %v39 = vld [vmem:[%s1] sm:$0xf]
    %v40 = vld [vmem:[%s1 + $0x4] sm:$0xf]
    %v41 = vld [vmem:[%s1 + $0x8] sm:$0xf]
    %v42 = vld [vmem:[%s1 + $0xc] sm:$0xf]
    %v43 = vld [vmem:[%s1 + $0x10] sm:$0xf]
    %v44 = vld [vmem:[%s1 + $0x14] sm:$0xf]
    %v45 = vld [vmem:[%s1 + $0x18] sm:$0xf]
    %v46 = vld [vmem:[%s1 + $0x1c] sm:$0xf]
    %v47 = vld [vmem:[%s1 + $0x20] sm:$0xf]
    %v48 = vld [vmem:[%s1 + $0x24] sm:$0xf]
    %v49 = vld [vmem:[%s1 + $0x28] sm:$0xf]
    %v50 = vld [vmem:[%s1 + $0x2c] sm:$0xf]
    %v51 = vld [vmem:[%s1 + $0x30] sm:$0xf]
    %v52 = vld [vmem:[%s1 + $0x34] sm:$0xf]
    %v53 = vld [vmem:[%s1 + $0x38] sm:$0xf]
    %v54 = vld [vmem:[%s1 + $0x3c] sm:$0xf]
    %v55 = vld [vmem:[%s1 + $0x40] sm:$0xf]
    %v56 = vld [vmem:[%s1 + $0x44] sm:$0xf]
    %v57 = vld [vmem:[%s1 + $0x48] sm:$0xf]
    %v58 = vld [vmem:[%s1 + $0x4c] sm:$0xf]
    %v59 = vld [vmem:[%s1 + $0x50] sm:$0xf]
    %v60 = vld [vmem:[%s1 + $0x54] sm:$0xf]
    %v61 = vld [vmem:[%s1 + $0x58] sm:$0xf]
    %v62 = vld [vmem:[%s1 + $0x5c] sm:$0xf]
    %v63 = vld [vmem:[%s1 + $0x60] sm:$0xf]
    %v64 = vld [vmem:[%s1 + $0x64] sm:$0xf]
    %v65 = vld [vmem:[%s1 + $0x68] sm:$0xf]
    %v66 = vld [vmem:[%s1 + $0x6c] sm:$0xf]
    %v67 = vld [vmem:[%s1 + $0x70] sm:$0xf]
    %v68 = vld [vmem:[%s1 + $0x74] sm:$0xf]
    %v69 = vld [vmem:[%s1 + $0x78] sm:$0xf]
    %v70 = vld [vmem:[%s1 + $0x7c] sm:$0xf]
    %v103 = vunpack.c.l.b16 %v39
    %v104 = vunpack.c.l.b16 %v40
    %v105 = vunpack.c.l.b16 %v41
    %v106 = vunpack.c.l.b16 %v42
    %v107 = vunpack.c.l.b16 %v43
    %v108 = vunpack.c.l.b16 %v44
    %v109 = vunpack.c.l.b16 %v45
    %v110 = vunpack.c.l.b16 %v46
    %v111 = vunpack.c.l.b16 %v47
    %v112 = vunpack.c.l.b16 %v48
    %v113 = vunpack.c.l.b16 %v49
    %v114 = vunpack.c.l.b16 %v50
    %v115 = vunpack.c.l.b16 %v51
    %v116 = vunpack.c.l.b16 %v52
    %v117 = vunpack.c.l.b16 %v53
    %v118 = vunpack.c.l.b16 %v54
    %v119 = vunpack.c.l.b16 %v55
    %v120 = vunpack.c.l.b16 %v56
    %v121 = vunpack.c.l.b16 %v57
    %v122 = vunpack.c.l.b16 %v58
    %v123 = vunpack.c.l.b16 %v59
    %v124 = vunpack.c.l.b16 %v60
    %v125 = vunpack.c.l.b16 %v61
    %v126 = vunpack.c.l.b16 %v62
    %v127 = vunpack.c.l.b16 %v63
    %v128 = vunpack.c.l.b16 %v64
    %v129 = vunpack.c.l.b16 %v65
    %v130 = vunpack.c.l.b16 %v66
    %v131 = vunpack.c.l.b16 %v67
    %v132 = vunpack.c.l.b16 %v68
    %v133 = vunpack.c.l.b16 %v69
    %v134 = vunpack.c.l.b16 %v70
    %v135 = vpack.c.b16 %v104, %v103
    %v136 = vpack.c.b16 %v106, %v105
    %v137 = vpack.c.b16 %v108, %v107
    %v138 = vpack.c.b16 %v110, %v109
    %v139 = vpack.c.b16 %v112, %v111
    %v140 = vpack.c.b16 %v114, %v113
    %v141 = vpack.c.b16 %v116, %v115
    %v142 = vpack.c.b16 %v118, %v117
    %v143 = vpack.c.b16 %v120, %v119
    %v144 = vpack.c.b16 %v122, %v121
    %v145 = vpack.c.b16 %v124, %v123
    %v146 = vpack.c.b16 %v126, %v125
    %v147 = vpack.c.b16 %v128, %v127
    %v148 = vpack.c.b16 %v130, %v129
    %v149 = vpack.c.b16 %v132, %v131
    %v150 = vpack.c.b16 %v134, %v133
    %167 = vmatprep.subr.bf16.mxu0 0
    %168 = vmatpush1.bf16.msra.mxu0 %v135
    %169 = vmatprep.subr.bf16.mxu0 0
    %170 = vmatpush1.bf16.msra.mxu0 %v136
    %171 = vmatprep.subr.bf16.mxu0 0
    %172 = vmatpush1.bf16.msra.mxu0 %v137
    %173 = vmatprep.subr.bf16.mxu0 0
    %174 = vmatpush1.bf16.msra.mxu0 %v138
    %175 = vmatprep.subr.bf16.mxu0 0
    %176 = vmatpush1.bf16.msra.mxu0 %v139
    %177 = vmatprep.subr.bf16.mxu0 0
    %178 = vmatpush1.bf16.msra.mxu0 %v140
    %179 = vmatprep.subr.bf16.mxu0 0
    %180 = vmatpush1.bf16.msra.mxu0 %v141
    %181 = vmatprep.subr.bf16.mxu0 0
    %182 = vmatpush1.bf16.msra.mxu0 %v142
    %183 = vmatprep.subr.bf16.mxu0 0
    %184 = vmatpush1.bf16.msra.mxu0 %v143
    %185 = vmatprep.subr.bf16.mxu0 0
    %186 = vmatpush1.bf16.msra.mxu0 %v144
    %187 = vmatprep.subr.bf16.mxu0 0
    %188 = vmatpush1.bf16.msra.mxu0 %v145
    %189 = vmatprep.subr.bf16.mxu0 0
    %190 = vmatpush1.bf16.msra.mxu0 %v146
    %191 = vmatprep.subr.bf16.mxu0 0
    %192 = vmatpush1.bf16.msra.mxu0 %v147
    %193 = vmatprep.subr.bf16.mxu0 0
    %194 = vmatpush1.bf16.msra.mxu0 %v148
    %195 = vmatprep.subr.bf16.mxu0 0
    %196 = vmatpush1.bf16.msra.mxu0 %v149
    %197 = vmatprep.subr.bf16.mxu0 0
    %198 = vmatpush1.bf16.msra.mxu0 %v150
    %199 = vmatprep.mubr.bf16.mxu0 %v38
    %200 = vmatmul.mubr.bf16.gmra.mrb[0].mxu0 %v37
    %v201 = vpop.f32.mrb[0].mxu0
    %v202 = vadd.f32 0.0, %v201
    %v203 = vpop.f32.mrb[0].mxu0
    %v204 = vpop.f32.mrb[0].mxu0
    %v205 = vadd.f32 0.0, %v204
    %v206 = vpop.f32.mrb[0].mxu0
    %207 = vdwg.mxu0
    %v208 = vadd.f32 %v31, %v202
    %v209 = vadd.f32 %v32, %v205
    %210 = vst [vmem:[#allocation2] sm:$0xff] %v208
    %211 = vst [vmem:[#allocation2 + $0x8] sm:$0xff] %v209
    // Predicated region
    $region30: #{forward.23} parent=1 // pred_check
      %p212 = pneg %p25
    $region31: #{forward.23} parent=1 // pred_check_branch
      %214 = sbr.rel (%p212) target = $region33
    $region32: #{forward.23} parent=1 // pred_region
      %v215 = vld [vmem:[%s3] sm:$0xff]
      %v216 = vld [vmem:[%s3 + $0x8] sm:$0xff]
      %v217 = vmul.f32 %v215, 1.4142135
      %v218 = vmul.f32 %v216, 1.4142135
      %v219 = vld [vmem:[#allocation2] sm:$0xff]
      %v220 = vld [vmem:[#allocation2 + $0x8] sm:$0xff]
      %v221 = vadd.f32 %v217, %v219
      %v222 = vadd.f32 %v218, %v220
      %v223 = vld [vmem:[%s2] sm:$0x1]
      %v225 = vlaneseq
      %v226 = vshrl.u32 %v225, 7
      %v227 = vsub.s32 0, %v226
      %v228 = vrot.slane %v223, %v227
      %v230 = vadd.f32 %v221, %v228
      %v231 = vadd.f32 %v222, %v228
      %232 = vadd.xlane.f32.xlu0 %v230
      %v233 = vpop.xlane.xlu0 %232
      %234 = vadd.xlane.f32.xlu0 %v231
      %v235 = vpop.xlane.xlu0 %234
      %v236 = vrcp.pop 128.0
      %v237 = vmul.f32 %v233, %v236
      %v238 = vmul.f32 %v235, %v236
      %v239 = vsub.f32 %v230, %v237
      %v240 = vsub.f32 %v231, %v238
      %v241 = vmul.f32 %v239, %v239
      %v242 = vmul.f32 %v240, %v240
      %243 = vadd.xlane.f32.xlu0 %v241
      %v244 = vpop.xlane.xlu0 %243
      %245 = vadd.xlane.f32.xlu0 %v242
      %v246 = vpop.xlane.xlu0 %245
      %v247 = vmul.f32 %v244, %v236
      %v248 = vmul.f32 %v246, %v236
      %v249 = vadd.f32 %v247, 1e-05
      %v250 = vadd.f32 %v248, 1e-05
      %v251 = vrsqrt.pop %v249
      %v252 = vrsqrt.pop %v250
      %v253 = vmul.f32 %v239, %v251
      %v254 = vmul.f32 %v240, %v252
      %v255 = vld [vmem:[%s4] sm:$0x1]
      %v257 = vlaneseq
      %v258 = vshrl.u32 %v257, 7
      %v259 = vsub.s32 0, %v258
      %v260 = vrot.slane %v255, %v259
      %v262 = vmul.f32 %v253, %v260
      %v263 = vmul.f32 %v254, %v260
      %v264 = vld [vmem:[%s5] sm:$0x1]
      %v266 = vlaneseq
      %v267 = vshrl.u32 %v266, 7
      %v268 = vsub.s32 0, %v267
      %v269 = vrot.slane %v264, %v268
      %v271 = vadd.f32 %v262, %v269
      %v272 = vadd.f32 %v263, %v269
      %273 = vst [vmem:[#allocation3] sm:$0xff] %v271
      %274 = vst [vmem:[#allocation3 + $0x8] sm:$0xff] %v272
    $region33: #{forward.23} parent=1 // pred_fallthru
      _
    // Predicated region
    $region34: #{forward.23} parent=1 // pred_check
      _
    $region35: #{forward.23} parent=1 // pred_check_branch
      %276 = sbr.rel (0) target = $region37
    $region36: #{forward.23} parent=1 // pred_region
      %s278 = ssub.s32 256, 256
      %279 = vsyncadd [#allocation4], %s278
      %s280 = sshll.u32 [#allocation3], 4
      %s281 = int_to_ptr.vmem [resolvable:$true] %s280
      %286 = dma.vmem_to_hbm [thread:$0]  %s281, 256, %s6, [#allocation4], 128, 128, 8
    $region37: #{forward.23} parent=1 // pred_fallthru
      _
    // Predicated region
    $region38: #{forward.23} parent=1 // pred_check
      _
    $region39: #{forward.23} parent=1 // pred_check_branch
      %288 = sbr.rel (0) target = $region41
    $region40: #{forward.23} parent=1 // pred_region
      %289 = dma.done [#allocation4], 256
    $region41: #{forward.23} parent=1 // pred_fallthru
      _
    %290 = vsyncpa [#allocation4], 1

</llo_original>
